<compile_context>
chip_gen: v7x
topology: tpu7x:2x2x1
jax: 0.10.0
libtpu: 0.0.40
codegen_flags: <defaults>
</compile_context>

<pallas_src>
import functools

import jax
import jax.numpy as jnp
from jax import lax
from jax.experimental import pallas as pl
from jax.experimental.pallas import tpu as pltpu

EPS = 1e-5
LANE = 128

_VMEM = pl.BlockSpec(memory_space=pltpu.MemorySpace.VMEM)


def _round_up(x, m):
    return ((x + m - 1) // m) * m


# --------------------------- fused Pallas kernel -----------------------------

def _make_downstep_kernel(N, Hp, Wp, Cin, CP, max_pool, dot_dtype):
    """Builds the fused maxpool+conv1+bn1+conv2+bn2 kernel for static shapes."""
    H1, W1 = Hp - 2, Wp - 2
    H2, W2 = H1 - 2, W1 - 2
    M1 = N * H1 * W1
    M2 = N * H2 * W2

    def conv3x3_relu_bn(x, Ho, Wo, M, Ci, w_ref, b_ref, g_ref, bt_ref):
        # x: (N, Ho+2, Wo+2, Ci) f32, VMEM resident.
        # 3x3 valid conv as 9 accumulated MXU matmuls (channels on lanes).
        acc = jnp.zeros((M, CP), jnp.float32)
        for di in range(3):
            for dj in range(3):
                win = x[:, di:di + Ho, dj:dj + Wo, :].reshape(M, Ci)
                acc = acc + jnp.dot(win.astype(dot_dtype),
                                    w_ref[di * 3 + dj],
                                    preferred_element_type=jnp.float32)
        y = jnp.maximum(acc + b_ref[...], 0.0)            # conv bias + relu

        # training-mode BatchNorm (biased batch variance), single pass:
        # per-channel sum / sum-of-squares via ones-row @ y on the MXU.
        ones = jnp.ones((1, M), jnp.float32)
        s1 = jnp.dot(ones, y, preferred_element_type=jnp.float32)       # (1,CP)
        s2 = jnp.dot(ones, y * y, preferred_element_type=jnp.float32)   # (1,CP)
        inv_m = 1.0 / float(M)
        mean = s1 * inv_m
        var = jnp.maximum(s2 * inv_m - mean * mean, 0.0)
        scale = g_ref[...] * lax.rsqrt(var + EPS)
        shift = bt_ref[...] - mean * scale
        return y * scale + shift                          # (M, CP) f32

    def kernel(x_ref, w1_ref, b1_ref, g1_ref, bt1_ref,
               w2_ref, b2_ref, g2_ref, bt2_ref, o_ref):
        # ---- 2x2 maxpool: the 4 window corners were packed onto lanes ------
        if max_pool:
            xv = x_ref[...]                               # (N, Hp, Wp, 4*Cin)
            p = jnp.maximum(
                jnp.maximum(xv[..., 0 * Cin:1 * Cin], xv[..., 1 * Cin:2 * Cin]),
                jnp.maximum(xv[..., 2 * Cin:3 * Cin], xv[..., 3 * Cin:4 * Cin]))
        else:
            p = x_ref[...]                                # (N, Hp, Wp, Cin)

        # ---- conv1 + relu + BN1 (padded channels stay exactly zero) --------
        h = conv3x3_relu_bn(p, H1, W1, M1, Cin,
                            w1_ref, b1_ref, g1_ref, bt1_ref)
        h = h.reshape(N, H1, W1, CP)

        # ---- conv2 + relu + BN2 ---------------------------------------------
        out = conv3x3_relu_bn(h, H2, W2, M2, CP,
                              w2_ref, b2_ref, g2_ref, bt2_ref)
        o_ref[...] = out.astype(o_ref.dtype)              # lane-dense (M2, CP)

    return kernel


# --------------------------------- wrapper -----------------------------------

def downstep_forward(x_nchw, params, max_pool=True, dot_dtype=jnp.bfloat16):
    """Pallas implementation of downStep.forward. Input/output are NCHW f32."""
    N, Cin, H, W = x_nchw.shape
    Cout = params["w1"].shape[0]
    CP = _round_up(max(Cout, LANE), LANE)      # lane-dense padded channel count

    # -- input layout: one XLA transpose (no per-quadrant HBM copies) --------
    if max_pool:
        Hp, Wp = H // 2, W // 2                # floor, matches F.max_pool2d
        xk = x_nchw[:, :, :2 * Hp, :2 * Wp].reshape(N, Cin, Hp, 2, Wp, 2)
        xk = jnp.transpose(xk, (0, 2, 4, 3, 5, 1)).reshape(N, Hp, Wp, 4 * Cin)
    else:
        Hp, Wp = H, W
        xk = jnp.transpose(x_nchw, (0, 2, 3, 1))          # NCHW -> NHWC
    H1, W1 = Hp - 2, Wp - 2
    H2, W2 = H1 - 2, W1 - 2
    M1, M2 = N * H1 * W1, N * H2 * W2

    # -- weights: (Cout, Ci, 3, 3) -> (9, Ci_pad, CP), zero-padded, dot_dtype --
    def prep_w(w, ci_pad):
        co, ci = w.shape[0], w.shape[1]
        wt = jnp.transpose(w, (2, 3, 1, 0)).reshape(9, ci, co)
        wt = jnp.pad(wt, ((0, 0), (0, ci_pad - ci), (0, CP - co)))
        return wt.astype(dot_dtype)

    def prep_c(v):                                         # (Cout,) -> (1, CP)
        return jnp.pad(v, (0, CP - Cout)).reshape(1, CP).astype(jnp.float32)

    w1 = prep_w(params["w1"], Cin)
    w2 = prep_w(params["w2"], CP)

    kernel = _make_downstep_kernel(N, Hp, Wp, Cin, CP, max_pool, dot_dtype)

    # advisory cost estimate (conv GEMMs + BN stat matmuls)
    flops = (2 * M1 * 9 * Cin * CP + 2 * M2 * 9 * CP * CP
             + 4 * M1 * CP + 4 * M2 * CP)
    bytes_accessed = (xk.size * 4
                      + w1.size * w1.dtype.itemsize
                      + w2.size * w2.dtype.itemsize
                      + 6 * CP * 4 + M2 * CP * 4)
    cost = pl.CostEstimate(flops=int(flops), transcendentals=2 * CP,
                           bytes_accessed=int(bytes_accessed))

    out2d = pl.pallas_call(
        kernel,
        out_shape=jax.ShapeDtypeStruct((M2, CP), jnp.float32),
        in_specs=[_VMEM] * 9,
        out_specs=_VMEM,
        compiler_params=pltpu.CompilerParams(
            vmem_limit_bytes=32 * 1024 * 1024),
        cost_estimate=cost,
    )(xk, w1, prep_c(params["b1"]), prep_c(params["g1"]), prep_c(params["bt1"]),
      w2, prep_c(params["b2"]), prep_c(params["g2"]), prep_c(params["bt2"]))

    out = out2d[:, :Cout].reshape(N, H2, W2, Cout)
    return jnp.transpose(out, (0, 3, 1, 2))               # NHWC -> NCHW


# ----------------------------- pure-JAX references ---------------------------

def _maxpool_nchw(x):
    return lax.reduce_window(x, -jnp.inf, lax.max,
                             (1, 1, 2, 2), (1, 1, 2, 2), "VALID")


def _ref_block_f32(x, w, b, g, bt):
    y = lax.conv_general_dilated(x, w, (1, 1), "VALID",
                                 dimension_numbers=("NCHW", "OIHW", "NCHW"))
    y = jnp.maximum(y + b[None, :, None, None], 0.0)
    mean = jnp.mean(y, axis=(0, 2, 3), keepdims=True)
    var = jnp.mean((y - mean) ** 2, axis=(0, 2, 3), keepdims=True)
    yh = (y - mean) * lax.rsqrt(var + EPS)
    return yh * g[None, :, None, None] + bt[None, :, None, None]


def downstep_reference_f32(x, params, max_pool=True):
    """Pure-f32 reference with the PyTorch module's semantics."""
    if max_pool:
        x = _maxpool_nchw(x)
    x = _ref_block_f32(x, params["w1"], params["b1"], params["g1"], params["bt1"])
    x = _ref_block_f32(x, params["w2"], params["b2"], params["g2"], params["bt2"])
    return x


def _ref_block_bf16(x_nhwc, w_oihw, b, g, bt):
    """Mirrors the kernel numerics: bf16 dot inputs, f32 accum, 1-pass BN."""
    N, H, W, Ci = x_nhwc.shape
    Co = w_oihw.shape[0]
    Ho, Wo = H - 2, W - 2
    M = N * Ho * Wo
    wt = jnp.transpose(w_oihw, (2, 3, 1, 0)).astype(jnp.bfloat16)  # (3,3,Ci,Co)
    acc = jnp.zeros((M, Co), jnp.float32)
    for di in range(3):
        for dj in range(3):
            win = x_nhwc[:, di:di + Ho, dj:dj + Wo, :].reshape(M, Ci)
            acc = acc + jnp.dot(win.astype(jnp.bfloat16), wt[di, dj],
                                preferred_element_type=jnp.float32)
    y = jnp.maximum(acc + b[None, :], 0.0)
    inv_m = 1.0 / float(M)
    mean = jnp.sum(y, axis=0, keepdims=True) * inv_m
    var = jnp.maximum(jnp.sum(y * y, axis=0, keepdims=True) * inv_m
                      - mean * mean, 0.0)
    scale = g[None, :] * lax.rsqrt(var + EPS)
    shift = bt[None, :] - mean * scale
    return (y * scale + shift).reshape(N, Ho, Wo, Co)


def downstep_reference_bf16(x, params, max_pool=True):
    if max_pool:
        x = _maxpool_nchw(x)
    x = jnp.transpose(x, (0, 2, 3, 1))
    x = _ref_block_bf16(x, params["w1"], params["b1"], params["g1"], params["bt1"])
    x = _ref_block_bf16(x, params["w2"], params["b2"], params["g2"], params["bt2"])
    return jnp.transpose(x, (0, 3, 1, 2))


# ----------------------------------- main ------------------------------------

def init_params(key, inC, outC):
    ks = jax.random.split(key, 8)
    return {
        "w1": 0.1 * jax.random.normal(ks[0], (outC, inC, 3, 3), jnp.float32),
        "b1": 0.05 * jax.random.normal(ks[1], (outC,), jnp.float32),
        "g1": 1.0 + 0.1 * jax.random.normal(ks[2], (outC,), jnp.float32),
        "bt1": 0.05 * jax.random.normal(ks[3], (outC,), jnp.float32),
        "w2": 0.1 * jax.random.normal(ks[4], (outC, outC, 3, 3), jnp.float32),
        "b2": 0.05 * jax.random.normal(ks[5], (outC,), jnp.float32),
        "g2": 1.0 + 0.1 * jax.random.normal(ks[6], (outC,), jnp.float32),
        "bt2": 0.05 * jax.random.normal(ks[7], (outC,), jnp.float32),
    }


if __name__ == "__main__":
    key = jax.random.PRNGKey(0)
    k_x, k_p = jax.random.split(key)

    inC, outC = 4, 8
    N, H, W = 2, 16, 16
    x = jax.random.normal(k_x, (N, inC, H, W), jnp.float32)   # NCHW (PyTorch)
    params = init_params(k_p, inC, outC)

    # fast path: bf16 MXU inputs (the deployed configuration)
    fwd_bf16 = jax.jit(functools.partial(downstep_forward, max_pool=True,
                                         dot_dtype=jnp.bfloat16))
    out = jax.block_until_ready(fwd_bf16(x, params))
    assert out.shape == (N, outC, 4, 4), out.shape

    # (1) bf16 kernel vs reference that mirrors its numerics exactly (tight)
    ref_strict = downstep_reference_bf16(x, params, max_pool=True)
    err_strict = float(jnp.max(jnp.abs(out - ref_strict)))
    assert jnp.allclose(out, ref_strict, rtol=5e-3, atol=5e-3), err_strict

    # (2) full-f32 kernel variant vs full-f32 PyTorch-semantics reference (tight)
    fwd_f32 = jax.jit(functools.partial(downstep_forward, max_pool=True,
                                        dot_dtype=jnp.float32))
    out_f32 = jax.block_until_ready(fwd_f32(x, params))
    ref_f32 = downstep_reference_f32(x, params, max_pool=True)
    err_f32 = float(jnp.max(jnp.abs(out_f32 - ref_f32)))
    assert jnp.allclose(out_f32, ref_f32, rtol=1e-3, atol=1e-3), err_f32

    # (3) bf16 fast path stays close to full-f32 semantics (loose sanity)
    err_mixed = float(jnp.max(jnp.abs(out - ref_f32)))
    assert jnp.allclose(out, ref_f32, rtol=1e-1, atol=1e-1), err_mixed

    print("KERNEL_OK")
</pallas_src>

<mosaic_0001>
module attributes {stable_mosaic.version = 11 : i64} {
  func.func @kernel(%arg0: memref<2x8x8x16xf32, #tpu.memory_space<vmem>>, %arg1: memref<9x4x128xbf16, #tpu.memory_space<vmem>>, %arg2: memref<1x128xf32, #tpu.memory_space<vmem>>, %arg3: memref<1x128xf32, #tpu.memory_space<vmem>>, %arg4: memref<1x128xf32, #tpu.memory_space<vmem>>, %arg5: memref<9x128x128xbf16, #tpu.memory_space<vmem>>, %arg6: memref<1x128xf32, #tpu.memory_space<vmem>>, %arg7: memref<1x128xf32, #tpu.memory_space<vmem>>, %arg8: memref<1x128xf32, #tpu.memory_space<vmem>>, %arg9: memref<32x128xf32, #tpu.memory_space<vmem>>) attributes {dimension_semantics = [], scalar_prefetch = 0 : i64, scratch_operands = 0 : i64, tpu.core_type = #tpu.core_type<tc>} {
    %c0 = arith.constant 0 : index
    %c0_0 = arith.constant 0 : index
    %c0_1 = arith.constant 0 : index
    %c0_2 = arith.constant 0 : index
    %0 = vector.load %arg0[%c0, %c0_0, %c0_1, %c0_2] : memref<2x8x8x16xf32, #tpu.memory_space<vmem>>, vector<2x8x8x16xf32>
    %1 = vector.extract_strided_slice %0 {offsets = [0, 0, 0, 0], sizes = [2, 8, 8, 4], strides = [1, 1, 1, 1]} : vector<2x8x8x16xf32> to vector<2x8x8x4xf32>
    %2 = vector.extract_strided_slice %0 {offsets = [0, 0, 0, 4], sizes = [2, 8, 8, 4], strides = [1, 1, 1, 1]} : vector<2x8x8x16xf32> to vector<2x8x8x4xf32>
    %3 = arith.maximumf %1, %2 : vector<2x8x8x4xf32>
    %4 = vector.extract_strided_slice %0 {offsets = [0, 0, 0, 8], sizes = [2, 8, 8, 4], strides = [1, 1, 1, 1]} : vector<2x8x8x16xf32> to vector<2x8x8x4xf32>
    %5 = vector.extract_strided_slice %0 {offsets = [0, 0, 0, 12], sizes = [2, 8, 8, 4], strides = [1, 1, 1, 1]} : vector<2x8x8x16xf32> to vector<2x8x8x4xf32>
    %6 = arith.maximumf %4, %5 : vector<2x8x8x4xf32>
    %7 = arith.maximumf %3, %6 : vector<2x8x8x4xf32>
    %cst = arith.constant 0.000000e+00 : f32
    %8 = vector.broadcast %cst : f32 to vector<72x128xf32>
    %9 = vector.extract_strided_slice %7 {offsets = [0, 0, 0, 0], sizes = [2, 6, 6, 4], strides = [1, 1, 1, 1]} : vector<2x8x8x4xf32> to vector<2x6x6x4xf32>
    %10 = vector.shape_cast %9 : vector<2x6x6x4xf32> to vector<72x4xf32>
    %11 = arith.truncf %10 : vector<72x4xf32> to vector<72x4xbf16>
    %c0_3 = arith.constant 0 : index
    %c0_4 = arith.constant 0 : index
    %c0_5 = arith.constant 0 : index
    %12 = vector.load %arg1[%c0_3, %c0_4, %c0_5] : memref<9x4x128xbf16, #tpu.memory_space<vmem>>, vector<1x4x128xbf16>
    %13 = vector.shape_cast %12 : vector<1x4x128xbf16> to vector<4x128xbf16>
    %cst_6 = arith.constant dense<0.000000e+00> : vector<72x128xf32>
    %14 = tpu.matmul %11, %13, %cst_6 {dimension_numbers = #tpu.dot_dimension_numbers<[1], [0], [0], [1], [0, 0, 1, 1], [], []>} : vector<72x4xbf16>, vector<4x128xbf16>, vector<72x128xf32> -> vector<72x128xf32>
    %15 = arith.addf %8, %14 : vector<72x128xf32>
    %16 = vector.extract_strided_slice %7 {offsets = [0, 0, 1, 0], sizes = [2, 6, 6, 4], strides = [1, 1, 1, 1]} : vector<2x8x8x4xf32> to vector<2x6x6x4xf32>
    %17 = vector.shape_cast %16 : vector<2x6x6x4xf32> to vector<72x4xf32>
    %18 = arith.truncf %17 : vector<72x4xf32> to vector<72x4xbf16>
    %c1 = arith.constant 1 : index
    %c0_7 = arith.constant 0 : index
    %c0_8 = arith.constant 0 : index
    %19 = vector.load %arg1[%c1, %c0_7, %c0_8] : memref<9x4x128xbf16, #tpu.memory_space<vmem>>, vector<1x4x128xbf16>
    %20 = vector.shape_cast %19 : vector<1x4x128xbf16> to vector<4x128xbf16>
    %cst_9 = arith.constant dense<0.000000e+00> : vector<72x128xf32>
    %21 = tpu.matmul %18, %20, %cst_9 {dimension_numbers = #tpu.dot_dimension_numbers<[1], [0], [0], [1], [0, 0, 1, 1], [], []>} : vector<72x4xbf16>, vector<4x128xbf16>, vector<72x128xf32> -> vector<72x128xf32>
    %22 = arith.addf %15, %21 : vector<72x128xf32>
    %23 = vector.extract_strided_slice %7 {offsets = [0, 0, 2, 0], sizes = [2, 6, 6, 4], strides = [1, 1, 1, 1]} : vector<2x8x8x4xf32> to vector<2x6x6x4xf32>
    %24 = vector.shape_cast %23 : vector<2x6x6x4xf32> to vector<72x4xf32>
    %25 = arith.truncf %24 : vector<72x4xf32> to vector<72x4xbf16>
    %c2 = arith.constant 2 : index
    %c0_10 = arith.constant 0 : index
    %c0_11 = arith.constant 0 : index
    %26 = vector.load %arg1[%c2, %c0_10, %c0_11] : memref<9x4x128xbf16, #tpu.memory_space<vmem>>, vector<1x4x128xbf16>
    %27 = vector.shape_cast %26 : vector<1x4x128xbf16> to vector<4x128xbf16>
    %cst_12 = arith.constant dense<0.000000e+00> : vector<72x128xf32>
    %28 = tpu.matmul %25, %27, %cst_12 {dimension_numbers = #tpu.dot_dimension_numbers<[1], [0], [0], [1], [0, 0, 1, 1], [], []>} : vector<72x4xbf16>, vector<4x128xbf16>, vector<72x128xf32> -> vector<72x128xf32>
    %29 = arith.addf %22, %28 : vector<72x128xf32>
    %30 = vector.extract_strided_slice %7 {offsets = [0, 1, 0, 0], sizes = [2, 6, 6, 4], strides = [1, 1, 1, 1]} : vector<2x8x8x4xf32> to vector<2x6x6x4xf32>
    %31 = vector.shape_cast %30 : vector<2x6x6x4xf32> to vector<72x4xf32>
    %32 = arith.truncf %31 : vector<72x4xf32> to vector<72x4xbf16>
    %c3 = arith.constant 3 : index
    %c0_13 = arith.constant 0 : index
    %c0_14 = arith.constant 0 : index
    %33 = vector.load %arg1[%c3, %c0_13, %c0_14] : memref<9x4x128xbf16, #tpu.memory_space<vmem>>, vector<1x4x128xbf16>
    %34 = vector.shape_cast %33 : vector<1x4x128xbf16> to vector<4x128xbf16>
    %cst_15 = arith.constant dense<0.000000e+00> : vector<72x128xf32>
    %35 = tpu.matmul %32, %34, %cst_15 {dimension_numbers = #tpu.dot_dimension_numbers<[1], [0], [0], [1], [0, 0, 1, 1], [], []>} : vector<72x4xbf16>, vector<4x128xbf16>, vector<72x128xf32> -> vector<72x128xf32>
    %36 = arith.addf %29, %35 : vector<72x128xf32>
    %37 = vector.extract_strided_slice %7 {offsets = [0, 1, 1, 0], sizes = [2, 6, 6, 4], strides = [1, 1, 1, 1]} : vector<2x8x8x4xf32> to vector<2x6x6x4xf32>
    %38 = vector.shape_cast %37 : vector<2x6x6x4xf32> to vector<72x4xf32>
    %39 = arith.truncf %38 : vector<72x4xf32> to vector<72x4xbf16>
    %c4 = arith.constant 4 : index
    %c0_16 = arith.constant 0 : index
    %c0_17 = arith.constant 0 : index
    %40 = vector.load %arg1[%c4, %c0_16, %c0_17] : memref<9x4x128xbf16, #tpu.memory_space<vmem>>, vector<1x4x128xbf16>
    %41 = vector.shape_cast %40 : vector<1x4x128xbf16> to vector<4x128xbf16>
    %cst_18 = arith.constant dense<0.000000e+00> : vector<72x128xf32>
    %42 = tpu.matmul %39, %41, %cst_18 {dimension_numbers = #tpu.dot_dimension_numbers<[1], [0], [0], [1], [0, 0, 1, 1], [], []>} : vector<72x4xbf16>, vector<4x128xbf16>, vector<72x128xf32> -> vector<72x128xf32>
    %43 = arith.addf %36, %42 : vector<72x128xf32>
    %44 = vector.extract_strided_slice %7 {offsets = [0, 1, 2, 0], sizes = [2, 6, 6, 4], strides = [1, 1, 1, 1]} : vector<2x8x8x4xf32> to vector<2x6x6x4xf32>
    %45 = vector.shape_cast %44 : vector<2x6x6x4xf32> to vector<72x4xf32>
    %46 = arith.truncf %45 : vector<72x4xf32> to vector<72x4xbf16>
    %c5 = arith.constant 5 : index
    %c0_19 = arith.constant 0 : index
    %c0_20 = arith.constant 0 : index
    %47 = vector.load %arg1[%c5, %c0_19, %c0_20] : memref<9x4x128xbf16, #tpu.memory_space<vmem>>, vector<1x4x128xbf16>
    %48 = vector.shape_cast %47 : vector<1x4x128xbf16> to vector<4x128xbf16>
    %cst_21 = arith.constant dense<0.000000e+00> : vector<72x128xf32>
    %49 = tpu.matmul %46, %48, %cst_21 {dimension_numbers = #tpu.dot_dimension_numbers<[1], [0], [0], [1], [0, 0, 1, 1], [], []>} : vector<72x4xbf16>, vector<4x128xbf16>, vector<72x128xf32> -> vector<72x128xf32>
    %50 = arith.addf %43, %49 : vector<72x128xf32>
    %51 = vector.extract_strided_slice %7 {offsets = [0, 2, 0, 0], sizes = [2, 6, 6, 4], strides = [1, 1, 1, 1]} : vector<2x8x8x4xf32> to vector<2x6x6x4xf32>
    %52 = vector.shape_cast %51 : vector<2x6x6x4xf32> to vector<72x4xf32>
    %53 = arith.truncf %52 : vector<72x4xf32> to vector<72x4xbf16>
    %c6 = arith.constant 6 : index
    %c0_22 = arith.constant 0 : index
    %c0_23 = arith.constant 0 : index
    %54 = vector.load %arg1[%c6, %c0_22, %c0_23] : memref<9x4x128xbf16, #tpu.memory_space<vmem>>, vector<1x4x128xbf16>
    %55 = vector.shape_cast %54 : vector<1x4x128xbf16> to vector<4x128xbf16>
    %cst_24 = arith.constant dense<0.000000e+00> : vector<72x128xf32>
    %56 = tpu.matmul %53, %55, %cst_24 {dimension_numbers = #tpu.dot_dimension_numbers<[1], [0], [0], [1], [0, 0, 1, 1], [], []>} : vector<72x4xbf16>, vector<4x128xbf16>, vector<72x128xf32> -> vector<72x128xf32>
    %57 = arith.addf %50, %56 : vector<72x128xf32>
    %58 = vector.extract_strided_slice %7 {offsets = [0, 2, 1, 0], sizes = [2, 6, 6, 4], strides = [1, 1, 1, 1]} : vector<2x8x8x4xf32> to vector<2x6x6x4xf32>
    %59 = vector.shape_cast %58 : vector<2x6x6x4xf32> to vector<72x4xf32>
    %60 = arith.truncf %59 : vector<72x4xf32> to vector<72x4xbf16>
    %c7 = arith.constant 7 : index
    %c0_25 = arith.constant 0 : index
    %c0_26 = arith.constant 0 : index
    %61 = vector.load %arg1[%c7, %c0_25, %c0_26] : memref<9x4x128xbf16, #tpu.memory_space<vmem>>, vector<1x4x128xbf16>
    %62 = vector.shape_cast %61 : vector<1x4x128xbf16> to vector<4x128xbf16>
    %cst_27 = arith.constant dense<0.000000e+00> : vector<72x128xf32>
    %63 = tpu.matmul %60, %62, %cst_27 {dimension_numbers = #tpu.dot_dimension_numbers<[1], [0], [0], [1], [0, 0, 1, 1], [], []>} : vector<72x4xbf16>, vector<4x128xbf16>, vector<72x128xf32> -> vector<72x128xf32>
    %64 = arith.addf %57, %63 : vector<72x128xf32>
    %65 = vector.extract_strided_slice %7 {offsets = [0, 2, 2, 0], sizes = [2, 6, 6, 4], strides = [1, 1, 1, 1]} : vector<2x8x8x4xf32> to vector<2x6x6x4xf32>
    %66 = vector.shape_cast %65 : vector<2x6x6x4xf32> to vector<72x4xf32>
    %67 = arith.truncf %66 : vector<72x4xf32> to vector<72x4xbf16>
    %c8 = arith.constant 8 : index
    %c0_28 = arith.constant 0 : index
    %c0_29 = arith.constant 0 : index
    %68 = vector.load %arg1[%c8, %c0_28, %c0_29] : memref<9x4x128xbf16, #tpu.memory_space<vmem>>, vector<1x4x128xbf16>
    %69 = vector.shape_cast %68 : vector<1x4x128xbf16> to vector<4x128xbf16>
    %cst_30 = arith.constant dense<0.000000e+00> : vector<72x128xf32>
    %70 = tpu.matmul %67, %69, %cst_30 {dimension_numbers = #tpu.dot_dimension_numbers<[1], [0], [0], [1], [0, 0, 1, 1], [], []>} : vector<72x4xbf16>, vector<4x128xbf16>, vector<72x128xf32> -> vector<72x128xf32>
    %71 = arith.addf %64, %70 : vector<72x128xf32>
    %c0_31 = arith.constant 0 : index
    %c0_32 = arith.constant 0 : index
    %72 = vector.load %arg2[%c0_31, %c0_32] : memref<1x128xf32, #tpu.memory_space<vmem>>, vector<1x128xf32>
    %73 = vector.broadcast %72 : vector<1x128xf32> to vector<72x128xf32>
    %74 = arith.addf %71, %73 : vector<72x128xf32>
    %cst_33 = arith.constant 0.000000e+00 : f32
    %75 = vector.broadcast %cst_33 : f32 to vector<72x128xf32>
    %76 = arith.maximumf %74, %75 : vector<72x128xf32>
    %cst_34 = arith.constant 1.000000e+00 : f32
    %77 = vector.broadcast %cst_34 : f32 to vector<1x72xf32>
    %cst_35 = arith.constant dense<0.000000e+00> : vector<1x128xf32>
    %78 = tpu.matmul %77, %76, %cst_35 {dimension_numbers = #tpu.dot_dimension_numbers<[1], [0], [0], [1], [0, 0, 1, 1], [], []>} : vector<1x72xf32>, vector<72x128xf32>, vector<1x128xf32> -> vector<1x128xf32>
    %79 = arith.mulf %76, %76 : vector<72x128xf32>
    %cst_36 = arith.constant dense<0.000000e+00> : vector<1x128xf32>
    %80 = tpu.matmul %77, %79, %cst_36 {dimension_numbers = #tpu.dot_dimension_numbers<[1], [0], [0], [1], [0, 0, 1, 1], [], []>} : vector<1x72xf32>, vector<72x128xf32>, vector<1x128xf32> -> vector<1x128xf32>
    %cst_37 = arith.constant 0.013888889 : f32
    %81 = vector.broadcast %cst_37 : f32 to vector<1x128xf32>
    %82 = arith.mulf %78, %81 : vector<1x128xf32>
    %cst_38 = arith.constant 0.013888889 : f32
    %83 = vector.broadcast %cst_38 : f32 to vector<1x128xf32>
    %84 = arith.mulf %80, %83 : vector<1x128xf32>
    %85 = arith.mulf %82, %82 : vector<1x128xf32>
    %86 = arith.subf %84, %85 : vector<1x128xf32>
    %cst_39 = arith.constant 0.000000e+00 : f32
    %87 = vector.broadcast %cst_39 : f32 to vector<1x128xf32>
    %88 = arith.maximumf %86, %87 : vector<1x128xf32>
    %c0_40 = arith.constant 0 : index
    %c0_41 = arith.constant 0 : index
    %89 = vector.load %arg3[%c0_40, %c0_41] : memref<1x128xf32, #tpu.memory_space<vmem>>, vector<1x128xf32>
    %cst_42 = arith.constant 9.99999974E-6 : f32
    %90 = vector.broadcast %cst_42 : f32 to vector<1x128xf32>
    %91 = arith.addf %88, %90 : vector<1x128xf32>
    %92 = math.rsqrt %91 : vector<1x128xf32>
    %93 = arith.mulf %89, %92 : vector<1x128xf32>
    %c0_43 = arith.constant 0 : index
    %c0_44 = arith.constant 0 : index
    %94 = vector.load %arg4[%c0_43, %c0_44] : memref<1x128xf32, #tpu.memory_space<vmem>>, vector<1x128xf32>
    %95 = arith.mulf %82, %93 : vector<1x128xf32>
    %96 = arith.subf %94, %95 : vector<1x128xf32>
    %97 = vector.broadcast %93 : vector<1x128xf32> to vector<72x128xf32>
    %98 = arith.mulf %76, %97 : vector<72x128xf32>
    %99 = vector.broadcast %96 : vector<1x128xf32> to vector<72x128xf32>
    %100 = arith.addf %98, %99 : vector<72x128xf32>
    %101 = vector.shape_cast %100 : vector<72x128xf32> to vector<2x6x6x128xf32>
    %cst_45 = arith.constant 0.000000e+00 : f32
    %102 = vector.broadcast %cst_45 : f32 to vector<32x128xf32>
    %103 = vector.extract_strided_slice %101 {offsets = [0, 0, 0, 0], sizes = [2, 4, 4, 128], strides = [1, 1, 1, 1]} : vector<2x6x6x128xf32> to vector<2x4x4x128xf32>
    %104 = vector.shape_cast %103 : vector<2x4x4x128xf32> to vector<32x128xf32>
    %105 = arith.truncf %104 : vector<32x128xf32> to vector<32x128xbf16>
    %c0_46 = arith.constant 0 : index
    %c0_47 = arith.constant 0 : index
    %c0_48 = arith.constant 0 : index
    %106 = vector.load %arg5[%c0_46, %c0_47, %c0_48] : memref<9x128x128xbf16, #tpu.memory_space<vmem>>, vector<1x128x128xbf16>
    %107 = vector.shape_cast %106 : vector<1x128x128xbf16> to vector<128x128xbf16>
    %cst_49 = arith.constant dense<0.000000e+00> : vector<32x128xf32>
    %108 = tpu.matmul %105, %107, %cst_49 {dimension_numbers = #tpu.dot_dimension_numbers<[1], [0], [0], [1], [0, 0, 1, 1], [], []>} : vector<32x128xbf16>, vector<128x128xbf16>, vector<32x128xf32> -> vector<32x128xf32>
    %109 = arith.addf %102, %108 : vector<32x128xf32>
    %110 = vector.extract_strided_slice %101 {offsets = [0, 0, 1, 0], sizes = [2, 4, 4, 128], strides = [1, 1, 1, 1]} : vector<2x6x6x128xf32> to vector<2x4x4x128xf32>
    %111 = vector.shape_cast %110 : vector<2x4x4x128xf32> to vector<32x128xf32>
    %112 = arith.truncf %111 : vector<32x128xf32> to vector<32x128xbf16>
    %c1_50 = arith.constant 1 : index
    %c0_51 = arith.constant 0 : index
    %c0_52 = arith.constant 0 : index
    %113 = vector.load %arg5[%c1_50, %c0_51, %c0_52] : memref<9x128x128xbf16, #tpu.memory_space<vmem>>, vector<1x128x128xbf16>
    %114 = vector.shape_cast %113 : vector<1x128x128xbf16> to vector<128x128xbf16>
    %cst_53 = arith.constant dense<0.000000e+00> : vector<32x128xf32>
    %115 = tpu.matmul %112, %114, %cst_53 {dimension_numbers = #tpu.dot_dimension_numbers<[1], [0], [0], [1], [0, 0, 1, 1], [], []>} : vector<32x128xbf16>, vector<128x128xbf16>, vector<32x128xf32> -> vector<32x128xf32>
    %116 = arith.addf %109, %115 : vector<32x128xf32>
    %117 = vector.extract_strided_slice %101 {offsets = [0, 0, 2, 0], sizes = [2, 4, 4, 128], strides = [1, 1, 1, 1]} : vector<2x6x6x128xf32> to vector<2x4x4x128xf32>
    %118 = vector.shape_cast %117 : vector<2x4x4x128xf32> to vector<32x128xf32>
    %119 = arith.truncf %118 : vector<32x128xf32> to vector<32x128xbf16>
    %c2_54 = arith.constant 2 : index
    %c0_55 = arith.constant 0 : index
    %c0_56 = arith.constant 0 : index
    %120 = vector.load %arg5[%c2_54, %c0_55, %c0_56] : memref<9x128x128xbf16, #tpu.memory_space<vmem>>, vector<1x128x128xbf16>
    %121 = vector.shape_cast %120 : vector<1x128x128xbf16> to vector<128x128xbf16>
    %cst_57 = arith.constant dense<0.000000e+00> : vector<32x128xf32>
    %122 = tpu.matmul %119, %121, %cst_57 {dimension_numbers = #tpu.dot_dimension_numbers<[1], [0], [0], [1], [0, 0, 1, 1], [], []>} : vector<32x128xbf16>, vector<128x128xbf16>, vector<32x128xf32> -> vector<32x128xf32>
    %123 = arith.addf %116, %122 : vector<32x128xf32>
    %124 = vector.extract_strided_slice %101 {offsets = [0, 1, 0, 0], sizes = [2, 4, 4, 128], strides = [1, 1, 1, 1]} : vector<2x6x6x128xf32> to vector<2x4x4x128xf32>
    %125 = vector.shape_cast %124 : vector<2x4x4x128xf32> to vector<32x128xf32>
    %126 = arith.truncf %125 : vector<32x128xf32> to vector<32x128xbf16>
    %c3_58 = arith.constant 3 : index
    %c0_59 = arith.constant 0 : index
    %c0_60 = arith.constant 0 : index
    %127 = vector.load %arg5[%c3_58, %c0_59, %c0_60] : memref<9x128x128xbf16, #tpu.memory_space<vmem>>, vector<1x128x128xbf16>
    %128 = vector.shape_cast %127 : vector<1x128x128xbf16> to vector<128x128xbf16>
    %cst_61 = arith.constant dense<0.000000e+00> : vector<32x128xf32>
    %129 = tpu.matmul %126, %128, %cst_61 {dimension_numbers = #tpu.dot_dimension_numbers<[1], [0], [0], [1], [0, 0, 1, 1], [], []>} : vector<32x128xbf16>, vector<128x128xbf16>, vector<32x128xf32> -> vector<32x128xf32>
    %130 = arith.addf %123, %129 : vector<32x128xf32>
    %131 = vector.extract_strided_slice %101 {offsets = [0, 1, 1, 0], sizes = [2, 4, 4, 128], strides = [1, 1, 1, 1]} : vector<2x6x6x128xf32> to vector<2x4x4x128xf32>
    %132 = vector.shape_cast %131 : vector<2x4x4x128xf32> to vector<32x128xf32>
    %133 = arith.truncf %132 : vector<32x128xf32> to vector<32x128xbf16>
    %c4_62 = arith.constant 4 : index
    %c0_63 = arith.constant 0 : index
    %c0_64 = arith.constant 0 : index
    %134 = vector.load %arg5[%c4_62, %c0_63, %c0_64] : memref<9x128x128xbf16, #tpu.memory_space<vmem>>, vector<1x128x128xbf16>
    %135 = vector.shape_cast %134 : vector<1x128x128xbf16> to vector<128x128xbf16>
    %cst_65 = arith.constant dense<0.000000e+00> : vector<32x128xf32>
    %136 = tpu.matmul %133, %135, %cst_65 {dimension_numbers = #tpu.dot_dimension_numbers<[1], [0], [0], [1], [0, 0, 1, 1], [], []>} : vector<32x128xbf16>, vector<128x128xbf16>, vector<32x128xf32> -> vector<32x128xf32>
    %137 = arith.addf %130, %136 : vector<32x128xf32>
    %138 = vector.extract_strided_slice %101 {offsets = [0, 1, 2, 0], sizes = [2, 4, 4, 128], strides = [1, 1, 1, 1]} : vector<2x6x6x128xf32> to vector<2x4x4x128xf32>
    %139 = vector.shape_cast %138 : vector<2x4x4x128xf32> to vector<32x128xf32>
    %140 = arith.truncf %139 : vector<32x128xf32> to vector<32x128xbf16>
    %c5_66 = arith.constant 5 : index
    %c0_67 = arith.constant 0 : index
    %c0_68 = arith.constant 0 : index
    %141 = vector.load %arg5[%c5_66, %c0_67, %c0_68] : memref<9x128x128xbf16, #tpu.memory_space<vmem>>, vector<1x128x128xbf16>
    %142 = vector.shape_cast %141 : vector<1x128x128xbf16> to vector<128x128xbf16>
    %cst_69 = arith.constant dense<0.000000e+00> : vector<32x128xf32>
    %143 = tpu.matmul %140, %142, %cst_69 {dimension_numbers = #tpu.dot_dimension_numbers<[1], [0], [0], [1], [0, 0, 1, 1], [], []>} : vector<32x128xbf16>, vector<128x128xbf16>, vector<32x128xf32> -> vector<32x128xf32>
    %144 = arith.addf %137, %143 : vector<32x128xf32>
    %145 = vector.extract_strided_slice %101 {offsets = [0, 2, 0, 0], sizes = [2, 4, 4, 128], strides = [1, 1, 1, 1]} : vector<2x6x6x128xf32> to vector<2x4x4x128xf32>
    %146 = vector.shape_cast %145 : vector<2x4x4x128xf32> to vector<32x128xf32>
    %147 = arith.truncf %146 : vector<32x128xf32> to vector<32x128xbf16>
    %c6_70 = arith.constant 6 : index
    %c0_71 = arith.constant 0 : index
    %c0_72 = arith.constant 0 : index
    %148 = vector.load %arg5[%c6_70, %c0_71, %c0_72] : memref<9x128x128xbf16, #tpu.memory_space<vmem>>, vector<1x128x128xbf16>
    %149 = vector.shape_cast %148 : vector<1x128x128xbf16> to vector<128x128xbf16>
    %cst_73 = arith.constant dense<0.000000e+00> : vector<32x128xf32>
    %150 = tpu.matmul %147, %149, %cst_73 {dimension_numbers = #tpu.dot_dimension_numbers<[1], [0], [0], [1], [0, 0, 1, 1], [], []>} : vector<32x128xbf16>, vector<128x128xbf16>, vector<32x128xf32> -> vector<32x128xf32>
    %151 = arith.addf %144, %150 : vector<32x128xf32>
    %152 = vector.extract_strided_slice %101 {offsets = [0, 2, 1, 0], sizes = [2, 4, 4, 128], strides = [1, 1, 1, 1]} : vector<2x6x6x128xf32> to vector<2x4x4x128xf32>
    %153 = vector.shape_cast %152 : vector<2x4x4x128xf32> to vector<32x128xf32>
    %154 = arith.truncf %153 : vector<32x128xf32> to vector<32x128xbf16>
    %c7_74 = arith.constant 7 : index
    %c0_75 = arith.constant 0 : index
    %c0_76 = arith.constant 0 : index
    %155 = vector.load %arg5[%c7_74, %c0_75, %c0_76] : memref<9x128x128xbf16, #tpu.memory_space<vmem>>, vector<1x128x128xbf16>
    %156 = vector.shape_cast %155 : vector<1x128x128xbf16> to vector<128x128xbf16>
    %cst_77 = arith.constant dense<0.000000e+00> : vector<32x128xf32>
    %157 = tpu.matmul %154, %156, %cst_77 {dimension_numbers = #tpu.dot_dimension_numbers<[1], [0], [0], [1], [0, 0, 1, 1], [], []>} : vector<32x128xbf16>, vector<128x128xbf16>, vector<32x128xf32> -> vector<32x128xf32>
    %158 = arith.addf %151, %157 : vector<32x128xf32>
    %159 = vector.extract_strided_slice %101 {offsets = [0, 2, 2, 0], sizes = [2, 4, 4, 128], strides = [1, 1, 1, 1]} : vector<2x6x6x128xf32> to vector<2x4x4x128xf32>
    %160 = vector.shape_cast %159 : vector<2x4x4x128xf32> to vector<32x128xf32>
    %161 = arith.truncf %160 : vector<32x128xf32> to vector<32x128xbf16>
    %c8_78 = arith.constant 8 : index
    %c0_79 = arith.constant 0 : index
    %c0_80 = arith.constant 0 : index
    %162 = vector.load %arg5[%c8_78, %c0_79, %c0_80] : memref<9x128x128xbf16, #tpu.memory_space<vmem>>, vector<1x128x128xbf16>
    %163 = vector.shape_cast %162 : vector<1x128x128xbf16> to vector<128x128xbf16>
    %cst_81 = arith.constant dense<0.000000e+00> : vector<32x128xf32>
    %164 = tpu.matmul %161, %163, %cst_81 {dimension_numbers = #tpu.dot_dimension_numbers<[1], [0], [0], [1], [0, 0, 1, 1], [], []>} : vector<32x128xbf16>, vector<128x128xbf16>, vector<32x128xf32> -> vector<32x128xf32>
    %165 = arith.addf %158, %164 : vector<32x128xf32>
    %c0_82 = arith.constant 0 : index
    %c0_83 = arith.constant 0 : index
    %166 = vector.load %arg6[%c0_82, %c0_83] : memref<1x128xf32, #tpu.memory_space<vmem>>, vector<1x128xf32>
    %167 = vector.broadcast %166 : vector<1x128xf32> to vector<32x128xf32>
    %168 = arith.addf %165, %167 : vector<32x128xf32>
    %cst_84 = arith.constant 0.000000e+00 : f32
    %169 = vector.broadcast %cst_84 : f32 to vector<32x128xf32>
    %170 = arith.maximumf %168, %169 : vector<32x128xf32>
    %cst_85 = arith.constant 1.000000e+00 : f32
    %171 = vector.broadcast %cst_85 : f32 to vector<1x32xf32>
    %cst_86 = arith.constant dense<0.000000e+00> : vector<1x128xf32>
    %172 = tpu.matmul %171, %170, %cst_86 {dimension_numbers = #tpu.dot_dimension_numbers<[1], [0], [0], [1], [0, 0, 1, 1], [], []>} : vector<1x32xf32>, vector<32x128xf32>, vector<1x128xf32> -> vector<1x128xf32>
    %173 = arith.mulf %170, %170 : vector<32x128xf32>
    %cst_87 = arith.constant dense<0.000000e+00> : vector<1x128xf32>
    %174 = tpu.matmul %171, %173, %cst_87 {dimension_numbers = #tpu.dot_dimension_numbers<[1], [0], [0], [1], [0, 0, 1, 1], [], []>} : vector<1x32xf32>, vector<32x128xf32>, vector<1x128xf32> -> vector<1x128xf32>
    %cst_88 = arith.constant 3.125000e-02 : f32
    %175 = vector.broadcast %cst_88 : f32 to vector<1x128xf32>
    %176 = arith.mulf %172, %175 : vector<1x128xf32>
    %cst_89 = arith.constant 3.125000e-02 : f32
    %177 = vector.broadcast %cst_89 : f32 to vector<1x128xf32>
    %178 = arith.mulf %174, %177 : vector<1x128xf32>
    %179 = arith.mulf %176, %176 : vector<1x128xf32>
    %180 = arith.subf %178, %179 : vector<1x128xf32>
    %cst_90 = arith.constant 0.000000e+00 : f32
    %181 = vector.broadcast %cst_90 : f32 to vector<1x128xf32>
    %182 = arith.maximumf %180, %181 : vector<1x128xf32>
    %c0_91 = arith.constant 0 : index
    %c0_92 = arith.constant 0 : index
    %183 = vector.load %arg7[%c0_91, %c0_92] : memref<1x128xf32, #tpu.memory_space<vmem>>, vector<1x128xf32>
    %cst_93 = arith.constant 9.99999974E-6 : f32
    %184 = vector.broadcast %cst_93 : f32 to vector<1x128xf32>
    %185 = arith.addf %182, %184 : vector<1x128xf32>
    %186 = math.rsqrt %185 : vector<1x128xf32>
    %187 = arith.mulf %183, %186 : vector<1x128xf32>
    %c0_94 = arith.constant 0 : index
    %c0_95 = arith.constant 0 : index
    %188 = vector.load %arg8[%c0_94, %c0_95] : memref<1x128xf32, #tpu.memory_space<vmem>>, vector<1x128xf32>
    %189 = arith.mulf %176, %187 : vector<1x128xf32>
    %190 = arith.subf %188, %189 : vector<1x128xf32>
    %191 = vector.broadcast %187 : vector<1x128xf32> to vector<32x128xf32>
    %192 = arith.mulf %170, %191 : vector<32x128xf32>
    %193 = vector.broadcast %190 : vector<1x128xf32> to vector<32x128xf32>
    %194 = arith.addf %192, %193 : vector<32x128xf32>
    %c0_96 = arith.constant 0 : index
    %c0_97 = arith.constant 0 : index
    %195 = vector.load %arg9[%c0_96, %c0_97] : memref<32x128xf32, #tpu.memory_space<vmem>>, vector<32x128xf32>
    tpu.vector_store %arg9[%c0_96, %c0_97], %194 {strides = array<i32>} : memref<32x128xf32, #tpu.memory_space<vmem>>, vector<32x128xf32>,
    return
  }
}

</mosaic_0001>

<llo_original>
// kernel: downstep_forward.1
$region0: #{downstep_forward.1}
  #allocation0 [shape = 'u32[]', space=smem, size = 0x4, offset = 0x4, fixed_abs, tag = 'smem constant byte address 0x4 - core index']
  #allocation1 [shape = 'u32[144,128]{1,0:T(1,128)}', space=vmem, size = 0x12000, scoped, tag = 'internal scratch']
  %s0 = inlined_call_operand.vmem [shape: f32[2,8,8,16], index: 0, kind: input, shape index: {}]
  %s1 = inlined_call_operand.vmem [shape: bf16[9,4,128], index: 1, kind: input, shape index: {}]
  %s2 = inlined_call_operand.vmem [shape: f32[1,128], index: 2, kind: input, shape index: {}]
  %s3 = inlined_call_operand.vmem [shape: f32[1,128], index: 3, kind: input, shape index: {}]
  %s4 = inlined_call_operand.vmem [shape: f32[1,128], index: 4, kind: input, shape index: {}]
  %s5 = inlined_call_operand.vmem [shape: bf16[9,128,128], index: 5, kind: input, shape index: {}]
  %s6 = inlined_call_operand.vmem [shape: f32[1,128], index: 6, kind: input, shape index: {}]
  %s7 = inlined_call_operand.vmem [shape: f32[1,128], index: 7, kind: input, shape index: {}]
  %s8 = inlined_call_operand.vmem [shape: f32[1,128], index: 8, kind: input, shape index: {}]
  %s9 = inlined_call_operand.hbm [shape: f32[32,128], index: 9, kind: output, shape index: {}]
  %s10 = sld [smem:[#allocation0]]
  $region46: #{downstep_forward.1} parent=0
    _
  %s12 = ssub.s32 1, %s10
  %s13 = scalar_select 0, %s12, %s10
  $region1: #{downstep_forward.1} parent=0
    #allocation2 [shape = 'u8[16384]{0}', space=vmem, size = 0x4000, scoped, tag = 'output window, operand 0, single buffered']
    #allocation3 [shape = 's32[1]{0}', space=sflag, size = 0x4, scoped, tag = 'scoped memory for downstep_forward.1']
    %14 = vsyncpa [#allocation3], 0
    // Predicated region
    $region2: #{downstep_forward.1} parent=1 // pred_check
      _
    $region3: #{downstep_forward.1} parent=1 // pred_check_branch
      %16 = sbr.rel (0) target = $region5
    $region4: #{downstep_forward.1} parent=1 // pred_region
      _
    $region5: #{downstep_forward.1} parent=1 // pred_fallthru
      _
    // Predicated region
    $region6: #{downstep_forward.1} parent=1 // pred_check
      _
    $region7: #{downstep_forward.1} parent=1 // pred_check_branch
      %18 = sbr.rel (0) target = $region9
    $region8: #{downstep_forward.1} parent=1 // pred_region
      _
    $region9: #{downstep_forward.1} parent=1 // pred_fallthru
      _
    // Predicated region
    $region10: #{downstep_forward.1} parent=1 // pred_check
      _
    $region11: #{downstep_forward.1} parent=1 // pred_check_branch
      %20 = sbr.rel (0) target = $region13
    $region12: #{downstep_forward.1} parent=1 // pred_region
      _
    $region13: #{downstep_forward.1} parent=1 // pred_fallthru
      _
    // Predicated region
    $region14: #{downstep_forward.1} parent=1 // pred_check
      _
    $region15: #{downstep_forward.1} parent=1 // pred_check_branch
      %22 = sbr.rel (0) target = $region17
    $region16: #{downstep_forward.1} parent=1 // pred_region
      _
    $region17: #{downstep_forward.1} parent=1 // pred_fallthru
      _
    // Predicated region
    $region18: #{downstep_forward.1} parent=1 // pred_check
      _
    $region19: #{downstep_forward.1} parent=1 // pred_check_branch
      %24 = sbr.rel (0) target = $region21
    $region20: #{downstep_forward.1} parent=1 // pred_region
      _
    $region21: #{downstep_forward.1} parent=1 // pred_fallthru
      _
    // Predicated region
    $region22: #{downstep_forward.1} parent=1 // pred_check
      _
    $region23: #{downstep_forward.1} parent=1 // pred_check_branch
      %26 = sbr.rel (0) target = $region25
    $region24: #{downstep_forward.1} parent=1 // pred_region
      _
    $region25: #{downstep_forward.1} parent=1 // pred_fallthru
      _
    // Predicated region
    $region26: #{downstep_forward.1} parent=1 // pred_check
      _
    $region27: #{downstep_forward.1} parent=1 // pred_check_branch
      %28 = sbr.rel (0) target = $region29
    $region28: #{downstep_forward.1} parent=1 // pred_region
      _
    $region29: #{downstep_forward.1} parent=1 // pred_fallthru
      _
    // Predicated region
    $region30: #{downstep_forward.1} parent=1 // pred_check
      _
    $region31: #{downstep_forward.1} parent=1 // pred_check_branch
      %30 = sbr.rel (0) target = $region33
    $region32: #{downstep_forward.1} parent=1 // pred_region
      _
    $region33: #{downstep_forward.1} parent=1 // pred_fallthru
      _
    // Predicated region
    $region34: #{downstep_forward.1} parent=1 // pred_check
      _
    $region35: #{downstep_forward.1} parent=1 // pred_check_branch
      %32 = sbr.rel (0) target = $region37
    $region36: #{downstep_forward.1} parent=1 // pred_region
      _
    $region37: #{downstep_forward.1} parent=1 // pred_fallthru
      _
    %v34 = vld [vmem:[%s0] sm:$0xff]
    %v35 = vld [vmem:[%s0 + $0x8] sm:$0xff]
    %v36 = vld [vmem:[%s0 + $0x10] sm:$0xff]
    %v37 = vld [vmem:[%s0 + $0x18] sm:$0xff]
    %v38 = vld [vmem:[%s0 + $0x20] sm:$0xff]
    %v39 = vld [vmem:[%s0 + $0x28] sm:$0xff]
    %v40 = vld [vmem:[%s0 + $0x30] sm:$0xff]
    %v41 = vld [vmem:[%s0 + $0x38] sm:$0xff]
    %v42 = vld [vmem:[%s0 + $0x40] sm:$0xff]
    %v43 = vld [vmem:[%s0 + $0x48] sm:$0xff]
    %v44 = vld [vmem:[%s0 + $0x50] sm:$0xff]
    %v45 = vld [vmem:[%s0 + $0x58] sm:$0xff]
    %v46 = vld [vmem:[%s0 + $0x60] sm:$0xff]
    %v47 = vld [vmem:[%s0 + $0x68] sm:$0xff]
    %v48 = vld [vmem:[%s0 + $0x70] sm:$0xff]
    %v49 = vld [vmem:[%s0 + $0x78] sm:$0xff]
    %66 = vrot.lane.b32.xlu0 %v34, 124
    %v67 = vpop.permute.xlu0 %66
    %68 = vrot.lane.b32.xlu0 %v35, 124
    %v69 = vpop.permute.xlu0 %68
    %70 = vrot.lane.b32.xlu0 %v36, 124
    %v71 = vpop.permute.xlu0 %70
    %72 = vrot.lane.b32.xlu0 %v37, 124
    %v73 = vpop.permute.xlu0 %72
    %74 = vrot.lane.b32.xlu0 %v38, 124
    %v75 = vpop.permute.xlu0 %74
    %76 = vrot.lane.b32.xlu0 %v39, 124
    %v77 = vpop.permute.xlu0 %76
    %78 = vrot.lane.b32.xlu0 %v40, 124
    %v79 = vpop.permute.xlu0 %78
    %80 = vrot.lane.b32.xlu0 %v41, 124
    %v81 = vpop.permute.xlu0 %80
    %82 = vrot.lane.b32.xlu0 %v42, 124
    %v83 = vpop.permute.xlu0 %82
    %84 = vrot.lane.b32.xlu0 %v43, 124
    %v85 = vpop.permute.xlu0 %84
    %86 = vrot.lane.b32.xlu0 %v44, 124
    %v87 = vpop.permute.xlu0 %86
    %88 = vrot.lane.b32.xlu0 %v45, 124
    %v89 = vpop.permute.xlu0 %88
    %90 = vrot.lane.b32.xlu0 %v46, 124
    %v91 = vpop.permute.xlu0 %90
    %92 = vrot.lane.b32.xlu0 %v47, 124
    %v93 = vpop.permute.xlu0 %92
    %94 = vrot.lane.b32.xlu0 %v48, 124
    %v95 = vpop.permute.xlu0 %94
    %96 = vrot.lane.b32.xlu0 %v49, 124
    %v97 = vpop.permute.xlu0 %96
    %v114 = vmax.f32 %v34, %v67
    %v115 = vmax.f32 %v35, %v69
    %v116 = vmax.f32 %v36, %v71
    %v117 = vmax.f32 %v37, %v73
    %v118 = vmax.f32 %v38, %v75
    %v119 = vmax.f32 %v39, %v77
    %v120 = vmax.f32 %v40, %v79
    %v121 = vmax.f32 %v41, %v81
    %v122 = vmax.f32 %v42, %v83
    %v123 = vmax.f32 %v43, %v85
    %v124 = vmax.f32 %v44, %v87
    %v125 = vmax.f32 %v45, %v89
    %v126 = vmax.f32 %v46, %v91
    %v127 = vmax.f32 %v47, %v93
    %v128 = vmax.f32 %v48, %v95
    %v129 = vmax.f32 %v49, %v97
    %146 = vrot.lane.b32.xlu0 %v114, 120
    %v147 = vpop.permute.xlu0 %146
    %148 = vrot.lane.b32.xlu0 %v115, 120
    %v149 = vpop.permute.xlu0 %148
    %150 = vrot.lane.b32.xlu0 %v116, 120
    %v151 = vpop.permute.xlu0 %150
    %152 = vrot.lane.b32.xlu0 %v117, 120
    %v153 = vpop.permute.xlu0 %152
    %154 = vrot.lane.b32.xlu0 %v118, 120
    %v155 = vpop.permute.xlu0 %154
    %156 = vrot.lane.b32.xlu0 %v119, 120
    %v157 = vpop.permute.xlu0 %156
    %158 = vrot.lane.b32.xlu0 %v120, 120
    %v159 = vpop.permute.xlu0 %158
    %160 = vrot.lane.b32.xlu0 %v121, 120
    %v161 = vpop.permute.xlu0 %160
    %162 = vrot.lane.b32.xlu0 %v122, 120
    %v163 = vpop.permute.xlu0 %162
    %164 = vrot.lane.b32.xlu0 %v123, 120
    %v165 = vpop.permute.xlu0 %164
    %166 = vrot.lane.b32.xlu0 %v124, 120
    %v167 = vpop.permute.xlu0 %166
    %168 = vrot.lane.b32.xlu0 %v125, 120
    %v169 = vpop.permute.xlu0 %168
    %170 = vrot.lane.b32.xlu0 %v126, 120
    %v171 = vpop.permute.xlu0 %170
    %172 = vrot.lane.b32.xlu0 %v127, 120
    %v173 = vpop.permute.xlu0 %172
    %174 = vrot.lane.b32.xlu0 %v128, 120
    %v175 = vpop.permute.xlu0 %174
    %176 = vrot.lane.b32.xlu0 %v129, 120
    %v177 = vpop.permute.xlu0 %176
    %v194 = vmax.f32 %v114, %v147
    %v195 = vmax.f32 %v115, %v149
    %v196 = vmax.f32 %v116, %v151
    %v197 = vmax.f32 %v117, %v153
    %v198 = vmax.f32 %v118, %v155
    %v199 = vmax.f32 %v119, %v157
    %v200 = vmax.f32 %v120, %v159
    %v201 = vmax.f32 %v121, %v161
    %v202 = vmax.f32 %v122, %v163
    %v203 = vmax.f32 %v123, %v165
    %v204 = vmax.f32 %v124, %v167
    %v205 = vmax.f32 %v125, %v169
    %v206 = vmax.f32 %v126, %v171
    %v207 = vmax.f32 %v127, %v173
    %v208 = vmax.f32 %v128, %v175
    %v209 = vmax.f32 %v129, %v177
    %v222 = vcombine.high %v194, %v194
    %v224 = vunpack.c.l.s4 1983009808
    %v225 = vunpack.c.0.s8 %v224
    %v226 = vlaneseq
    %v227 = vshrl.u32 %v226, 7
    %v228 = vsub.s32 %v225, %v227
    %v229 = vrot.slane %v194, %v228
    %v231 = vunpack.c.l.s4 1983009808
    %v232 = vunpack.c.0.s8 %v231
    %v233 = vlaneseq
    %v234 = vshrl.u32 %v233, 7
    %v235 = vsub.s32 %v232, %v234
    %v236 = vrot.slane %v222, %v235
    %v237 = vcombine.high %v229, %v229
    %v238 = vcombine.high %v195, %v195
    %v240 = vunpack.c.l.s4 1983009808
    %v241 = vunpack.c.0.s8 %v240
    %v242 = vlaneseq
    %v243 = vshrl.u32 %v242, 7
    %v244 = vsub.s32 %v241, %v243
    %v245 = vrot.slane %v195, %v244
    %v247 = vunpack.c.l.s4 1983009808
    %v248 = vunpack.c.0.s8 %v247
    %v249 = vlaneseq
    %v250 = vshrl.u32 %v249, 7
    %v251 = vsub.s32 %v248, %v250
    %v252 = vrot.slane %v238, %v251
    %v253 = vcombine.high %v245, %v245
    %v254 = vcombine.high %v196, %v196
    %v256 = vunpack.c.l.s4 1983009808
    %v257 = vunpack.c.0.s8 %v256
    %v258 = vlaneseq
    %v259 = vshrl.u32 %v258, 7
    %v260 = vsub.s32 %v257, %v259
    %v261 = vrot.slane %v196, %v260
    %v263 = vunpack.c.l.s4 1983009808
    %v264 = vunpack.c.0.s8 %v263
    %v265 = vlaneseq
    %v266 = vshrl.u32 %v265, 7
    %v267 = vsub.s32 %v264, %v266
    %v268 = vrot.slane %v254, %v267
    %v269 = vcombine.high %v261, %v261
    %v270 = vcombine.high %v197, %v197
    %v272 = vunpack.c.l.s4 1983009808
    %v273 = vunpack.c.0.s8 %v272
    %v274 = vlaneseq
    %v275 = vshrl.u32 %v274, 7
    %v276 = vsub.s32 %v273, %v275
    %v277 = vrot.slane %v197, %v276
    %v279 = vunpack.c.l.s4 1983009808
    %v280 = vunpack.c.0.s8 %v279
    %v281 = vlaneseq
    %v282 = vshrl.u32 %v281, 7
    %v283 = vsub.s32 %v280, %v282
    %v284 = vrot.slane %v270, %v283
    %v285 = vcombine.high %v277, %v277
    %v286 = vcombine.high %v198, %v198
    %v288 = vunpack.c.l.s4 1983009808
    %v289 = vunpack.c.0.s8 %v288
    %v290 = vlaneseq
    %v291 = vshrl.u32 %v290, 7
    %v292 = vsub.s32 %v289, %v291
    %v293 = vrot.slane %v198, %v292
    %v295 = vunpack.c.l.s4 1983009808
    %v296 = vunpack.c.0.s8 %v295
    %v297 = vlaneseq
    %v298 = vshrl.u32 %v297, 7
    %v299 = vsub.s32 %v296, %v298
    %v300 = vrot.slane %v286, %v299
    %v301 = vcombine.high %v293, %v293
    %v302 = vcombine.high %v199, %v199
    %v304 = vunpack.c.l.s4 1983009808
    %v305 = vunpack.c.0.s8 %v304
    %v306 = vlaneseq
    %v307 = vshrl.u32 %v306, 7
    %v308 = vsub.s32 %v305, %v307
    %v309 = vrot.slane %v199, %v308
    %v311 = vunpack.c.l.s4 1983009808
    %v312 = vunpack.c.0.s8 %v311
    %v313 = vlaneseq
    %v314 = vshrl.u32 %v313, 7
    %v315 = vsub.s32 %v312, %v314
    %v316 = vrot.slane %v302, %v315
    %v317 = vcombine.high %v309, %v309
    %v318 = vcombine.high %v202, %v202
    %v320 = vunpack.c.l.s4 1983009808
    %v321 = vunpack.c.0.s8 %v320
    %v322 = vlaneseq
    %v323 = vshrl.u32 %v322, 7
    %v324 = vsub.s32 %v321, %v323
    %v325 = vrot.slane %v202, %v324
    %v327 = vunpack.c.l.s4 1983009808
    %v328 = vunpack.c.0.s8 %v327
    %v329 = vlaneseq
    %v330 = vshrl.u32 %v329, 7
    %v331 = vsub.s32 %v328, %v330
    %v332 = vrot.slane %v318, %v331
    %v333 = vcombine.high %v325, %v325
    %v334 = vcombine.high %v203, %v203
    %v336 = vunpack.c.l.s4 1983009808
    %v337 = vunpack.c.0.s8 %v336
    %v338 = vlaneseq
    %v339 = vshrl.u32 %v338, 7
    %v340 = vsub.s32 %v337, %v339
    %v341 = vrot.slane %v203, %v340
    %v343 = vunpack.c.l.s4 1983009808
    %v344 = vunpack.c.0.s8 %v343
    %v345 = vlaneseq
    %v346 = vshrl.u32 %v345, 7
    %v347 = vsub.s32 %v344, %v346
    %v348 = vrot.slane %v334, %v347
    %v349 = vcombine.high %v341, %v341
    %v350 = vcombine.high %v204, %v204
    %v352 = vunpack.c.l.s4 1983009808
    %v353 = vunpack.c.0.s8 %v352
    %v354 = vlaneseq
    %v355 = vshrl.u32 %v354, 7
    %v356 = vsub.s32 %v353, %v355
    %v357 = vrot.slane %v204, %v356
    %v359 = vunpack.c.l.s4 1983009808
    %v360 = vunpack.c.0.s8 %v359
    %v361 = vlaneseq
    %v362 = vshrl.u32 %v361, 7
    %v363 = vsub.s32 %v360, %v362
    %v364 = vrot.slane %v350, %v363
    %v365 = vcombine.high %v357, %v357
    %v366 = vcombine.high %v205, %v205
    %v368 = vunpack.c.l.s4 1983009808
    %v369 = vunpack.c.0.s8 %v368
    %v370 = vlaneseq
    %v371 = vshrl.u32 %v370, 7
    %v372 = vsub.s32 %v369, %v371
    %v373 = vrot.slane %v205, %v372
    %v375 = vunpack.c.l.s4 1983009808
    %v376 = vunpack.c.0.s8 %v375
    %v377 = vlaneseq
    %v378 = vshrl.u32 %v377, 7
    %v379 = vsub.s32 %v376, %v378
    %v380 = vrot.slane %v366, %v379
    %v381 = vcombine.high %v373, %v373
    %v382 = vcombine.high %v206, %v206
    %v384 = vunpack.c.l.s4 1983009808
    %v385 = vunpack.c.0.s8 %v384
    %v386 = vlaneseq
    %v387 = vshrl.u32 %v386, 7
    %v388 = vsub.s32 %v385, %v387
    %v389 = vrot.slane %v206, %v388
    %v391 = vunpack.c.l.s4 1983009808
    %v392 = vunpack.c.0.s8 %v391
    %v393 = vlaneseq
    %v394 = vshrl.u32 %v393, 7
    %v395 = vsub.s32 %v392, %v394
    %v396 = vrot.slane %v382, %v395
    %v397 = vcombine.high %v389, %v389
    %v398 = vcombine.high %v207, %v207
    %v400 = vunpack.c.l.s4 1983009808
    %v401 = vunpack.c.0.s8 %v400
    %v402 = vlaneseq
    %v403 = vshrl.u32 %v402, 7
    %v404 = vsub.s32 %v401, %v403
    %v405 = vrot.slane %v207, %v404
    %v407 = vunpack.c.l.s4 1983009808
    %v408 = vunpack.c.0.s8 %v407
    %v409 = vlaneseq
    %v410 = vshrl.u32 %v409, 7
    %v411 = vsub.s32 %v408, %v410
    %v412 = vrot.slane %v398, %v411
    %v413 = vcombine.high %v405, %v405
    %v414 = vcombine.low %v229, %v237
    %v415 = vcombine.low %v236, %v245
    %v417 = vunpack.c.l.s4 1983009808
    %v418 = vunpack.c.0.s8 %v417
    %v419 = vlaneseq
    %v420 = vshrl.u32 %v419, 7
    %v421 = vsub.s32 %v418, %v420
    %v422 = vrot.slane %v414, %v421
    %v424 = vunpack.c.l.s4 1983009808
    %v425 = vunpack.c.0.s8 %v424
    %v426 = vlaneseq
    %v427 = vshrl.u32 %v426, 7
    %v428 = vsub.s32 %v425, %v427
    %v429 = vrot.slane %v415, %v428
    %v430 = vcombine.low %v422, %v429
    %v431 = vcombine.low %v253, %v252
    %v432 = vcombine.low %v261, %v269
    %v434 = vunpack.c.l.s4 1983009808
    %v435 = vunpack.c.0.s8 %v434
    %v436 = vlaneseq
    %v437 = vshrl.u32 %v436, 7
    %v438 = vsub.s32 %v435, %v437
    %v439 = vrot.slane %v431, %v438
    %v441 = vunpack.c.l.s4 1983009808
    %v442 = vunpack.c.0.s8 %v441
    %v443 = vlaneseq
    %v444 = vshrl.u32 %v443, 7
    %v445 = vsub.s32 %v442, %v444
    %v446 = vrot.slane %v432, %v445
    %v447 = vcombine.low %v439, %v446
    %v448 = vcombine.low %v268, %v277
    %v449 = vcombine.low %v285, %v284
    %v451 = vunpack.c.l.s4 1983009808
    %v452 = vunpack.c.0.s8 %v451
    %v453 = vlaneseq
    %v454 = vshrl.u32 %v453, 7
    %v455 = vsub.s32 %v452, %v454
    %v456 = vrot.slane %v448, %v455
    %v458 = vunpack.c.l.s4 1983009808
    %v459 = vunpack.c.0.s8 %v458
    %v460 = vlaneseq
    %v461 = vshrl.u32 %v460, 7
    %v462 = vsub.s32 %v459, %v461
    %v463 = vrot.slane %v449, %v462
    %v464 = vcombine.low %v456, %v463
    %v465 = vcombine.low %v293, %v301
    %v466 = vcombine.low %v300, %v309
    %v468 = vunpack.c.l.s4 1983009808
    %v469 = vunpack.c.0.s8 %v468
    %v470 = vlaneseq
    %v471 = vshrl.u32 %v470, 7
    %v472 = vsub.s32 %v469, %v471
    %v473 = vrot.slane %v465, %v472
    %v475 = vunpack.c.l.s4 1983009808
    %v476 = vunpack.c.0.s8 %v475
    %v477 = vlaneseq
    %v478 = vshrl.u32 %v477, 7
    %v479 = vsub.s32 %v476, %v478
    %v480 = vrot.slane %v466, %v479
    %v481 = vcombine.low %v473, %v480
    %v482 = vcombine.low %v317, %v316
    %v483 = vcombine.low %v325, %v333
    %v485 = vunpack.c.l.s4 1983009808
    %v486 = vunpack.c.0.s8 %v485
    %v487 = vlaneseq
    %v488 = vshrl.u32 %v487, 7
    %v489 = vsub.s32 %v486, %v488
    %v490 = vrot.slane %v482, %v489
    %v492 = vunpack.c.l.s4 1983009808
    %v493 = vunpack.c.0.s8 %v492
    %v494 = vlaneseq
    %v495 = vshrl.u32 %v494, 7
    %v496 = vsub.s32 %v493, %v495
    %v497 = vrot.slane %v483, %v496
    %v498 = vcombine.low %v490, %v497
    %v499 = vcombine.low %v332, %v341
    %v500 = vcombine.low %v349, %v348
    %v502 = vunpack.c.l.s4 1983009808
    %v503 = vunpack.c.0.s8 %v502
    %v504 = vlaneseq
    %v505 = vshrl.u32 %v504, 7
    %v506 = vsub.s32 %v503, %v505
    %v507 = vrot.slane %v499, %v506
    %v509 = vunpack.c.l.s4 1983009808
    %v510 = vunpack.c.0.s8 %v509
    %v511 = vlaneseq
    %v512 = vshrl.u32 %v511, 7
    %v513 = vsub.s32 %v510, %v512
    %v514 = vrot.slane %v500, %v513
    %v515 = vcombine.low %v507, %v514
    %v516 = vcombine.low %v357, %v365
    %v517 = vcombine.low %v364, %v373
    %v519 = vunpack.c.l.s4 1983009808
    %v520 = vunpack.c.0.s8 %v519
    %v521 = vlaneseq
    %v522 = vshrl.u32 %v521, 7
    %v523 = vsub.s32 %v520, %v522
    %v524 = vrot.slane %v516, %v523
    %v526 = vunpack.c.l.s4 1983009808
    %v527 = vunpack.c.0.s8 %v526
    %v528 = vlaneseq
    %v529 = vshrl.u32 %v528, 7
    %v530 = vsub.s32 %v527, %v529
    %v531 = vrot.slane %v517, %v530
    %v532 = vcombine.low %v524, %v531
    %v533 = vcombine.low %v381, %v380
    %v534 = vcombine.low %v389, %v397
    %v536 = vunpack.c.l.s4 1983009808
    %v537 = vunpack.c.0.s8 %v536
    %v538 = vlaneseq
    %v539 = vshrl.u32 %v538, 7
    %v540 = vsub.s32 %v537, %v539
    %v541 = vrot.slane %v533, %v540
    %v543 = vunpack.c.l.s4 1983009808
    %v544 = vunpack.c.0.s8 %v543
    %v545 = vlaneseq
    %v546 = vshrl.u32 %v545, 7
    %v547 = vsub.s32 %v544, %v546
    %v548 = vrot.slane %v534, %v547
    %v549 = vcombine.low %v541, %v548
    %v550 = vcombine.low %v396, %v405
    %v551 = vcombine.low %v413, %v412
    %v553 = vunpack.c.l.s4 1983009808
    %v554 = vunpack.c.0.s8 %v553
    %v555 = vlaneseq
    %v556 = vshrl.u32 %v555, 7
    %v557 = vsub.s32 %v554, %v556
    %v558 = vrot.slane %v550, %v557
    %v560 = vunpack.c.l.s4 1983009808
    %v561 = vunpack.c.0.s8 %v560
    %v562 = vlaneseq
    %v563 = vshrl.u32 %v562, 7
    %v564 = vsub.s32 %v561, %v563
    %v565 = vrot.slane %v551, %v564
    %v566 = vcombine.low %v558, %v565
    %v576 = vpack.c.bf16 %v447, %v430
    %v577 = vpack.c.bf16 %v481, %v464
    %v578 = vpack.c.bf16 %v515, %v498
    %v579 = vpack.c.bf16 %v549, %v532
    %v580 = vpack.c.bf16 %v566, %v566
    %v581 = vld [vmem:[%s1] sm:$0x3]
    %v582 = vcombine.high %v236, %v236
    %v583 = vcombine.high %v252, %v252
    %v584 = vcombine.high %v268, %v268
    %v585 = vcombine.high %v284, %v284
    %v586 = vcombine.high %v300, %v300
    %v587 = vcombine.high %v316, %v316
    %v588 = vcombine.high %v332, %v332
    %v589 = vcombine.high %v348, %v348
    %v590 = vcombine.high %v364, %v364
    %v591 = vcombine.high %v380, %v380
    %v592 = vcombine.high %v396, %v396
    %v593 = vcombine.high %v412, %v412
    %vm594 = vcmask 1040384
    %vm595 = vcmask 1042434
    %vm596 = vmor %vm594, %vm595
    %vm597 = vcmask 1044484
    %vm598 = vmor %vm596, %vm597
    %vm599 = vcmask 1046534
    %vm600 = vmor %vm598, %vm599
    %v601 = vrot.slane %v229, 7
    %v602 = vrot.slane %v601, 2
    %v603 = vrot.slane %v237, 7
    %v604 = vsel %vm600, %v602, %v603
    %v605 = vrot.slane %v603, 2
    %v606 = vrot.slane %v236, 7
    %v607 = vsel %vm600, %v605, %v606
    %v608 = vrot.slane %v606, 2
    %v609 = vrot.slane %v582, 7
    %v610 = vsel %vm600, %v608, %v609
    %v611 = vrot.slane %v245, 7
    %v612 = vrot.slane %v611, 2
    %v613 = vrot.slane %v253, 7
    %v614 = vsel %vm600, %v612, %v613
    %v615 = vrot.slane %v613, 2
    %v616 = vrot.slane %v252, 7
    %v617 = vsel %vm600, %v615, %v616
    %v618 = vrot.slane %v616, 2
    %v619 = vrot.slane %v583, 7
    %v620 = vsel %vm600, %v618, %v619
    %v621 = vrot.slane %v261, 7
    %v622 = vrot.slane %v621, 2
    %v623 = vrot.slane %v269, 7
    %v624 = vsel %vm600, %v622, %v623
    %v625 = vrot.slane %v623, 2
    %v626 = vrot.slane %v268, 7
    %v627 = vsel %vm600, %v625, %v626
    %v628 = vrot.slane %v626, 2
    %v629 = vrot.slane %v584, 7
    %v630 = vsel %vm600, %v628, %v629
    %v631 = vrot.slane %v277, 7
    %v632 = vrot.slane %v631, 2
    %v633 = vrot.slane %v285, 7
    %v634 = vsel %vm600, %v632, %v633
    %v635 = vrot.slane %v633, 2
    %v636 = vrot.slane %v284, 7
    %v637 = vsel %vm600, %v635, %v636
    %v638 = vrot.slane %v636, 2
    %v639 = vrot.slane %v585, 7
    %v640 = vsel %vm600, %v638, %v639
    %v641 = vrot.slane %v293, 7
    %v642 = vrot.slane %v641, 2
    %v643 = vrot.slane %v301, 7
    %v644 = vsel %vm600, %v642, %v643
    %v645 = vrot.slane %v643, 2
    %v646 = vrot.slane %v300, 7
    %v647 = vsel %vm600, %v645, %v646
    %v648 = vrot.slane %v646, 2
    %v649 = vrot.slane %v586, 7
    %v650 = vsel %vm600, %v648, %v649
    %v651 = vrot.slane %v309, 7
    %v652 = vrot.slane %v651, 2
    %v653 = vrot.slane %v317, 7
    %v654 = vsel %vm600, %v652, %v653
    %v655 = vrot.slane %v653, 2
    %v656 = vrot.slane %v316, 7
    %v657 = vsel %vm600, %v655, %v656
    %v658 = vrot.slane %v656, 2
    %v659 = vrot.slane %v587, 7
    %v660 = vsel %vm600, %v658, %v659
    %v661 = vrot.slane %v325, 7
    %v662 = vrot.slane %v661, 2
    %v663 = vrot.slane %v333, 7
    %v664 = vsel %vm600, %v662, %v663
    %v665 = vrot.slane %v663, 2
    %v666 = vrot.slane %v332, 7
    %v667 = vsel %vm600, %v665, %v666
    %v668 = vrot.slane %v666, 2
    %v669 = vrot.slane %v588, 7
    %v670 = vsel %vm600, %v668, %v669
    %v671 = vrot.slane %v341, 7
    %v672 = vrot.slane %v671, 2
    %v673 = vrot.slane %v349, 7
    %v674 = vsel %vm600, %v672, %v673
    %v675 = vrot.slane %v673, 2
    %v676 = vrot.slane %v348, 7
    %v677 = vsel %vm600, %v675, %v676
    %v678 = vrot.slane %v676, 2
    %v679 = vrot.slane %v589, 7
    %v680 = vsel %vm600, %v678, %v679
    %v681 = vrot.slane %v357, 7
    %v682 = vrot.slane %v681, 2
    %v683 = vrot.slane %v365, 7
    %v684 = vsel %vm600, %v682, %v683
    %v685 = vrot.slane %v683, 2
    %v686 = vrot.slane %v364, 7
    %v687 = vsel %vm600, %v685, %v686
    %v688 = vrot.slane %v686, 2
    %v689 = vrot.slane %v590, 7
    %v690 = vsel %vm600, %v688, %v689
    %v691 = vrot.slane %v373, 7
    %v692 = vrot.slane %v691, 2
    %v693 = vrot.slane %v381, 7
    %v694 = vsel %vm600, %v692, %v693
    %v695 = vrot.slane %v693, 2
    %v696 = vrot.slane %v380, 7
    %v697 = vsel %vm600, %v695, %v696
    %v698 = vrot.slane %v696, 2
    %v699 = vrot.slane %v591, 7
    %v700 = vsel %vm600, %v698, %v699
    %v701 = vrot.slane %v389, 7
    %v702 = vrot.slane %v701, 2
    %v703 = vrot.slane %v397, 7
    %v704 = vsel %vm600, %v702, %v703
    %v705 = vrot.slane %v703, 2
    %v706 = vrot.slane %v396, 7
    %v707 = vsel %vm600, %v705, %v706
    %v708 = vrot.slane %v706, 2
    %v709 = vrot.slane %v592, 7
    %v710 = vsel %vm600, %v708, %v709
    %v711 = vrot.slane %v405, 7
    %v712 = vrot.slane %v711, 2
    %v713 = vrot.slane %v413, 7
    %v714 = vsel %vm600, %v712, %v713
    %v715 = vrot.slane %v713, 2
    %v716 = vrot.slane %v412, 7
    %v717 = vsel %vm600, %v715, %v716
    %v718 = vrot.slane %v716, 2
    %v719 = vrot.slane %v593, 7
    %v720 = vsel %vm600, %v718, %v719
    %v721 = vcombine.low %v604, %v607
    %v722 = vcombine.low %v610, %v614
    %v724 = vunpack.c.l.s4 1983009808
    %v725 = vunpack.c.0.s8 %v724
    %v726 = vlaneseq
    %v727 = vshrl.u32 %v726, 7
    %v728 = vsub.s32 %v725, %v727
    %v729 = vrot.slane %v721, %v728
    %v731 = vunpack.c.l.s4 1983009808
    %v732 = vunpack.c.0.s8 %v731
    %v733 = vlaneseq
    %v734 = vshrl.u32 %v733, 7
    %v735 = vsub.s32 %v732, %v734
    %v736 = vrot.slane %v722, %v735
    %v737 = vcombine.low %v729, %v736
    %v738 = vcombine.low %v617, %v620
    %v739 = vcombine.low %v624, %v627
    %v741 = vunpack.c.l.s4 1983009808
    %v742 = vunpack.c.0.s8 %v741
    %v743 = vlaneseq
    %v744 = vshrl.u32 %v743, 7
    %v745 = vsub.s32 %v742, %v744
    %v746 = vrot.slane %v738, %v745
    %v748 = vunpack.c.l.s4 1983009808
    %v749 = vunpack.c.0.s8 %v748
    %v750 = vlaneseq
    %v751 = vshrl.u32 %v750, 7
    %v752 = vsub.s32 %v749, %v751
    %v753 = vrot.slane %v739, %v752
    %v754 = vcombine.low %v746, %v753
    %v755 = vcombine.low %v630, %v634
    %v756 = vcombine.low %v637, %v640
    %v758 = vunpack.c.l.s4 1983009808
    %v759 = vunpack.c.0.s8 %v758
    %v760 = vlaneseq
    %v761 = vshrl.u32 %v760, 7
    %v762 = vsub.s32 %v759, %v761
    %v763 = vrot.slane %v755, %v762
    %v765 = vunpack.c.l.s4 1983009808
    %v766 = vunpack.c.0.s8 %v765
    %v767 = vlaneseq
    %v768 = vshrl.u32 %v767, 7
    %v769 = vsub.s32 %v766, %v768
    %v770 = vrot.slane %v756, %v769
    %v771 = vcombine.low %v763, %v770
    %v772 = vcombine.low %v644, %v647
    %v773 = vcombine.low %v650, %v654
    %v775 = vunpack.c.l.s4 1983009808
    %v776 = vunpack.c.0.s8 %v775
    %v777 = vlaneseq
    %v778 = vshrl.u32 %v777, 7
    %v779 = vsub.s32 %v776, %v778
    %v780 = vrot.slane %v772, %v779
    %v782 = vunpack.c.l.s4 1983009808
    %v783 = vunpack.c.0.s8 %v782
    %v784 = vlaneseq
    %v785 = vshrl.u32 %v784, 7
    %v786 = vsub.s32 %v783, %v785
    %v787 = vrot.slane %v773, %v786
    %v788 = vcombine.low %v780, %v787
    %v789 = vcombine.low %v657, %v660
    %v790 = vcombine.low %v664, %v667
    %v792 = vunpack.c.l.s4 1983009808
    %v793 = vunpack.c.0.s8 %v792
    %v794 = vlaneseq
    %v795 = vshrl.u32 %v794, 7
    %v796 = vsub.s32 %v793, %v795
    %v797 = vrot.slane %v789, %v796
    %v799 = vunpack.c.l.s4 1983009808
    %v800 = vunpack.c.0.s8 %v799
    %v801 = vlaneseq
    %v802 = vshrl.u32 %v801, 7
    %v803 = vsub.s32 %v800, %v802
    %v804 = vrot.slane %v790, %v803
    %v805 = vcombine.low %v797, %v804
    %v806 = vcombine.low %v670, %v674
    %v807 = vcombine.low %v677, %v680
    %v809 = vunpack.c.l.s4 1983009808
    %v810 = vunpack.c.0.s8 %v809
    %v811 = vlaneseq
    %v812 = vshrl.u32 %v811, 7
    %v813 = vsub.s32 %v810, %v812
    %v814 = vrot.slane %v806, %v813
    %v816 = vunpack.c.l.s4 1983009808
    %v817 = vunpack.c.0.s8 %v816
    %v818 = vlaneseq
    %v819 = vshrl.u32 %v818, 7
    %v820 = vsub.s32 %v817, %v819
    %v821 = vrot.slane %v807, %v820
    %v822 = vcombine.low %v814, %v821
    %v823 = vcombine.low %v684, %v687
    %v824 = vcombine.low %v690, %v694
    %v826 = vunpack.c.l.s4 1983009808
    %v827 = vunpack.c.0.s8 %v826
    %v828 = vlaneseq
    %v829 = vshrl.u32 %v828, 7
    %v830 = vsub.s32 %v827, %v829
    %v831 = vrot.slane %v823, %v830
    %v833 = vunpack.c.l.s4 1983009808
    %v834 = vunpack.c.0.s8 %v833
    %v835 = vlaneseq
    %v836 = vshrl.u32 %v835, 7
    %v837 = vsub.s32 %v834, %v836
    %v838 = vrot.slane %v824, %v837
    %v839 = vcombine.low %v831, %v838
    %v840 = vcombine.low %v697, %v700
    %v841 = vcombine.low %v704, %v707
    %v843 = vunpack.c.l.s4 1983009808
    %v844 = vunpack.c.0.s8 %v843
    %v845 = vlaneseq
    %v846 = vshrl.u32 %v845, 7
    %v847 = vsub.s32 %v844, %v846
    %v848 = vrot.slane %v840, %v847
    %v850 = vunpack.c.l.s4 1983009808
    %v851 = vunpack.c.0.s8 %v850
    %v852 = vlaneseq
    %v853 = vshrl.u32 %v852, 7
    %v854 = vsub.s32 %v851, %v853
    %v855 = vrot.slane %v841, %v854
    %v856 = vcombine.low %v848, %v855
    %v857 = vcombine.low %v710, %v714
    %v858 = vcombine.low %v717, %v720
    %v860 = vunpack.c.l.s4 1983009808
    %v861 = vunpack.c.0.s8 %v860
    %v862 = vlaneseq
    %v863 = vshrl.u32 %v862, 7
    %v864 = vsub.s32 %v861, %v863
    %v865 = vrot.slane %v857, %v864
    %v867 = vunpack.c.l.s4 1983009808
    %v868 = vunpack.c.0.s8 %v867
    %v869 = vlaneseq
    %v870 = vshrl.u32 %v869, 7
    %v871 = vsub.s32 %v868, %v870
    %v872 = vrot.slane %v858, %v871
    %v873 = vcombine.low %v865, %v872
    %v883 = vpack.c.bf16 %v754, %v737
    %v884 = vpack.c.bf16 %v788, %v771
    %v885 = vpack.c.bf16 %v822, %v805
    %v886 = vpack.c.bf16 %v856, %v839
    %v887 = vpack.c.bf16 %v873, %v873
    %s888 = scalar_lea.vmem %s1, 2
    %v889 = vld [vmem:[%s888] sm:$0x3]
    %vm890 = vcmask 31744
    %v892 = vsel %vm890, %v883, 0
    %v895 = vsel %vm890, %v884, 0
    %v898 = vsel %vm890, %v885, 0
    %v901 = vsel %vm890, %v886, 0
    %v904 = vsel %vm890, %v887, 0
    %vm906 = vcmask 1041408
    %v908 = vsel %vm906, %v889, 0
    %910 = vmatprep.subr.bf16.mxu0 0
    %911 = vmatpush1.bf16.msra.mxu0 %v908
    %912 = vmatprep.subr.bf16.mxu0 0
    %913 = vmatpush1.bf16.msra.mxu0 0
    %914 = vmatprep.subr.bf16.mxu0 0
    %915 = vmatpush1.bf16.msra.mxu0 0
    %916 = vmatprep.subr.bf16.mxu0 0
    %917 = vmatpush1.bf16.msra.mxu0 0
    %918 = vmatprep.subr.bf16.mxu0 0
    %919 = vmatpush1.bf16.msra.mxu0 0
    %920 = vmatprep.subr.bf16.mxu0 0
    %921 = vmatpush1.bf16.msra.mxu0 0
    %922 = vmatprep.subr.bf16.mxu0 0
    %923 = vmatpush1.bf16.msra.mxu0 0
    %924 = vmatprep.subr.bf16.mxu0 0
    %925 = vmatpush1.bf16.msra.mxu0 0
    %926 = vmatprep.subr.bf16.mxu0 0
    %927 = vmatpush1.bf16.msra.mxu0 0
    %928 = vmatprep.subr.bf16.mxu0 0
    %929 = vmatpush1.bf16.msra.mxu0 0
    %930 = vmatprep.subr.bf16.mxu0 0
    %931 = vmatpush1.bf16.msra.mxu0 0
    %932 = vmatprep.subr.bf16.mxu0 0
    %933 = vmatpush1.bf16.msra.mxu0 0
    %934 = vmatprep.subr.bf16.mxu0 0
    %935 = vmatpush1.bf16.msra.mxu0 0
    %936 = vmatprep.subr.bf16.mxu0 0
    %937 = vmatpush1.bf16.msra.mxu0 0
    %938 = vmatprep.subr.bf16.mxu0 0
    %939 = vmatpush1.bf16.msra.mxu0 0
    %940 = vmatprep.subr.bf16.mxu0 0
    %941 = vmatpush1.bf16.msra.mxu0 0
    %942 = vmatprep.mubr.bf16.mxu0 0
    %943 = vmatmul.mubr.bf16.gmra.mrb[0].mxu0 %v892
    %v944 = vpop.f32.mrb[0].mxu0
    %v945 = vadd.f32 0.0, %v944
    %v946 = vpop.f32.mrb[0].mxu0
    %v947 = vpop.f32.mrb[0].mxu0
    %v948 = vadd.f32 0.0, %v947
    %v949 = vpop.f32.mrb[0].mxu0
    %950 = vmatprep.mubr.bf16.mxu0 0
    %951 = vmatmul.mubr.bf16.gmra.mrb[0].mxu0 %v895
    %v952 = vpop.f32.mrb[0].mxu0
    %v953 = vadd.f32 0.0, %v952
    %v954 = vpop.f32.mrb[0].mxu0
    %v955 = vpop.f32.mrb[0].mxu0
    %v956 = vadd.f32 0.0, %v955
    %v957 = vpop.f32.mrb[0].mxu0
    %958 = vmatprep.mubr.bf16.mxu0 0
    %959 = vmatmul.mubr.bf16.gmra.mrb[0].mxu0 %v898
    %v960 = vpop.f32.mrb[0].mxu0
    %v961 = vadd.f32 0.0, %v960
    %v962 = vpop.f32.mrb[0].mxu0
    %v963 = vpop.f32.mrb[0].mxu0
    %v964 = vadd.f32 0.0, %v963
    %v965 = vpop.f32.mrb[0].mxu0
    %966 = vmatprep.mubr.bf16.mxu0 0
    %967 = vmatmul.mubr.bf16.gmra.mrb[0].mxu0 %v901
    %v968 = vpop.f32.mrb[0].mxu0
    %v969 = vadd.f32 0.0, %v968
    %v970 = vpop.f32.mrb[0].mxu0
    %v971 = vpop.f32.mrb[0].mxu0
    %v972 = vadd.f32 0.0, %v971
    %v973 = vpop.f32.mrb[0].mxu0
    %974 = vmatprep.mubr.bf16.mxu0 0
    %975 = vmatmul.mubr.bf16.gmra.mrb[0].mxu0 %v904
    %v976 = vpop.f32.mrb[0].mxu0
    %v977 = vadd.f32 0.0, %v976
    %v978 = vpop.f32.mrb[0].mxu0
    %v979 = vpop.f32.mrb[0].mxu0
    %v980 = vpop.f32.mrb[0].mxu0
    %981 = vdwg.mxu0
    %v983 = vsel %vm890, %v576, 0
    %v986 = vsel %vm890, %v577, 0
    %v989 = vsel %vm890, %v578, 0
    %v992 = vsel %vm890, %v579, 0
    %v995 = vsel %vm890, %v580, 0
    %v998 = vsel %vm906, %v581, 0
    %1000 = vmatprep.subr.bf16.mxu0 0
    %1001 = vmatpush1.bf16.msra.mxu0 %v998
    %1002 = vmatprep.subr.bf16.mxu0 0
    %1003 = vmatpush1.bf16.msra.mxu0 0
    %1004 = vmatprep.subr.bf16.mxu0 0
    %1005 = vmatpush1.bf16.msra.mxu0 0
    %1006 = vmatprep.subr.bf16.mxu0 0
    %1007 = vmatpush1.bf16.msra.mxu0 0
    %1008 = vmatprep.subr.bf16.mxu0 0
    %1009 = vmatpush1.bf16.msra.mxu0 0
    %1010 = vmatprep.subr.bf16.mxu0 0
    %1011 = vmatpush1.bf16.msra.mxu0 0
    %1012 = vmatprep.subr.bf16.mxu0 0
    %1013 = vmatpush1.bf16.msra.mxu0 0
    %1014 = vmatprep.subr.bf16.mxu0 0
    %1015 = vmatpush1.bf16.msra.mxu0 0
    %1016 = vmatprep.subr.bf16.mxu0 0
    %1017 = vmatpush1.bf16.msra.mxu0 0
    %1018 = vmatprep.subr.bf16.mxu0 0
    %1019 = vmatpush1.bf16.msra.mxu0 0
    %1020 = vmatprep.subr.bf16.mxu0 0
    %1021 = vmatpush1.bf16.msra.mxu0 0
    %1022 = vmatprep.subr.bf16.mxu0 0
    %1023 = vmatpush1.bf16.msra.mxu0 0
    %1024 = vmatprep.subr.bf16.mxu0 0
    %1025 = vmatpush1.bf16.msra.mxu0 0
    %1026 = vmatprep.subr.bf16.mxu0 0
    %1027 = vmatpush1.bf16.msra.mxu0 0
    %1028 = vmatprep.subr.bf16.mxu0 0
    %1029 = vmatpush1.bf16.msra.mxu0 0
    %1030 = vmatprep.subr.bf16.mxu0 0
    %1031 = vmatpush1.bf16.msra.mxu0 0
    %1032 = vmatprep.mubr.bf16.mxu0 0
    %1033 = vmatmul.mubr.bf16.gmra.mrb[0].mxu0 %v983
    %v1034 = vpop.f32.mrb[0].mxu0
    %v1035 = vadd.f32 %v945, %v1034
    %v1036 = vpop.f32.mrb[0].mxu0
    %v1037 = vpop.f32.mrb[0].mxu0
    %v1038 = vadd.f32 %v948, %v1037
    %v1039 = vpop.f32.mrb[0].mxu0
    %1040 = vmatprep.mubr.bf16.mxu0 0
    %1041 = vmatmul.mubr.bf16.gmra.mrb[0].mxu0 %v986
    %v1042 = vpop.f32.mrb[0].mxu0
    %v1043 = vadd.f32 %v953, %v1042
    %v1044 = vpop.f32.mrb[0].mxu0
    %v1045 = vpop.f32.mrb[0].mxu0
    %v1046 = vadd.f32 %v956, %v1045
    %v1047 = vpop.f32.mrb[0].mxu0
    %1048 = vmatprep.mubr.bf16.mxu0 0
    %1049 = vmatmul.mubr.bf16.gmra.mrb[0].mxu0 %v989
    %v1050 = vpop.f32.mrb[0].mxu0
    %v1051 = vadd.f32 %v961, %v1050
    %v1052 = vpop.f32.mrb[0].mxu0
    %v1053 = vpop.f32.mrb[0].mxu0
    %v1054 = vadd.f32 %v964, %v1053
    %v1055 = vpop.f32.mrb[0].mxu0
    %1056 = vmatprep.mubr.bf16.mxu0 0
    %1057 = vmatmul.mubr.bf16.gmra.mrb[0].mxu0 %v992
    %v1058 = vpop.f32.mrb[0].mxu0
    %v1059 = vadd.f32 %v969, %v1058
    %v1060 = vpop.f32.mrb[0].mxu0
    %v1061 = vpop.f32.mrb[0].mxu0
    %v1062 = vadd.f32 %v972, %v1061
    %v1063 = vpop.f32.mrb[0].mxu0
    %1064 = vmatprep.mubr.bf16.mxu0 0
    %1065 = vmatmul.mubr.bf16.gmra.mrb[0].mxu0 %v995
    %v1066 = vpop.f32.mrb[0].mxu0
    %v1067 = vadd.f32 %v977, %v1066
    %v1068 = vpop.f32.mrb[0].mxu0
    %v1069 = vpop.f32.mrb[0].mxu0
    %v1070 = vpop.f32.mrb[0].mxu0
    %1071 = vdwg.mxu0
    %v1072 = vcombine.low %v237, %v236
    %v1073 = vcombine.low %v582, %v253
    %v1075 = vunpack.c.l.s4 1983009808
    %v1076 = vunpack.c.0.s8 %v1075
    %v1077 = vlaneseq
    %v1078 = vshrl.u32 %v1077, 7
    %v1079 = vsub.s32 %v1076, %v1078
    %v1080 = vrot.slane %v1072, %v1079
    %v1082 = vunpack.c.l.s4 1983009808
    %v1083 = vunpack.c.0.s8 %v1082
    %v1084 = vlaneseq
    %v1085 = vshrl.u32 %v1084, 7
    %v1086 = vsub.s32 %v1083, %v1085
    %v1087 = vrot.slane %v1073, %v1086
    %v1088 = vcombine.low %v1080, %v1087
    %v1089 = vcombine.low %v252, %v583
    %v1090 = vcombine.low %v269, %v268
    %v1092 = vunpack.c.l.s4 1983009808
    %v1093 = vunpack.c.0.s8 %v1092
    %v1094 = vlaneseq
    %v1095 = vshrl.u32 %v1094, 7
    %v1096 = vsub.s32 %v1093, %v1095
    %v1097 = vrot.slane %v1089, %v1096
    %v1099 = vunpack.c.l.s4 1983009808
    %v1100 = vunpack.c.0.s8 %v1099
    %v1101 = vlaneseq
    %v1102 = vshrl.u32 %v1101, 7
    %v1103 = vsub.s32 %v1100, %v1102
    %v1104 = vrot.slane %v1090, %v1103
    %v1105 = vcombine.low %v1097, %v1104
    %v1106 = vcombine.low %v584, %v285
    %v1107 = vcombine.low %v284, %v585
    %v1109 = vunpack.c.l.s4 1983009808
    %v1110 = vunpack.c.0.s8 %v1109
    %v1111 = vlaneseq
    %v1112 = vshrl.u32 %v1111, 7
    %v1113 = vsub.s32 %v1110, %v1112
    %v1114 = vrot.slane %v1106, %v1113
    %v1116 = vunpack.c.l.s4 1983009808
    %v1117 = vunpack.c.0.s8 %v1116
    %v1118 = vlaneseq
    %v1119 = vshrl.u32 %v1118, 7
    %v1120 = vsub.s32 %v1117, %v1119
    %v1121 = vrot.slane %v1107, %v1120
    %v1122 = vcombine.low %v1114, %v1121
    %v1123 = vcombine.low %v301, %v300
    %v1124 = vcombine.low %v586, %v317
    %v1126 = vunpack.c.l.s4 1983009808
    %v1127 = vunpack.c.0.s8 %v1126
    %v1128 = vlaneseq
    %v1129 = vshrl.u32 %v1128, 7
    %v1130 = vsub.s32 %v1127, %v1129
    %v1131 = vrot.slane %v1123, %v1130
    %v1133 = vunpack.c.l.s4 1983009808
    %v1134 = vunpack.c.0.s8 %v1133
    %v1135 = vlaneseq
    %v1136 = vshrl.u32 %v1135, 7
    %v1137 = vsub.s32 %v1134, %v1136
    %v1138 = vrot.slane %v1124, %v1137
    %v1139 = vcombine.low %v1131, %v1138
    %v1140 = vcombine.low %v316, %v587
    %v1141 = vcombine.low %v333, %v332
    %v1143 = vunpack.c.l.s4 1983009808
    %v1144 = vunpack.c.0.s8 %v1143
    %v1145 = vlaneseq
    %v1146 = vshrl.u32 %v1145, 7
    %v1147 = vsub.s32 %v1144, %v1146
    %v1148 = vrot.slane %v1140, %v1147
    %v1150 = vunpack.c.l.s4 1983009808
    %v1151 = vunpack.c.0.s8 %v1150
    %v1152 = vlaneseq
    %v1153 = vshrl.u32 %v1152, 7
    %v1154 = vsub.s32 %v1151, %v1153
    %v1155 = vrot.slane %v1141, %v1154
    %v1156 = vcombine.low %v1148, %v1155
    %v1157 = vcombine.low %v588, %v349
    %v1158 = vcombine.low %v348, %v589
    %v1160 = vunpack.c.l.s4 1983009808
    %v1161 = vunpack.c.0.s8 %v1160
    %v1162 = vlaneseq
    %v1163 = vshrl.u32 %v1162, 7
    %v1164 = vsub.s32 %v1161, %v1163
    %v1165 = vrot.slane %v1157, %v1164
    %v1167 = vunpack.c.l.s4 1983009808
    %v1168 = vunpack.c.0.s8 %v1167
    %v1169 = vlaneseq
    %v1170 = vshrl.u32 %v1169, 7
    %v1171 = vsub.s32 %v1168, %v1170
    %v1172 = vrot.slane %v1158, %v1171
    %v1173 = vcombine.low %v1165, %v1172
    %v1174 = vcombine.low %v365, %v364
    %v1175 = vcombine.low %v590, %v381
    %v1177 = vunpack.c.l.s4 1983009808
    %v1178 = vunpack.c.0.s8 %v1177
    %v1179 = vlaneseq
    %v1180 = vshrl.u32 %v1179, 7
    %v1181 = vsub.s32 %v1178, %v1180
    %v1182 = vrot.slane %v1174, %v1181
    %v1184 = vunpack.c.l.s4 1983009808
    %v1185 = vunpack.c.0.s8 %v1184
    %v1186 = vlaneseq
    %v1187 = vshrl.u32 %v1186, 7
    %v1188 = vsub.s32 %v1185, %v1187
    %v1189 = vrot.slane %v1175, %v1188
    %v1190 = vcombine.low %v1182, %v1189
    %v1191 = vcombine.low %v380, %v591
    %v1192 = vcombine.low %v397, %v396
    %v1194 = vunpack.c.l.s4 1983009808
    %v1195 = vunpack.c.0.s8 %v1194
    %v1196 = vlaneseq
    %v1197 = vshrl.u32 %v1196, 7
    %v1198 = vsub.s32 %v1195, %v1197
    %v1199 = vrot.slane %v1191, %v1198
    %v1201 = vunpack.c.l.s4 1983009808
    %v1202 = vunpack.c.0.s8 %v1201
    %v1203 = vlaneseq
    %v1204 = vshrl.u32 %v1203, 7
    %v1205 = vsub.s32 %v1202, %v1204
    %v1206 = vrot.slane %v1192, %v1205
    %v1207 = vcombine.low %v1199, %v1206
    %v1208 = vcombine.low %v592, %v413
    %v1209 = vcombine.low %v412, %v593
    %v1211 = vunpack.c.l.s4 1983009808
    %v1212 = vunpack.c.0.s8 %v1211
    %v1213 = vlaneseq
    %v1214 = vshrl.u32 %v1213, 7
    %v1215 = vsub.s32 %v1212, %v1214
    %v1216 = vrot.slane %v1208, %v1215
    %v1218 = vunpack.c.l.s4 1983009808
    %v1219 = vunpack.c.0.s8 %v1218
    %v1220 = vlaneseq
    %v1221 = vshrl.u32 %v1220, 7
    %v1222 = vsub.s32 %v1219, %v1221
    %v1223 = vrot.slane %v1209, %v1222
    %v1224 = vcombine.low %v1216, %v1223
    %v1234 = vpack.c.bf16 %v1105, %v1088
    %v1235 = vpack.c.bf16 %v1139, %v1122
    %v1236 = vpack.c.bf16 %v1173, %v1156
    %v1237 = vpack.c.bf16 %v1207, %v1190
    %v1238 = vpack.c.bf16 %v1224, %v1224
    %s1239 = scalar_lea.vmem %s1, 4
    %v1240 = vld [vmem:[%s1239] sm:$0x3]
    %v1242 = vsel %vm890, %v1234, 0
    %v1245 = vsel %vm890, %v1235, 0
    %v1248 = vsel %vm890, %v1236, 0
    %v1251 = vsel %vm890, %v1237, 0
    %v1254 = vsel %vm890, %v1238, 0
    %v1257 = vsel %vm906, %v1240, 0
    %1259 = vmatprep.subr.bf16.mxu0 0
    %1260 = vmatpush1.bf16.msra.mxu0 %v1257
    %1261 = vmatprep.subr.bf16.mxu0 0
    %1262 = vmatpush1.bf16.msra.mxu0 0
    %1263 = vmatprep.subr.bf16.mxu0 0
    %1264 = vmatpush1.bf16.msra.mxu0 0
    %1265 = vmatprep.subr.bf16.mxu0 0
    %1266 = vmatpush1.bf16.msra.mxu0 0
    %1267 = vmatprep.subr.bf16.mxu0 0
    %1268 = vmatpush1.bf16.msra.mxu0 0
    %1269 = vmatprep.subr.bf16.mxu0 0
    %1270 = vmatpush1.bf16.msra.mxu0 0
    %1271 = vmatprep.subr.bf16.mxu0 0
    %1272 = vmatpush1.bf16.msra.mxu0 0
    %1273 = vmatprep.subr.bf16.mxu0 0
    %1274 = vmatpush1.bf16.msra.mxu0 0
    %1275 = vmatprep.subr.bf16.mxu0 0
    %1276 = vmatpush1.bf16.msra.mxu0 0
    %1277 = vmatprep.subr.bf16.mxu0 0
    %1278 = vmatpush1.bf16.msra.mxu0 0
    %1279 = vmatprep.subr.bf16.mxu0 0
    %1280 = vmatpush1.bf16.msra.mxu0 0
    %1281 = vmatprep.subr.bf16.mxu0 0
    %1282 = vmatpush1.bf16.msra.mxu0 0
    %1283 = vmatprep.subr.bf16.mxu0 0
    %1284 = vmatpush1.bf16.msra.mxu0 0
    %1285 = vmatprep.subr.bf16.mxu0 0
    %1286 = vmatpush1.bf16.msra.mxu0 0
    %1287 = vmatprep.subr.bf16.mxu0 0
    %1288 = vmatpush1.bf16.msra.mxu0 0
    %1289 = vmatprep.subr.bf16.mxu0 0
    %1290 = vmatpush1.bf16.msra.mxu0 0
    %1291 = vmatprep.mubr.bf16.mxu0 0
    %1292 = vmatmul.mubr.bf16.gmra.mrb[0].mxu0 %v1242
    %v1293 = vpop.f32.mrb[0].mxu0
    %v1294 = vadd.f32 0.0, %v1293
    %v1295 = vpop.f32.mrb[0].mxu0
    %v1296 = vpop.f32.mrb[0].mxu0
    %v1297 = vadd.f32 0.0, %v1296
    %v1298 = vpop.f32.mrb[0].mxu0
    %1299 = vmatprep.mubr.bf16.mxu0 0
    %1300 = vmatmul.mubr.bf16.gmra.mrb[0].mxu0 %v1245
    %v1301 = vpop.f32.mrb[0].mxu0
    %v1302 = vadd.f32 0.0, %v1301
    %v1303 = vpop.f32.mrb[0].mxu0
    %v1304 = vpop.f32.mrb[0].mxu0
    %v1305 = vadd.f32 0.0, %v1304
    %v1306 = vpop.f32.mrb[0].mxu0
    %1307 = vmatprep.mubr.bf16.mxu0 0
    %1308 = vmatmul.mubr.bf16.gmra.mrb[0].mxu0 %v1248
    %v1309 = vpop.f32.mrb[0].mxu0
    %v1310 = vadd.f32 0.0, %v1309
    %v1311 = vpop.f32.mrb[0].mxu0
    %v1312 = vpop.f32.mrb[0].mxu0
    %v1313 = vadd.f32 0.0, %v1312
    %v1314 = vpop.f32.mrb[0].mxu0
    %1315 = vmatprep.mubr.bf16.mxu0 0
    %1316 = vmatmul.mubr.bf16.gmra.mrb[0].mxu0 %v1251
    %v1317 = vpop.f32.mrb[0].mxu0
    %v1318 = vadd.f32 0.0, %v1317
    %v1319 = vpop.f32.mrb[0].mxu0
    %v1320 = vpop.f32.mrb[0].mxu0
    %v1321 = vadd.f32 0.0, %v1320
    %v1322 = vpop.f32.mrb[0].mxu0
    %1323 = vmatprep.mubr.bf16.mxu0 0
    %1324 = vmatmul.mubr.bf16.gmra.mrb[0].mxu0 %v1254
    %v1325 = vpop.f32.mrb[0].mxu0
    %v1326 = vadd.f32 0.0, %v1325
    %v1327 = vpop.f32.mrb[0].mxu0
    %v1328 = vpop.f32.mrb[0].mxu0
    %v1329 = vpop.f32.mrb[0].mxu0
    %1330 = vdwg.mxu0
    %v1331 = vadd.f32 %v1035, %v1294
    %v1332 = vadd.f32 %v1038, %v1297
    %v1333 = vadd.f32 %v1043, %v1302
    %v1334 = vadd.f32 %v1046, %v1305
    %v1335 = vadd.f32 %v1051, %v1310
    %v1336 = vadd.f32 %v1054, %v1313
    %v1337 = vadd.f32 %v1059, %v1318
    %v1338 = vadd.f32 %v1062, %v1321
    %v1339 = vadd.f32 %v1067, %v1326
    %v1342 = vcombine.high %v200, %v200
    %v1344 = vunpack.c.l.s4 1983009808
    %v1345 = vunpack.c.0.s8 %v1344
    %v1346 = vlaneseq
    %v1347 = vshrl.u32 %v1346, 7
    %v1348 = vsub.s32 %v1345, %v1347
    %v1349 = vrot.slane %v200, %v1348
    %v1351 = vunpack.c.l.s4 1983009808
    %v1352 = vunpack.c.0.s8 %v1351
    %v1353 = vlaneseq
    %v1354 = vshrl.u32 %v1353, 7
    %v1355 = vsub.s32 %v1352, %v1354
    %v1356 = vrot.slane %v1342, %v1355
    %v1357 = vcombine.high %v1349, %v1349
    %v1358 = vcombine.high %v208, %v208
    %v1360 = vunpack.c.l.s4 1983009808
    %v1361 = vunpack.c.0.s8 %v1360
    %v1362 = vlaneseq
    %v1363 = vshrl.u32 %v1362, 7
    %v1364 = vsub.s32 %v1361, %v1363
    %v1365 = vrot.slane %v208, %v1364
    %v1367 = vunpack.c.l.s4 1983009808
    %v1368 = vunpack.c.0.s8 %v1367
    %v1369 = vlaneseq
    %v1370 = vshrl.u32 %v1369, 7
    %v1371 = vsub.s32 %v1368, %v1370
    %v1372 = vrot.slane %v1358, %v1371
    %v1373 = vcombine.high %v1365, %v1365
    %v1374 = vcombine.low %v245, %v253
    %v1375 = vcombine.low %v252, %v261
    %v1377 = vunpack.c.l.s4 1983009808
    %v1378 = vunpack.c.0.s8 %v1377
    %v1379 = vlaneseq
    %v1380 = vshrl.u32 %v1379, 7
    %v1381 = vsub.s32 %v1378, %v1380
    %v1382 = vrot.slane %v1374, %v1381
    %v1384 = vunpack.c.l.s4 1983009808
    %v1385 = vunpack.c.0.s8 %v1384
    %v1386 = vlaneseq
    %v1387 = vshrl.u32 %v1386, 7
    %v1388 = vsub.s32 %v1385, %v1387
    %v1389 = vrot.slane %v1375, %v1388
    %v1390 = vcombine.low %v1382, %v1389
    %v1391 = vcombine.low %v277, %v285
    %v1393 = vunpack.c.l.s4 1983009808
    %v1394 = vunpack.c.0.s8 %v1393
    %v1395 = vlaneseq
    %v1396 = vshrl.u32 %v1395, 7
    %v1397 = vsub.s32 %v1394, %v1396
    %v1398 = vrot.slane %v1391, %v1397
    %v1399 = vcombine.low %v1104, %v1398
    %v1400 = vcombine.low %v284, %v293
    %v1402 = vunpack.c.l.s4 1983009808
    %v1403 = vunpack.c.0.s8 %v1402
    %v1404 = vlaneseq
    %v1405 = vshrl.u32 %v1404, 7
    %v1406 = vsub.s32 %v1403, %v1405
    %v1407 = vrot.slane %v1400, %v1406
    %v1408 = vcombine.low %v1407, %v1131
    %v1409 = vcombine.low %v309, %v317
    %v1410 = vcombine.low %v316, %v1349
    %v1412 = vunpack.c.l.s4 1983009808
    %v1413 = vunpack.c.0.s8 %v1412
    %v1414 = vlaneseq
    %v1415 = vshrl.u32 %v1414, 7
    %v1416 = vsub.s32 %v1413, %v1415
    %v1417 = vrot.slane %v1409, %v1416
    %v1419 = vunpack.c.l.s4 1983009808
    %v1420 = vunpack.c.0.s8 %v1419
    %v1421 = vlaneseq
    %v1422 = vshrl.u32 %v1421, 7
    %v1423 = vsub.s32 %v1420, %v1422
    %v1424 = vrot.slane %v1410, %v1423
    %v1425 = vcombine.low %v1417, %v1424
    %v1426 = vcombine.low %v1357, %v1356
    %v1427 = vcombine.low %v341, %v349
    %v1429 = vunpack.c.l.s4 1983009808
    %v1430 = vunpack.c.0.s8 %v1429
    %v1431 = vlaneseq
    %v1432 = vshrl.u32 %v1431, 7
    %v1433 = vsub.s32 %v1430, %v1432
    %v1434 = vrot.slane %v1426, %v1433
    %v1436 = vunpack.c.l.s4 1983009808
    %v1437 = vunpack.c.0.s8 %v1436
    %v1438 = vlaneseq
    %v1439 = vshrl.u32 %v1438, 7
    %v1440 = vsub.s32 %v1437, %v1439
    %v1441 = vrot.slane %v1427, %v1440
    %v1442 = vcombine.low %v1434, %v1441
    %v1443 = vcombine.low %v348, %v357
    %v1445 = vunpack.c.l.s4 1983009808
    %v1446 = vunpack.c.0.s8 %v1445
    %v1447 = vlaneseq
    %v1448 = vshrl.u32 %v1447, 7
    %v1449 = vsub.s32 %v1446, %v1448
    %v1450 = vrot.slane %v1443, %v1449
    %v1451 = vcombine.low %v1450, %v1182
    %v1452 = vcombine.low %v373, %v381
    %v1453 = vcombine.low %v380, %v389
    %v1455 = vunpack.c.l.s4 1983009808
    %v1456 = vunpack.c.0.s8 %v1455
    %v1457 = vlaneseq
    %v1458 = vshrl.u32 %v1457, 7
    %v1459 = vsub.s32 %v1456, %v1458
    %v1460 = vrot.slane %v1452, %v1459
    %v1462 = vunpack.c.l.s4 1983009808
    %v1463 = vunpack.c.0.s8 %v1462
    %v1464 = vlaneseq
    %v1465 = vshrl.u32 %v1464, 7
    %v1466 = vsub.s32 %v1463, %v1465
    %v1467 = vrot.slane %v1453, %v1466
    %v1468 = vcombine.low %v1460, %v1467
    %v1469 = vcombine.low %v405, %v413
    %v1471 = vunpack.c.l.s4 1983009808
    %v1472 = vunpack.c.0.s8 %v1471
    %v1473 = vlaneseq
    %v1474 = vshrl.u32 %v1473, 7
    %v1475 = vsub.s32 %v1472, %v1474
    %v1476 = vrot.slane %v1469, %v1475
    %v1477 = vcombine.low %v1206, %v1476
    %v1478 = vcombine.low %v412, %v1365
    %v1479 = vcombine.low %v1373, %v1372
    %v1481 = vunpack.c.l.s4 1983009808
    %v1482 = vunpack.c.0.s8 %v1481
    %v1483 = vlaneseq
    %v1484 = vshrl.u32 %v1483, 7
    %v1485 = vsub.s32 %v1482, %v1484
    %v1486 = vrot.slane %v1478, %v1485
    %v1488 = vunpack.c.l.s4 1983009808
    %v1489 = vunpack.c.0.s8 %v1488
    %v1490 = vlaneseq
    %v1491 = vshrl.u32 %v1490, 7
    %v1492 = vsub.s32 %v1489, %v1491
    %v1493 = vrot.slane %v1479, %v1492
    %v1494 = vcombine.low %v1486, %v1493
    %v1504 = vpack.c.bf16 %v1399, %v1390
    %v1505 = vpack.c.bf16 %v1425, %v1408
    %v1506 = vpack.c.bf16 %v1451, %v1442
    %v1507 = vpack.c.bf16 %v1477, %v1468
    %v1508 = vpack.c.bf16 %v1494, %v1494
    %s1509 = scalar_lea.vmem %s1, 6
    %v1510 = vld [vmem:[%s1509] sm:$0x3]
    %v1512 = vsel %vm890, %v1504, 0
    %v1515 = vsel %vm890, %v1505, 0
    %v1518 = vsel %vm890, %v1506, 0
    %v1521 = vsel %vm890, %v1507, 0
    %v1524 = vsel %vm890, %v1508, 0
    %v1527 = vsel %vm906, %v1510, 0
    %1529 = vmatprep.subr.bf16.mxu0 0
    %1530 = vmatpush1.bf16.msra.mxu0 %v1527
    %1531 = vmatprep.subr.bf16.mxu0 0
    %1532 = vmatpush1.bf16.msra.mxu0 0
    %1533 = vmatprep.subr.bf16.mxu0 0
    %1534 = vmatpush1.bf16.msra.mxu0 0
    %1535 = vmatprep.subr.bf16.mxu0 0
    %1536 = vmatpush1.bf16.msra.mxu0 0
    %1537 = vmatprep.subr.bf16.mxu0 0
    %1538 = vmatpush1.bf16.msra.mxu0 0
    %1539 = vmatprep.subr.bf16.mxu0 0
    %1540 = vmatpush1.bf16.msra.mxu0 0
    %1541 = vmatprep.subr.bf16.mxu0 0
    %1542 = vmatpush1.bf16.msra.mxu0 0
    %1543 = vmatprep.subr.bf16.mxu0 0
    %1544 = vmatpush1.bf16.msra.mxu0 0
    %1545 = vmatprep.subr.bf16.mxu0 0
    %1546 = vmatpush1.bf16.msra.mxu0 0
    %1547 = vmatprep.subr.bf16.mxu0 0
    %1548 = vmatpush1.bf16.msra.mxu0 0
    %1549 = vmatprep.subr.bf16.mxu0 0
    %1550 = vmatpush1.bf16.msra.mxu0 0
    %1551 = vmatprep.subr.bf16.mxu0 0
    %1552 = vmatpush1.bf16.msra.mxu0 0
    %1553 = vmatprep.subr.bf16.mxu0 0
    %1554 = vmatpush1.bf16.msra.mxu0 0
    %1555 = vmatprep.subr.bf16.mxu0 0
    %1556 = vmatpush1.bf16.msra.mxu0 0
    %1557 = vmatprep.subr.bf16.mxu0 0
    %1558 = vmatpush1.bf16.msra.mxu0 0
    %1559 = vmatprep.subr.bf16.mxu0 0
    %1560 = vmatpush1.bf16.msra.mxu0 0
    %1561 = vmatprep.mubr.bf16.mxu0 0
    %1562 = vmatmul.mubr.bf16.gmra.mrb[0].mxu0 %v1512
    %v1563 = vpop.f32.mrb[0].mxu0
    %v1564 = vadd.f32 0.0, %v1563
    %v1565 = vpop.f32.mrb[0].mxu0
    %v1566 = vpop.f32.mrb[0].mxu0
    %v1567 = vadd.f32 0.0, %v1566
    %v1568 = vpop.f32.mrb[0].mxu0
    %1569 = vmatprep.mubr.bf16.mxu0 0
    %1570 = vmatmul.mubr.bf16.gmra.mrb[0].mxu0 %v1515
    %v1571 = vpop.f32.mrb[0].mxu0
    %v1572 = vadd.f32 0.0, %v1571
    %v1573 = vpop.f32.mrb[0].mxu0
    %v1574 = vpop.f32.mrb[0].mxu0
    %v1575 = vadd.f32 0.0, %v1574
    %v1576 = vpop.f32.mrb[0].mxu0
    %1577 = vmatprep.mubr.bf16.mxu0 0
    %1578 = vmatmul.mubr.bf16.gmra.mrb[0].mxu0 %v1518
    %v1579 = vpop.f32.mrb[0].mxu0
    %v1580 = vadd.f32 0.0, %v1579
    %v1581 = vpop.f32.mrb[0].mxu0
    %v1582 = vpop.f32.mrb[0].mxu0
    %v1583 = vadd.f32 0.0, %v1582
    %v1584 = vpop.f32.mrb[0].mxu0
    %1585 = vmatprep.mubr.bf16.mxu0 0
    %1586 = vmatmul.mubr.bf16.gmra.mrb[0].mxu0 %v1521
    %v1587 = vpop.f32.mrb[0].mxu0
    %v1588 = vadd.f32 0.0, %v1587
    %v1589 = vpop.f32.mrb[0].mxu0
    %v1590 = vpop.f32.mrb[0].mxu0
    %v1591 = vadd.f32 0.0, %v1590
    %v1592 = vpop.f32.mrb[0].mxu0
    %1593 = vmatprep.mubr.bf16.mxu0 0
    %1594 = vmatmul.mubr.bf16.gmra.mrb[0].mxu0 %v1524
    %v1595 = vpop.f32.mrb[0].mxu0
    %v1596 = vadd.f32 0.0, %v1595
    %v1597 = vpop.f32.mrb[0].mxu0
    %v1598 = vpop.f32.mrb[0].mxu0
    %v1599 = vpop.f32.mrb[0].mxu0
    %1600 = vdwg.mxu0
    %v1601 = vadd.f32 %v1331, %v1564
    %v1602 = vadd.f32 %v1332, %v1567
    %v1603 = vadd.f32 %v1333, %v1572
    %v1604 = vadd.f32 %v1334, %v1575
    %v1605 = vadd.f32 %v1335, %v1580
    %v1606 = vadd.f32 %v1336, %v1583
    %v1607 = vadd.f32 %v1337, %v1588
    %v1608 = vadd.f32 %v1338, %v1591
    %v1609 = vadd.f32 %v1339, %v1596
    %v1610 = vcombine.high %v1356, %v1356
    %v1611 = vcombine.high %v1372, %v1372
    %v1612 = vrot.slane %v1349, 7
    %v1613 = vrot.slane %v1612, 2
    %v1614 = vrot.slane %v1357, 7
    %v1615 = vsel %vm600, %v1613, %v1614
    %v1616 = vrot.slane %v1614, 2
    %v1617 = vrot.slane %v1356, 7
    %v1618 = vsel %vm600, %v1616, %v1617
    %v1619 = vrot.slane %v1617, 2
    %v1620 = vrot.slane %v1610, 7
    %v1621 = vsel %vm600, %v1619, %v1620
    %v1622 = vrot.slane %v1365, 7
    %v1623 = vrot.slane %v1622, 2
    %v1624 = vrot.slane %v1373, 7
    %v1625 = vsel %vm600, %v1623, %v1624
    %v1626 = vrot.slane %v1624, 2
    %v1627 = vrot.slane %v1372, 7
    %v1628 = vsel %vm600, %v1626, %v1627
    %v1629 = vrot.slane %v1627, 2
    %v1630 = vrot.slane %v1611, 7
    %v1631 = vsel %vm600, %v1629, %v1630
    %v1632 = vcombine.low %v614, %v617
    %v1633 = vcombine.low %v620, %v624
    %v1635 = vunpack.c.l.s4 1983009808
    %v1636 = vunpack.c.0.s8 %v1635
    %v1637 = vlaneseq
    %v1638 = vshrl.u32 %v1637, 7
    %v1639 = vsub.s32 %v1636, %v1638
    %v1640 = vrot.slane %v1632, %v1639
    %v1642 = vunpack.c.l.s4 1983009808
    %v1643 = vunpack.c.0.s8 %v1642
    %v1644 = vlaneseq
    %v1645 = vshrl.u32 %v1644, 7
    %v1646 = vsub.s32 %v1643, %v1645
    %v1647 = vrot.slane %v1633, %v1646
    %v1648 = vcombine.low %v1640, %v1647
    %v1649 = vcombine.low %v627, %v630
    %v1650 = vcombine.low %v634, %v637
    %v1652 = vunpack.c.l.s4 1983009808
    %v1653 = vunpack.c.0.s8 %v1652
    %v1654 = vlaneseq
    %v1655 = vshrl.u32 %v1654, 7
    %v1656 = vsub.s32 %v1653, %v1655
    %v1657 = vrot.slane %v1649, %v1656
    %v1659 = vunpack.c.l.s4 1983009808
    %v1660 = vunpack.c.0.s8 %v1659
    %v1661 = vlaneseq
    %v1662 = vshrl.u32 %v1661, 7
    %v1663 = vsub.s32 %v1660, %v1662
    %v1664 = vrot.slane %v1650, %v1663
    %v1665 = vcombine.low %v1657, %v1664
    %v1666 = vcombine.low %v640, %v644
    %v1667 = vcombine.low %v647, %v650
    %v1669 = vunpack.c.l.s4 1983009808
    %v1670 = vunpack.c.0.s8 %v1669
    %v1671 = vlaneseq
    %v1672 = vshrl.u32 %v1671, 7
    %v1673 = vsub.s32 %v1670, %v1672
    %v1674 = vrot.slane %v1666, %v1673
    %v1676 = vunpack.c.l.s4 1983009808
    %v1677 = vunpack.c.0.s8 %v1676
    %v1678 = vlaneseq
    %v1679 = vshrl.u32 %v1678, 7
    %v1680 = vsub.s32 %v1677, %v1679
    %v1681 = vrot.slane %v1667, %v1680
    %v1682 = vcombine.low %v1674, %v1681
    %v1683 = vcombine.low %v654, %v657
    %v1684 = vcombine.low %v660, %v1615
    %v1686 = vunpack.c.l.s4 1983009808
    %v1687 = vunpack.c.0.s8 %v1686
    %v1688 = vlaneseq
    %v1689 = vshrl.u32 %v1688, 7
    %v1690 = vsub.s32 %v1687, %v1689
    %v1691 = vrot.slane %v1683, %v1690
    %v1693 = vunpack.c.l.s4 1983009808
    %v1694 = vunpack.c.0.s8 %v1693
    %v1695 = vlaneseq
    %v1696 = vshrl.u32 %v1695, 7
    %v1697 = vsub.s32 %v1694, %v1696
    %v1698 = vrot.slane %v1684, %v1697
    %v1699 = vcombine.low %v1691, %v1698
    %v1700 = vcombine.low %v1618, %v1621
    %v1701 = vcombine.low %v674, %v677
    %v1703 = vunpack.c.l.s4 1983009808
    %v1704 = vunpack.c.0.s8 %v1703
    %v1705 = vlaneseq
    %v1706 = vshrl.u32 %v1705, 7
    %v1707 = vsub.s32 %v1704, %v1706
    %v1708 = vrot.slane %v1700, %v1707
    %v1710 = vunpack.c.l.s4 1983009808
    %v1711 = vunpack.c.0.s8 %v1710
    %v1712 = vlaneseq
    %v1713 = vshrl.u32 %v1712, 7
    %v1714 = vsub.s32 %v1711, %v1713
    %v1715 = vrot.slane %v1701, %v1714
    %v1716 = vcombine.low %v1708, %v1715
    %v1717 = vcombine.low %v680, %v684
    %v1718 = vcombine.low %v687, %v690
    %v1720 = vunpack.c.l.s4 1983009808
    %v1721 = vunpack.c.0.s8 %v1720
    %v1722 = vlaneseq
    %v1723 = vshrl.u32 %v1722, 7
    %v1724 = vsub.s32 %v1721, %v1723
    %v1725 = vrot.slane %v1717, %v1724
    %v1727 = vunpack.c.l.s4 1983009808
    %v1728 = vunpack.c.0.s8 %v1727
    %v1729 = vlaneseq
    %v1730 = vshrl.u32 %v1729, 7
    %v1731 = vsub.s32 %v1728, %v1730
    %v1732 = vrot.slane %v1718, %v1731
    %v1733 = vcombine.low %v1725, %v1732
    %v1734 = vcombine.low %v694, %v697
    %v1735 = vcombine.low %v700, %v704
    %v1737 = vunpack.c.l.s4 1983009808
    %v1738 = vunpack.c.0.s8 %v1737
    %v1739 = vlaneseq
    %v1740 = vshrl.u32 %v1739, 7
    %v1741 = vsub.s32 %v1738, %v1740
    %v1742 = vrot.slane %v1734, %v1741
    %v1744 = vunpack.c.l.s4 1983009808
    %v1745 = vunpack.c.0.s8 %v1744
    %v1746 = vlaneseq
    %v1747 = vshrl.u32 %v1746, 7
    %v1748 = vsub.s32 %v1745, %v1747
    %v1749 = vrot.slane %v1735, %v1748
    %v1750 = vcombine.low %v1742, %v1749
    %v1751 = vcombine.low %v707, %v710
    %v1752 = vcombine.low %v714, %v717
    %v1754 = vunpack.c.l.s4 1983009808
    %v1755 = vunpack.c.0.s8 %v1754
    %v1756 = vlaneseq
    %v1757 = vshrl.u32 %v1756, 7
    %v1758 = vsub.s32 %v1755, %v1757
    %v1759 = vrot.slane %v1751, %v1758
    %v1761 = vunpack.c.l.s4 1983009808
    %v1762 = vunpack.c.0.s8 %v1761
    %v1763 = vlaneseq
    %v1764 = vshrl.u32 %v1763, 7
    %v1765 = vsub.s32 %v1762, %v1764
    %v1766 = vrot.slane %v1752, %v1765
    %v1767 = vcombine.low %v1759, %v1766
    %v1768 = vcombine.low %v720, %v1625
    %v1769 = vcombine.low %v1628, %v1631
    %v1771 = vunpack.c.l.s4 1983009808
    %v1772 = vunpack.c.0.s8 %v1771
    %v1773 = vlaneseq
    %v1774 = vshrl.u32 %v1773, 7
    %v1775 = vsub.s32 %v1772, %v1774
    %v1776 = vrot.slane %v1768, %v1775
    %v1778 = vunpack.c.l.s4 1983009808
    %v1779 = vunpack.c.0.s8 %v1778
    %v1780 = vlaneseq
    %v1781 = vshrl.u32 %v1780, 7
    %v1782 = vsub.s32 %v1779, %v1781
    %v1783 = vrot.slane %v1769, %v1782
    %v1784 = vcombine.low %v1776, %v1783
    %v1794 = vpack.c.bf16 %v1665, %v1648
    %v1795 = vpack.c.bf16 %v1699, %v1682
    %v1796 = vpack.c.bf16 %v1733, %v1716
    %v1797 = vpack.c.bf16 %v1767, %v1750
    %v1798 = vpack.c.bf16 %v1784, %v1784
    %s1799 = scalar_lea.vmem %s1, 8
    %v1800 = vld [vmem:[%s1799] sm:$0x3]
    %v1802 = vsel %vm890, %v1794, 0
    %v1805 = vsel %vm890, %v1795, 0
    %v1808 = vsel %vm890, %v1796, 0
    %v1811 = vsel %vm890, %v1797, 0
    %v1814 = vsel %vm890, %v1798, 0
    %v1817 = vsel %vm906, %v1800, 0
    %1819 = vmatprep.subr.bf16.mxu0 0
    %1820 = vmatpush1.bf16.msra.mxu0 %v1817
    %1821 = vmatprep.subr.bf16.mxu0 0
    %1822 = vmatpush1.bf16.msra.mxu0 0
    %1823 = vmatprep.subr.bf16.mxu0 0
    %1824 = vmatpush1.bf16.msra.mxu0 0
    %1825 = vmatprep.subr.bf16.mxu0 0
    %1826 = vmatpush1.bf16.msra.mxu0 0
    %1827 = vmatprep.subr.bf16.mxu0 0
    %1828 = vmatpush1.bf16.msra.mxu0 0
    %1829 = vmatprep.subr.bf16.mxu0 0
    %1830 = vmatpush1.bf16.msra.mxu0 0
    %1831 = vmatprep.subr.bf16.mxu0 0
    %1832 = vmatpush1.bf16.msra.mxu0 0
    %1833 = vmatprep.subr.bf16.mxu0 0
    %1834 = vmatpush1.bf16.msra.mxu0 0
    %1835 = vmatprep.subr.bf16.mxu0 0
    %1836 = vmatpush1.bf16.msra.mxu0 0
    %1837 = vmatprep.subr.bf16.mxu0 0
    %1838 = vmatpush1.bf16.msra.mxu0 0
    %1839 = vmatprep.subr.bf16.mxu0 0
    %1840 = vmatpush1.bf16.msra.mxu0 0
    %1841 = vmatprep.subr.bf16.mxu0 0
    %1842 = vmatpush1.bf16.msra.mxu0 0
    %1843 = vmatprep.subr.bf16.mxu0 0
    %1844 = vmatpush1.bf16.msra.mxu0 0
    %1845 = vmatprep.subr.bf16.mxu0 0
    %1846 = vmatpush1.bf16.msra.mxu0 0
    %1847 = vmatprep.subr.bf16.mxu0 0
    %1848 = vmatpush1.bf16.msra.mxu0 0
    %1849 = vmatprep.subr.bf16.mxu0 0
    %1850 = vmatpush1.bf16.msra.mxu0 0
    %1851 = vmatprep.mubr.bf16.mxu0 0
    %1852 = vmatmul.mubr.bf16.gmra.mrb[0].mxu0 %v1802
    %v1853 = vpop.f32.mrb[0].mxu0
    %v1854 = vadd.f32 0.0, %v1853
    %v1855 = vpop.f32.mrb[0].mxu0
    %v1856 = vpop.f32.mrb[0].mxu0
    %v1857 = vadd.f32 0.0, %v1856
    %v1858 = vpop.f32.mrb[0].mxu0
    %1859 = vmatprep.mubr.bf16.mxu0 0
    %1860 = vmatmul.mubr.bf16.gmra.mrb[0].mxu0 %v1805
    %v1861 = vpop.f32.mrb[0].mxu0
    %v1862 = vadd.f32 0.0, %v1861
    %v1863 = vpop.f32.mrb[0].mxu0
    %v1864 = vpop.f32.mrb[0].mxu0
    %v1865 = vadd.f32 0.0, %v1864
    %v1866 = vpop.f32.mrb[0].mxu0
    %1867 = vmatprep.mubr.bf16.mxu0 0
    %1868 = vmatmul.mubr.bf16.gmra.mrb[0].mxu0 %v1808
    %v1869 = vpop.f32.mrb[0].mxu0
    %v1870 = vadd.f32 0.0, %v1869
    %v1871 = vpop.f32.mrb[0].mxu0
    %v1872 = vpop.f32.mrb[0].mxu0
    %v1873 = vadd.f32 0.0, %v1872
    %v1874 = vpop.f32.mrb[0].mxu0
    %1875 = vmatprep.mubr.bf16.mxu0 0
    %1876 = vmatmul.mubr.bf16.gmra.mrb[0].mxu0 %v1811
    %v1877 = vpop.f32.mrb[0].mxu0
    %v1878 = vadd.f32 0.0, %v1877
    %v1879 = vpop.f32.mrb[0].mxu0
    %v1880 = vpop.f32.mrb[0].mxu0
    %v1881 = vadd.f32 0.0, %v1880
    %v1882 = vpop.f32.mrb[0].mxu0
    %1883 = vmatprep.mubr.bf16.mxu0 0
    %1884 = vmatmul.mubr.bf16.gmra.mrb[0].mxu0 %v1814
    %v1885 = vpop.f32.mrb[0].mxu0
    %v1886 = vadd.f32 0.0, %v1885
    %v1887 = vpop.f32.mrb[0].mxu0
    %v1888 = vpop.f32.mrb[0].mxu0
    %v1889 = vpop.f32.mrb[0].mxu0
    %1890 = vdwg.mxu0
    %v1891 = vadd.f32 %v1601, %v1854
    %v1892 = vadd.f32 %v1602, %v1857
    %v1893 = vadd.f32 %v1603, %v1862
    %v1894 = vadd.f32 %v1604, %v1865
    %v1895 = vadd.f32 %v1605, %v1870
    %v1896 = vadd.f32 %v1606, %v1873
    %v1897 = vadd.f32 %v1607, %v1878
    %v1898 = vadd.f32 %v1608, %v1881
    %v1899 = vadd.f32 %v1609, %v1886
    %v1900 = vcombine.low %v583, %v269
    %v1902 = vunpack.c.l.s4 1983009808
    %v1903 = vunpack.c.0.s8 %v1902
    %v1904 = vlaneseq
    %v1905 = vshrl.u32 %v1904, 7
    %v1906 = vsub.s32 %v1903, %v1905
    %v1907 = vrot.slane %v1900, %v1906
    %v1908 = vcombine.low %v439, %v1907
    %v1909 = vcombine.low %v268, %v584
    %v1911 = vunpack.c.l.s4 1983009808
    %v1912 = vunpack.c.0.s8 %v1911
    %v1913 = vlaneseq
    %v1914 = vshrl.u32 %v1913, 7
    %v1915 = vsub.s32 %v1912, %v1914
    %v1916 = vrot.slane %v1909, %v1915
    %v1917 = vcombine.low %v1916, %v463
    %v1918 = vcombine.low %v585, %v301
    %v1919 = vcombine.low %v300, %v586
    %v1921 = vunpack.c.l.s4 1983009808
    %v1922 = vunpack.c.0.s8 %v1921
    %v1923 = vlaneseq
    %v1924 = vshrl.u32 %v1923, 7
    %v1925 = vsub.s32 %v1922, %v1924
    %v1926 = vrot.slane %v1918, %v1925
    %v1928 = vunpack.c.l.s4 1983009808
    %v1929 = vunpack.c.0.s8 %v1928
    %v1930 = vlaneseq
    %v1931 = vshrl.u32 %v1930, 7
    %v1932 = vsub.s32 %v1929, %v1931
    %v1933 = vrot.slane %v1919, %v1932
    %v1934 = vcombine.low %v1926, %v1933
    %v1935 = vcombine.low %v587, %v1357
    %v1937 = vunpack.c.l.s4 1983009808
    %v1938 = vunpack.c.0.s8 %v1937
    %v1939 = vlaneseq
    %v1940 = vshrl.u32 %v1939, 7
    %v1941 = vsub.s32 %v1938, %v1940
    %v1942 = vrot.slane %v1935, %v1941
    %v1943 = vcombine.low %v490, %v1942
    %v1944 = vcombine.low %v1356, %v1610
    %v1946 = vunpack.c.l.s4 1983009808
    %v1947 = vunpack.c.0.s8 %v1946
    %v1948 = vlaneseq
    %v1949 = vshrl.u32 %v1948, 7
    %v1950 = vsub.s32 %v1947, %v1949
    %v1951 = vrot.slane %v1944, %v1950
    %v1952 = vcombine.low %v1951, %v514
    %v1953 = vcombine.low %v589, %v365
    %v1954 = vcombine.low %v364, %v590
    %v1956 = vunpack.c.l.s4 1983009808
    %v1957 = vunpack.c.0.s8 %v1956
    %v1958 = vlaneseq
    %v1959 = vshrl.u32 %v1958, 7
    %v1960 = vsub.s32 %v1957, %v1959
    %v1961 = vrot.slane %v1953, %v1960
    %v1963 = vunpack.c.l.s4 1983009808
    %v1964 = vunpack.c.0.s8 %v1963
    %v1965 = vlaneseq
    %v1966 = vshrl.u32 %v1965, 7
    %v1967 = vsub.s32 %v1964, %v1966
    %v1968 = vrot.slane %v1954, %v1967
    %v1969 = vcombine.low %v1961, %v1968
    %v1970 = vcombine.low %v591, %v397
    %v1972 = vunpack.c.l.s4 1983009808
    %v1973 = vunpack.c.0.s8 %v1972
    %v1974 = vlaneseq
    %v1975 = vshrl.u32 %v1974, 7
    %v1976 = vsub.s32 %v1973, %v1975
    %v1977 = vrot.slane %v1970, %v1976
    %v1978 = vcombine.low %v541, %v1977
    %v1979 = vcombine.low %v396, %v592
    %v1981 = vunpack.c.l.s4 1983009808
    %v1982 = vunpack.c.0.s8 %v1981
    %v1983 = vlaneseq
    %v1984 = vshrl.u32 %v1983, 7
    %v1985 = vsub.s32 %v1982, %v1984
    %v1986 = vrot.slane %v1979, %v1985
    %v1987 = vcombine.low %v1986, %v565
    %v1988 = vcombine.low %v593, %v1373
    %v1989 = vcombine.low %v1372, %v1611
    %v1991 = vunpack.c.l.s4 1983009808
    %v1992 = vunpack.c.0.s8 %v1991
    %v1993 = vlaneseq
    %v1994 = vshrl.u32 %v1993, 7
    %v1995 = vsub.s32 %v1992, %v1994
    %v1996 = vrot.slane %v1988, %v1995
    %v1998 = vunpack.c.l.s4 1983009808
    %v1999 = vunpack.c.0.s8 %v1998
    %v2000 = vlaneseq
    %v2001 = vshrl.u32 %v2000, 7
    %v2002 = vsub.s32 %v1999, %v2001
    %v2003 = vrot.slane %v1989, %v2002
    %v2004 = vcombine.low %v1996, %v2003
    %v2014 = vpack.c.bf16 %v1917, %v1908
    %v2015 = vpack.c.bf16 %v1943, %v1934
    %v2016 = vpack.c.bf16 %v1969, %v1952
    %v2017 = vpack.c.bf16 %v1987, %v1978
    %v2018 = vpack.c.bf16 %v2004, %v2004
    %s2019 = scalar_lea.vmem %s1, 10
    %v2020 = vld [vmem:[%s2019] sm:$0x3]
    %v2022 = vsel %vm890, %v2014, 0
    %v2025 = vsel %vm890, %v2015, 0
    %v2028 = vsel %vm890, %v2016, 0
    %v2031 = vsel %vm890, %v2017, 0
    %v2034 = vsel %vm890, %v2018, 0
    %v2037 = vsel %vm906, %v2020, 0
    %2039 = vmatprep.subr.bf16.mxu0 0
    %2040 = vmatpush1.bf16.msra.mxu0 %v2037
    %2041 = vmatprep.subr.bf16.mxu0 0
    %2042 = vmatpush1.bf16.msra.mxu0 0
    %2043 = vmatprep.subr.bf16.mxu0 0
    %2044 = vmatpush1.bf16.msra.mxu0 0
    %2045 = vmatprep.subr.bf16.mxu0 0
    %2046 = vmatpush1.bf16.msra.mxu0 0
    %2047 = vmatprep.subr.bf16.mxu0 0
    %2048 = vmatpush1.bf16.msra.mxu0 0
    %2049 = vmatprep.subr.bf16.mxu0 0
    %2050 = vmatpush1.bf16.msra.mxu0 0
    %2051 = vmatprep.subr.bf16.mxu0 0
    %2052 = vmatpush1.bf16.msra.mxu0 0
    %2053 = vmatprep.subr.bf16.mxu0 0
    %2054 = vmatpush1.bf16.msra.mxu0 0
    %2055 = vmatprep.subr.bf16.mxu0 0
    %2056 = vmatpush1.bf16.msra.mxu0 0
    %2057 = vmatprep.subr.bf16.mxu0 0
    %2058 = vmatpush1.bf16.msra.mxu0 0
    %2059 = vmatprep.subr.bf16.mxu0 0
    %2060 = vmatpush1.bf16.msra.mxu0 0
    %2061 = vmatprep.subr.bf16.mxu0 0
    %2062 = vmatpush1.bf16.msra.mxu0 0
    %2063 = vmatprep.subr.bf16.mxu0 0
    %2064 = vmatpush1.bf16.msra.mxu0 0
    %2065 = vmatprep.subr.bf16.mxu0 0
    %2066 = vmatpush1.bf16.msra.mxu0 0
    %2067 = vmatprep.subr.bf16.mxu0 0
    %2068 = vmatpush1.bf16.msra.mxu0 0
    %2069 = vmatprep.subr.bf16.mxu0 0
    %2070 = vmatpush1.bf16.msra.mxu0 0
    %2071 = vmatprep.mubr.bf16.mxu0 0
    %2072 = vmatmul.mubr.bf16.gmra.mrb[0].mxu0 %v2022
    %v2073 = vpop.f32.mrb[0].mxu0
    %v2074 = vadd.f32 0.0, %v2073
    %v2075 = vpop.f32.mrb[0].mxu0
    %v2076 = vpop.f32.mrb[0].mxu0
    %v2077 = vadd.f32 0.0, %v2076
    %v2078 = vpop.f32.mrb[0].mxu0
    %2079 = vmatprep.mubr.bf16.mxu0 0
    %2080 = vmatmul.mubr.bf16.gmra.mrb[0].mxu0 %v2025
    %v2081 = vpop.f32.mrb[0].mxu0
    %v2082 = vadd.f32 0.0, %v2081
    %v2083 = vpop.f32.mrb[0].mxu0
    %v2084 = vpop.f32.mrb[0].mxu0
    %v2085 = vadd.f32 0.0, %v2084
    %v2086 = vpop.f32.mrb[0].mxu0
    %2087 = vmatprep.mubr.bf16.mxu0 0
    %2088 = vmatmul.mubr.bf16.gmra.mrb[0].mxu0 %v2028
    %v2089 = vpop.f32.mrb[0].mxu0
    %v2090 = vadd.f32 0.0, %v2089
    %v2091 = vpop.f32.mrb[0].mxu0
    %v2092 = vpop.f32.mrb[0].mxu0
    %v2093 = vadd.f32 0.0, %v2092
    %v2094 = vpop.f32.mrb[0].mxu0
    %2095 = vmatprep.mubr.bf16.mxu0 0
    %2096 = vmatmul.mubr.bf16.gmra.mrb[0].mxu0 %v2031
    %v2097 = vpop.f32.mrb[0].mxu0
    %v2098 = vadd.f32 0.0, %v2097
    %v2099 = vpop.f32.mrb[0].mxu0
    %v2100 = vpop.f32.mrb[0].mxu0
    %v2101 = vadd.f32 0.0, %v2100
    %v2102 = vpop.f32.mrb[0].mxu0
    %2103 = vmatprep.mubr.bf16.mxu0 0
    %2104 = vmatmul.mubr.bf16.gmra.mrb[0].mxu0 %v2034
    %v2105 = vpop.f32.mrb[0].mxu0
    %v2106 = vadd.f32 0.0, %v2105
    %v2107 = vpop.f32.mrb[0].mxu0
    %v2108 = vpop.f32.mrb[0].mxu0
    %v2109 = vpop.f32.mrb[0].mxu0
    %2110 = vdwg.mxu0
    %v2111 = vadd.f32 %v1891, %v2074
    %v2112 = vadd.f32 %v1892, %v2077
    %v2113 = vadd.f32 %v1893, %v2082
    %v2114 = vadd.f32 %v1894, %v2085
    %v2115 = vadd.f32 %v1895, %v2090
    %v2116 = vadd.f32 %v1896, %v2093
    %v2117 = vadd.f32 %v1897, %v2098
    %v2118 = vadd.f32 %v1898, %v2101
    %v2119 = vadd.f32 %v1899, %v2106
    %v2122 = vcombine.high %v201, %v201
    %v2124 = vunpack.c.l.s4 1983009808
    %v2125 = vunpack.c.0.s8 %v2124
    %v2126 = vlaneseq
    %v2127 = vshrl.u32 %v2126, 7
    %v2128 = vsub.s32 %v2125, %v2127
    %v2129 = vrot.slane %v201, %v2128
    %v2131 = vunpack.c.l.s4 1983009808
    %v2132 = vunpack.c.0.s8 %v2131
    %v2133 = vlaneseq
    %v2134 = vshrl.u32 %v2133, 7
    %v2135 = vsub.s32 %v2132, %v2134
    %v2136 = vrot.slane %v2122, %v2135
    %v2137 = vcombine.high %v2129, %v2129
    %v2138 = vcombine.high %v209, %v209
    %v2140 = vunpack.c.l.s4 1983009808
    %v2141 = vunpack.c.0.s8 %v2140
    %v2142 = vlaneseq
    %v2143 = vshrl.u32 %v2142, 7
    %v2144 = vsub.s32 %v2141, %v2143
    %v2145 = vrot.slane %v209, %v2144
    %v2147 = vunpack.c.l.s4 1983009808
    %v2148 = vunpack.c.0.s8 %v2147
    %v2149 = vlaneseq
    %v2150 = vshrl.u32 %v2149, 7
    %v2151 = vsub.s32 %v2148, %v2150
    %v2152 = vrot.slane %v2138, %v2151
    %v2153 = vcombine.high %v2145, %v2145
    %v2154 = vcombine.low %v446, %v456
    %v2155 = vcombine.low %v463, %v473
    %v2156 = vcombine.low %v480, %v490
    %v2157 = vcombine.low %v1349, %v1357
    %v2158 = vcombine.low %v1356, %v2129
    %v2160 = vunpack.c.l.s4 1983009808
    %v2161 = vunpack.c.0.s8 %v2160
    %v2162 = vlaneseq
    %v2163 = vshrl.u32 %v2162, 7
    %v2164 = vsub.s32 %v2161, %v2163
    %v2165 = vrot.slane %v2157, %v2164
    %v2167 = vunpack.c.l.s4 1983009808
    %v2168 = vunpack.c.0.s8 %v2167
    %v2169 = vlaneseq
    %v2170 = vshrl.u32 %v2169, 7
    %v2171 = vsub.s32 %v2168, %v2170
    %v2172 = vrot.slane %v2158, %v2171
    %v2173 = vcombine.low %v2165, %v2172
    %v2174 = vcombine.low %v2137, %v2136
    %v2176 = vunpack.c.l.s4 1983009808
    %v2177 = vunpack.c.0.s8 %v2176
    %v2178 = vlaneseq
    %v2179 = vshrl.u32 %v2178, 7
    %v2180 = vsub.s32 %v2177, %v2179
    %v2181 = vrot.slane %v2174, %v2180
    %v2182 = vcombine.low %v2181, %v524
    %v2183 = vcombine.low %v531, %v541
    %v2184 = vcombine.low %v548, %v558
    %v2185 = vcombine.low %v1365, %v1373
    %v2187 = vunpack.c.l.s4 1983009808
    %v2188 = vunpack.c.0.s8 %v2187
    %v2189 = vlaneseq
    %v2190 = vshrl.u32 %v2189, 7
    %v2191 = vsub.s32 %v2188, %v2190
    %v2192 = vrot.slane %v2185, %v2191
    %v2193 = vcombine.low %v565, %v2192
    %v2194 = vcombine.low %v1372, %v2145
    %v2195 = vcombine.low %v2153, %v2152
    %v2197 = vunpack.c.l.s4 1983009808
    %v2198 = vunpack.c.0.s8 %v2197
    %v2199 = vlaneseq
    %v2200 = vshrl.u32 %v2199, 7
    %v2201 = vsub.s32 %v2198, %v2200
    %v2202 = vrot.slane %v2194, %v2201
    %v2204 = vunpack.c.l.s4 1983009808
    %v2205 = vunpack.c.0.s8 %v2204
    %v2206 = vlaneseq
    %v2207 = vshrl.u32 %v2206, 7
    %v2208 = vsub.s32 %v2205, %v2207
    %v2209 = vrot.slane %v2195, %v2208
    %v2210 = vcombine.low %v2202, %v2209
    %v2220 = vpack.c.bf16 %v2155, %v2154
    %v2221 = vpack.c.bf16 %v2173, %v2156
    %v2222 = vpack.c.bf16 %v2183, %v2182
    %v2223 = vpack.c.bf16 %v2193, %v2184
    %v2224 = vpack.c.bf16 %v2210, %v2210
    %s2225 = scalar_lea.vmem %s1, 12
    %v2226 = vld [vmem:[%s2225] sm:$0x3]
    %v2228 = vsel %vm890, %v2220, 0
    %v2231 = vsel %vm890, %v2221, 0
    %v2234 = vsel %vm890, %v2222, 0
    %v2237 = vsel %vm890, %v2223, 0
    %v2240 = vsel %vm890, %v2224, 0
    %v2243 = vsel %vm906, %v2226, 0
    %2245 = vmatprep.subr.bf16.mxu0 0
    %2246 = vmatpush1.bf16.msra.mxu0 %v2243
    %2247 = vmatprep.subr.bf16.mxu0 0
    %2248 = vmatpush1.bf16.msra.mxu0 0
    %2249 = vmatprep.subr.bf16.mxu0 0
    %2250 = vmatpush1.bf16.msra.mxu0 0
    %2251 = vmatprep.subr.bf16.mxu0 0
    %2252 = vmatpush1.bf16.msra.mxu0 0
    %2253 = vmatprep.subr.bf16.mxu0 0
    %2254 = vmatpush1.bf16.msra.mxu0 0
    %2255 = vmatprep.subr.bf16.mxu0 0
    %2256 = vmatpush1.bf16.msra.mxu0 0
    %2257 = vmatprep.subr.bf16.mxu0 0
    %2258 = vmatpush1.bf16.msra.mxu0 0
    %2259 = vmatprep.subr.bf16.mxu0 0
    %2260 = vmatpush1.bf16.msra.mxu0 0
    %2261 = vmatprep.subr.bf16.mxu0 0
    %2262 = vmatpush1.bf16.msra.mxu0 0
    %2263 = vmatprep.subr.bf16.mxu0 0
    %2264 = vmatpush1.bf16.msra.mxu0 0
    %2265 = vmatprep.subr.bf16.mxu0 0
    %2266 = vmatpush1.bf16.msra.mxu0 0
    %2267 = vmatprep.subr.bf16.mxu0 0
    %2268 = vmatpush1.bf16.msra.mxu0 0
    %2269 = vmatprep.subr.bf16.mxu0 0
    %2270 = vmatpush1.bf16.msra.mxu0 0
    %2271 = vmatprep.subr.bf16.mxu0 0
    %2272 = vmatpush1.bf16.msra.mxu0 0
    %2273 = vmatprep.subr.bf16.mxu0 0
    %2274 = vmatpush1.bf16.msra.mxu0 0
    %2275 = vmatprep.subr.bf16.mxu0 0
    %2276 = vmatpush1.bf16.msra.mxu0 0
    %2277 = vmatprep.mubr.bf16.mxu0 0
    %2278 = vmatmul.mubr.bf16.gmra.mrb[0].mxu0 %v2228
    %v2279 = vpop.f32.mrb[0].mxu0
    %v2280 = vadd.f32 0.0, %v2279
    %v2281 = vpop.f32.mrb[0].mxu0
    %v2282 = vpop.f32.mrb[0].mxu0
    %v2283 = vadd.f32 0.0, %v2282
    %v2284 = vpop.f32.mrb[0].mxu0
    %2285 = vmatprep.mubr.bf16.mxu0 0
    %2286 = vmatmul.mubr.bf16.gmra.mrb[0].mxu0 %v2231
    %v2287 = vpop.f32.mrb[0].mxu0
    %v2288 = vadd.f32 0.0, %v2287
    %v2289 = vpop.f32.mrb[0].mxu0
    %v2290 = vpop.f32.mrb[0].mxu0
    %v2291 = vadd.f32 0.0, %v2290
    %v2292 = vpop.f32.mrb[0].mxu0
    %2293 = vmatprep.mubr.bf16.mxu0 0
    %2294 = vmatmul.mubr.bf16.gmra.mrb[0].mxu0 %v2234
    %v2295 = vpop.f32.mrb[0].mxu0
    %v2296 = vadd.f32 0.0, %v2295
    %v2297 = vpop.f32.mrb[0].mxu0
    %v2298 = vpop.f32.mrb[0].mxu0
    %v2299 = vadd.f32 0.0, %v2298
    %v2300 = vpop.f32.mrb[0].mxu0
    %2301 = vmatprep.mubr.bf16.mxu0 0
    %2302 = vmatmul.mubr.bf16.gmra.mrb[0].mxu0 %v2237
    %v2303 = vpop.f32.mrb[0].mxu0
    %v2304 = vadd.f32 0.0, %v2303
    %v2305 = vpop.f32.mrb[0].mxu0
    %v2306 = vpop.f32.mrb[0].mxu0
    %v2307 = vadd.f32 0.0, %v2306
    %v2308 = vpop.f32.mrb[0].mxu0
    %2309 = vmatprep.mubr.bf16.mxu0 0
    %2310 = vmatmul.mubr.bf16.gmra.mrb[0].mxu0 %v2240
    %v2311 = vpop.f32.mrb[0].mxu0
    %v2312 = vadd.f32 0.0, %v2311
    %v2313 = vpop.f32.mrb[0].mxu0
    %v2314 = vpop.f32.mrb[0].mxu0
    %v2315 = vpop.f32.mrb[0].mxu0
    %2316 = vdwg.mxu0
    %v2317 = vadd.f32 %v2111, %v2280
    %v2318 = vadd.f32 %v2112, %v2283
    %v2319 = vadd.f32 %v2113, %v2288
    %v2320 = vadd.f32 %v2114, %v2291
    %v2321 = vadd.f32 %v2115, %v2296
    %v2322 = vadd.f32 %v2116, %v2299
    %v2323 = vadd.f32 %v2117, %v2304
    %v2324 = vadd.f32 %v2118, %v2307
    %v2325 = vadd.f32 %v2119, %v2312
    %v2326 = vcombine.high %v2136, %v2136
    %v2327 = vcombine.high %v2152, %v2152
    %v2328 = vrot.slane %v2129, 7
    %v2329 = vrot.slane %v2328, 2
    %v2330 = vrot.slane %v2137, 7
    %v2331 = vsel %vm600, %v2329, %v2330
    %v2332 = vrot.slane %v2330, 2
    %v2333 = vrot.slane %v2136, 7
    %v2334 = vsel %vm600, %v2332, %v2333
    %v2335 = vrot.slane %v2333, 2
    %v2336 = vrot.slane %v2326, 7
    %v2337 = vsel %vm600, %v2335, %v2336
    %v2338 = vrot.slane %v2145, 7
    %v2339 = vrot.slane %v2338, 2
    %v2340 = vrot.slane %v2153, 7
    %v2341 = vsel %vm600, %v2339, %v2340
    %v2342 = vrot.slane %v2340, 2
    %v2343 = vrot.slane %v2152, 7
    %v2344 = vsel %vm600, %v2342, %v2343
    %v2345 = vrot.slane %v2343, 2
    %v2346 = vrot.slane %v2327, 7
    %v2347 = vsel %vm600, %v2345, %v2346
    %v2348 = vcombine.low %v753, %v763
    %v2349 = vcombine.low %v770, %v780
    %v2350 = vcombine.low %v787, %v797
    %v2351 = vcombine.low %v1615, %v1618
    %v2352 = vcombine.low %v1621, %v2331
    %v2354 = vunpack.c.l.s4 1983009808
    %v2355 = vunpack.c.0.s8 %v2354
    %v2356 = vlaneseq
    %v2357 = vshrl.u32 %v2356, 7
    %v2358 = vsub.s32 %v2355, %v2357
    %v2359 = vrot.slane %v2351, %v2358
    %v2361 = vunpack.c.l.s4 1983009808
    %v2362 = vunpack.c.0.s8 %v2361
    %v2363 = vlaneseq
    %v2364 = vshrl.u32 %v2363, 7
    %v2365 = vsub.s32 %v2362, %v2364
    %v2366 = vrot.slane %v2352, %v2365
    %v2367 = vcombine.low %v2359, %v2366
    %v2368 = vcombine.low %v2334, %v2337
    %v2370 = vunpack.c.l.s4 1983009808
    %v2371 = vunpack.c.0.s8 %v2370
    %v2372 = vlaneseq
    %v2373 = vshrl.u32 %v2372, 7
    %v2374 = vsub.s32 %v2371, %v2373
    %v2375 = vrot.slane %v2368, %v2374
    %v2376 = vcombine.low %v2375, %v831
    %v2377 = vcombine.low %v838, %v848
    %v2378 = vcombine.low %v855, %v865
    %v2379 = vcombine.low %v1625, %v1628
    %v2381 = vunpack.c.l.s4 1983009808
    %v2382 = vunpack.c.0.s8 %v2381
    %v2383 = vlaneseq
    %v2384 = vshrl.u32 %v2383, 7
    %v2385 = vsub.s32 %v2382, %v2384
    %v2386 = vrot.slane %v2379, %v2385
    %v2387 = vcombine.low %v872, %v2386
    %v2388 = vcombine.low %v1631, %v2341
    %v2389 = vcombine.low %v2344, %v2347
    %v2391 = vunpack.c.l.s4 1983009808
    %v2392 = vunpack.c.0.s8 %v2391
    %v2393 = vlaneseq
    %v2394 = vshrl.u32 %v2393, 7
    %v2395 = vsub.s32 %v2392, %v2394
    %v2396 = vrot.slane %v2388, %v2395
    %v2398 = vunpack.c.l.s4 1983009808
    %v2399 = vunpack.c.0.s8 %v2398
    %v2400 = vlaneseq
    %v2401 = vshrl.u32 %v2400, 7
    %v2402 = vsub.s32 %v2399, %v2401
    %v2403 = vrot.slane %v2389, %v2402
    %v2404 = vcombine.low %v2396, %v2403
    %v2414 = vpack.c.bf16 %v2349, %v2348
    %v2415 = vpack.c.bf16 %v2367, %v2350
    %v2416 = vpack.c.bf16 %v2377, %v2376
    %v2417 = vpack.c.bf16 %v2387, %v2378
    %v2418 = vpack.c.bf16 %v2404, %v2404
    %s2419 = scalar_lea.vmem %s1, 14
    %v2420 = vld [vmem:[%s2419] sm:$0x3]
    %v2422 = vsel %vm890, %v2414, 0
    %v2425 = vsel %vm890, %v2415, 0
    %v2428 = vsel %vm890, %v2416, 0
    %v2431 = vsel %vm890, %v2417, 0
    %v2434 = vsel %vm890, %v2418, 0
    %v2437 = vsel %vm906, %v2420, 0
    %2439 = vmatprep.subr.bf16.mxu0 0
    %2440 = vmatpush1.bf16.msra.mxu0 %v2437
    %2441 = vmatprep.subr.bf16.mxu0 0
    %2442 = vmatpush1.bf16.msra.mxu0 0
    %2443 = vmatprep.subr.bf16.mxu0 0
    %2444 = vmatpush1.bf16.msra.mxu0 0
    %2445 = vmatprep.subr.bf16.mxu0 0
    %2446 = vmatpush1.bf16.msra.mxu0 0
    %2447 = vmatprep.subr.bf16.mxu0 0
    %2448 = vmatpush1.bf16.msra.mxu0 0
    %2449 = vmatprep.subr.bf16.mxu0 0
    %2450 = vmatpush1.bf16.msra.mxu0 0
    %2451 = vmatprep.subr.bf16.mxu0 0
    %2452 = vmatpush1.bf16.msra.mxu0 0
    %2453 = vmatprep.subr.bf16.mxu0 0
    %2454 = vmatpush1.bf16.msra.mxu0 0
    %2455 = vmatprep.subr.bf16.mxu0 0
    %2456 = vmatpush1.bf16.msra.mxu0 0
    %2457 = vmatprep.subr.bf16.mxu0 0
    %2458 = vmatpush1.bf16.msra.mxu0 0
    %2459 = vmatprep.subr.bf16.mxu0 0
    %2460 = vmatpush1.bf16.msra.mxu0 0
    %2461 = vmatprep.subr.bf16.mxu0 0
    %2462 = vmatpush1.bf16.msra.mxu0 0
    %2463 = vmatprep.subr.bf16.mxu0 0
    %2464 = vmatpush1.bf16.msra.mxu0 0
    %2465 = vmatprep.subr.bf16.mxu0 0
    %2466 = vmatpush1.bf16.msra.mxu0 0
    %2467 = vmatprep.subr.bf16.mxu0 0
    %2468 = vmatpush1.bf16.msra.mxu0 0
    %2469 = vmatprep.subr.bf16.mxu0 0
    %2470 = vmatpush1.bf16.msra.mxu0 0
    %2471 = vmatprep.mubr.bf16.mxu0 0
    %2472 = vmatmul.mubr.bf16.gmra.mrb[0].mxu0 %v2422
    %v2473 = vpop.f32.mrb[0].mxu0
    %v2474 = vadd.f32 0.0, %v2473
    %v2475 = vpop.f32.mrb[0].mxu0
    %v2476 = vpop.f32.mrb[0].mxu0
    %v2477 = vadd.f32 0.0, %v2476
    %v2478 = vpop.f32.mrb[0].mxu0
    %2479 = vmatprep.mubr.bf16.mxu0 0
    %2480 = vmatmul.mubr.bf16.gmra.mrb[0].mxu0 %v2425
    %v2481 = vpop.f32.mrb[0].mxu0
    %v2482 = vadd.f32 0.0, %v2481
    %v2483 = vpop.f32.mrb[0].mxu0
    %v2484 = vpop.f32.mrb[0].mxu0
    %v2485 = vadd.f32 0.0, %v2484
    %v2486 = vpop.f32.mrb[0].mxu0
    %2487 = vmatprep.mubr.bf16.mxu0 0
    %2488 = vmatmul.mubr.bf16.gmra.mrb[0].mxu0 %v2428
    %v2489 = vpop.f32.mrb[0].mxu0
    %v2490 = vadd.f32 0.0, %v2489
    %v2491 = vpop.f32.mrb[0].mxu0
    %v2492 = vpop.f32.mrb[0].mxu0
    %v2493 = vadd.f32 0.0, %v2492
    %v2494 = vpop.f32.mrb[0].mxu0
    %2495 = vmatprep.mubr.bf16.mxu0 0
    %2496 = vmatmul.mubr.bf16.gmra.mrb[0].mxu0 %v2431
    %v2497 = vpop.f32.mrb[0].mxu0
    %v2498 = vadd.f32 0.0, %v2497
    %v2499 = vpop.f32.mrb[0].mxu0
    %v2500 = vpop.f32.mrb[0].mxu0
    %v2501 = vadd.f32 0.0, %v2500
    %v2502 = vpop.f32.mrb[0].mxu0
    %2503 = vmatprep.mubr.bf16.mxu0 0
    %2504 = vmatmul.mubr.bf16.gmra.mrb[0].mxu0 %v2434
    %v2505 = vpop.f32.mrb[0].mxu0
    %v2506 = vadd.f32 0.0, %v2505
    %v2507 = vpop.f32.mrb[0].mxu0
    %v2508 = vpop.f32.mrb[0].mxu0
    %v2509 = vpop.f32.mrb[0].mxu0
    %2510 = vdwg.mxu0
    %v2511 = vadd.f32 %v2317, %v2474
    %v2512 = vadd.f32 %v2318, %v2477
    %v2513 = vadd.f32 %v2319, %v2482
    %v2514 = vadd.f32 %v2320, %v2485
    %v2515 = vadd.f32 %v2321, %v2490
    %v2516 = vadd.f32 %v2322, %v2493
    %v2517 = vadd.f32 %v2323, %v2498
    %v2518 = vadd.f32 %v2324, %v2501
    %v2519 = vadd.f32 %v2325, %v2506
    %v2520 = vcombine.low %v1104, %v1114
    %v2521 = vcombine.low %v1121, %v1131
    %v2522 = vcombine.low %v1138, %v1148
    %v2523 = vcombine.low %v1610, %v2137
    %v2525 = vunpack.c.l.s4 1983009808
    %v2526 = vunpack.c.0.s8 %v2525
    %v2527 = vlaneseq
    %v2528 = vshrl.u32 %v2527, 7
    %v2529 = vsub.s32 %v2526, %v2528
    %v2530 = vrot.slane %v2523, %v2529
    %v2531 = vcombine.low %v1434, %v2530
    %v2532 = vcombine.low %v2136, %v2326
    %v2534 = vunpack.c.l.s4 1983009808
    %v2535 = vunpack.c.0.s8 %v2534
    %v2536 = vlaneseq
    %v2537 = vshrl.u32 %v2536, 7
    %v2538 = vsub.s32 %v2535, %v2537
    %v2539 = vrot.slane %v2532, %v2538
    %v2540 = vcombine.low %v2539, %v1182
    %v2541 = vcombine.low %v1189, %v1199
    %v2542 = vcombine.low %v1206, %v1216
    %v2543 = vcombine.low %v1223, %v1493
    %v2544 = vcombine.low %v1611, %v2153
    %v2545 = vcombine.low %v2152, %v2327
    %v2547 = vunpack.c.l.s4 1983009808
    %v2548 = vunpack.c.0.s8 %v2547
    %v2549 = vlaneseq
    %v2550 = vshrl.u32 %v2549, 7
    %v2551 = vsub.s32 %v2548, %v2550
    %v2552 = vrot.slane %v2544, %v2551
    %v2554 = vunpack.c.l.s4 1983009808
    %v2555 = vunpack.c.0.s8 %v2554
    %v2556 = vlaneseq
    %v2557 = vshrl.u32 %v2556, 7
    %v2558 = vsub.s32 %v2555, %v2557
    %v2559 = vrot.slane %v2545, %v2558
    %v2560 = vcombine.low %v2552, %v2559
    %v2570 = vpack.c.bf16 %v2521, %v2520
    %v2571 = vpack.c.bf16 %v2531, %v2522
    %v2572 = vpack.c.bf16 %v2541, %v2540
    %v2573 = vpack.c.bf16 %v2543, %v2542
    %v2574 = vpack.c.bf16 %v2560, %v2560
    %s2575 = scalar_lea.vmem %s1, 16
    %v2576 = vld [vmem:[%s2575] sm:$0x3]
    %v2578 = vsel %vm890, %v2570, 0
    %v2581 = vsel %vm890, %v2571, 0
    %v2584 = vsel %vm890, %v2572, 0
    %v2587 = vsel %vm890, %v2573, 0
    %v2590 = vsel %vm890, %v2574, 0
    %v2593 = vsel %vm906, %v2576, 0
    %2595 = vmatprep.subr.bf16.mxu0 0
    %2596 = vmatpush1.bf16.msra.mxu0 %v2593
    %2597 = vmatprep.subr.bf16.mxu0 0
    %2598 = vmatpush1.bf16.msra.mxu0 0
    %2599 = vmatprep.subr.bf16.mxu0 0
    %2600 = vmatpush1.bf16.msra.mxu0 0
    %2601 = vmatprep.subr.bf16.mxu0 0
    %2602 = vmatpush1.bf16.msra.mxu0 0
    %2603 = vmatprep.subr.bf16.mxu0 0
    %2604 = vmatpush1.bf16.msra.mxu0 0
    %2605 = vmatprep.subr.bf16.mxu0 0
    %2606 = vmatpush1.bf16.msra.mxu0 0
    %2607 = vmatprep.subr.bf16.mxu0 0
    %2608 = vmatpush1.bf16.msra.mxu0 0
    %2609 = vmatprep.subr.bf16.mxu0 0
    %2610 = vmatpush1.bf16.msra.mxu0 0
    %2611 = vmatprep.subr.bf16.mxu0 0
    %2612 = vmatpush1.bf16.msra.mxu0 0
    %2613 = vmatprep.subr.bf16.mxu0 0
    %2614 = vmatpush1.bf16.msra.mxu0 0
    %2615 = vmatprep.subr.bf16.mxu0 0
    %2616 = vmatpush1.bf16.msra.mxu0 0
    %2617 = vmatprep.subr.bf16.mxu0 0
    %2618 = vmatpush1.bf16.msra.mxu0 0
    %2619 = vmatprep.subr.bf16.mxu0 0
    %2620 = vmatpush1.bf16.msra.mxu0 0
    %2621 = vmatprep.subr.bf16.mxu0 0
    %2622 = vmatpush1.bf16.msra.mxu0 0
    %2623 = vmatprep.subr.bf16.mxu0 0
    %2624 = vmatpush1.bf16.msra.mxu0 0
    %2625 = vmatprep.subr.bf16.mxu0 0
    %2626 = vmatpush1.bf16.msra.mxu0 0
    %2627 = vmatprep.mubr.bf16.mxu0 0
    %2628 = vmatmul.mubr.bf16.gmra.mrb[0].mxu0 %v2578
    %v2629 = vpop.f32.mrb[0].mxu0
    %v2630 = vadd.f32 0.0, %v2629
    %v2631 = vpop.f32.mrb[0].mxu0
    %v2632 = vpop.f32.mrb[0].mxu0
    %v2633 = vadd.f32 0.0, %v2632
    %v2634 = vpop.f32.mrb[0].mxu0
    %2635 = vmatprep.mubr.bf16.mxu0 0
    %2636 = vmatmul.mubr.bf16.gmra.mrb[0].mxu0 %v2581
    %v2637 = vpop.f32.mrb[0].mxu0
    %v2638 = vadd.f32 0.0, %v2637
    %v2639 = vpop.f32.mrb[0].mxu0
    %v2640 = vpop.f32.mrb[0].mxu0
    %v2641 = vadd.f32 0.0, %v2640
    %v2642 = vpop.f32.mrb[0].mxu0
    %2643 = vmatprep.mubr.bf16.mxu0 0
    %2644 = vmatmul.mubr.bf16.gmra.mrb[0].mxu0 %v2584
    %v2645 = vpop.f32.mrb[0].mxu0
    %v2646 = vadd.f32 0.0, %v2645
    %v2647 = vpop.f32.mrb[0].mxu0
    %v2648 = vpop.f32.mrb[0].mxu0
    %v2649 = vadd.f32 0.0, %v2648
    %v2650 = vpop.f32.mrb[0].mxu0
    %2651 = vmatprep.mubr.bf16.mxu0 0
    %2652 = vmatmul.mubr.bf16.gmra.mrb[0].mxu0 %v2587
    %v2653 = vpop.f32.mrb[0].mxu0
    %v2654 = vadd.f32 0.0, %v2653
    %v2655 = vpop.f32.mrb[0].mxu0
    %v2656 = vpop.f32.mrb[0].mxu0
    %v2657 = vadd.f32 0.0, %v2656
    %v2658 = vpop.f32.mrb[0].mxu0
    %2659 = vmatprep.mubr.bf16.mxu0 0
    %2660 = vmatmul.mubr.bf16.gmra.mrb[0].mxu0 %v2590
    %v2661 = vpop.f32.mrb[0].mxu0
    %v2662 = vadd.f32 0.0, %v2661
    %v2663 = vpop.f32.mrb[0].mxu0
    %v2664 = vpop.f32.mrb[0].mxu0
    %v2665 = vpop.f32.mrb[0].mxu0
    %2666 = vdwg.mxu0
    %v2667 = vadd.f32 %v2511, %v2630
    %v2668 = vadd.f32 %v2512, %v2633
    %v2669 = vadd.f32 %v2513, %v2638
    %v2670 = vadd.f32 %v2514, %v2641
    %v2671 = vadd.f32 %v2515, %v2646
    %v2672 = vadd.f32 %v2516, %v2649
    %v2673 = vadd.f32 %v2517, %v2654
    %v2674 = vadd.f32 %v2518, %v2657
    %v2675 = vadd.f32 %v2519, %v2662
    %v2676 = vld [vmem:[%s2] sm:$0x1]
    %v2678 = vlaneseq
    %v2679 = vshrl.u32 %v2678, 7
    %v2680 = vsub.s32 0, %v2679
    %v2681 = vrot.slane %v2676, %v2680
    %v2683 = vadd.f32 %v2667, %v2681
    %v2684 = vadd.f32 %v2668, %v2681
    %v2685 = vadd.f32 %v2669, %v2681
    %v2686 = vadd.f32 %v2670, %v2681
    %v2687 = vadd.f32 %v2671, %v2681
    %v2688 = vadd.f32 %v2672, %v2681
    %v2689 = vadd.f32 %v2673, %v2681
    %v2690 = vadd.f32 %v2674, %v2681
    %v2691 = vadd.f32 %v2675, %v2681
    %v2692 = vmax.f32 %v2683, 0.0
    %v2693 = vmax.f32 %v2684, 0.0
    %v2694 = vmax.f32 %v2685, 0.0
    %v2695 = vmax.f32 %v2686, 0.0
    %v2696 = vmax.f32 %v2687, 0.0
    %v2697 = vmax.f32 %v2688, 0.0
    %v2698 = vmax.f32 %v2689, 0.0
    %v2699 = vmax.f32 %v2690, 0.0
    %v2700 = vmax.f32 %v2691, 0.0
    %vm2701 = vcmask 588800
    %v2703 = vsel %vm2701, 1.0, 0
    %2705 = vmatprep.subr.mxu0 0.0
    %2706 = vmatpush1.msra.mxu0 %v2692
    %2707 = vmatprep.subr.mxu0 0.0
    %2708 = vmatpush1.msra.mxu0 %v2693
    %2709 = vmatprep.subr.mxu0 0.0
    %2710 = vmatpush1.msra.mxu0 %v2694
    %2711 = vmatprep.subr.mxu0 0.0
    %2712 = vmatpush1.msra.mxu0 %v2695
    %2713 = vmatprep.subr.mxu0 0.0
    %2714 = vmatpush1.msra.mxu0 %v2696
    %2715 = vmatprep.subr.mxu0 0.0
    %2716 = vmatpush1.msra.mxu0 %v2697
    %2717 = vmatprep.subr.mxu0 0.0
    %2718 = vmatpush1.msra.mxu0 %v2698
    %2719 = vmatprep.subr.mxu0 0.0
    %2720 = vmatpush1.msra.mxu0 %v2699
    %2721 = vmatprep.subr.mxu0 0.0
    %2722 = vmatpush1.msra.mxu0 %v2700
    %2723 = vmatprep.subr.mxu0 0.0
    %2724 = vmatpush1.msra.mxu0 0.0
    %2725 = vmatprep.subr.mxu0 0.0
    %2726 = vmatpush1.msra.mxu0 0.0
    %2727 = vmatprep.subr.mxu0 0.0
    %2728 = vmatpush1.msra.mxu0 0.0
    %2729 = vmatprep.subr.mxu0 0.0
    %2730 = vmatpush1.msra.mxu0 0.0
    %2731 = vmatprep.subr.mxu0 0.0
    %2732 = vmatpush1.msra.mxu0 0.0
    %2733 = vmatprep.subr.mxu0 0.0
    %2734 = vmatpush1.msra.mxu0 0.0
    %2735 = vmatprep.subr.mxu0 0.0
    %2736 = vmatpush1.msra.mxu0 0.0
    %2737 = vmatprep.subr.mxu0 0.0
    %2738 = vmatpush1.msra.mxu0 0.0
    %2739 = vmatprep.subr.mxu0 0.0
    %2740 = vmatpush1.msra.mxu0 0.0
    %2741 = vmatprep.subr.mxu0 0.0
    %2742 = vmatpush1.msra.mxu0 0.0
    %2743 = vmatprep.subr.mxu0 0.0
    %2744 = vmatpush1.msra.mxu0 0.0
    %2745 = vmatprep.subr.mxu0 0.0
    %2746 = vmatpush1.msra.mxu0 0.0
    %2747 = vmatprep.subr.mxu0 0.0
    %2748 = vmatpush1.msra.mxu0 0.0
    %2749 = vmatprep.subr.mxu0 0.0
    %2750 = vmatpush1.msra.mxu0 0.0
    %2751 = vmatprep.subr.mxu0 0.0
    %2752 = vmatpush1.msra.mxu0 0.0
    %2753 = vmatprep.subr.mxu0 0.0
    %2754 = vmatpush1.msra.mxu0 0.0
    %2755 = vmatprep.subr.mxu0 0.0
    %2756 = vmatpush1.msra.mxu0 0.0
    %2757 = vmatprep.subr.mxu0 0.0
    %2758 = vmatpush1.msra.mxu0 0.0
    %2759 = vmatprep.subr.mxu0 0.0
    %2760 = vmatpush1.msra.mxu0 0.0
    %2761 = vmatprep.subr.mxu0 0.0
    %2762 = vmatpush1.msra.mxu0 0.0
    %2763 = vmatprep.subr.mxu0 0.0
    %2764 = vmatpush1.msra.mxu0 0.0
    %2765 = vmatprep.subr.mxu0 0.0
    %2766 = vmatpush1.msra.mxu0 0.0
    %2767 = vmatprep.subr.mxu0 0.0
    %2768 = vmatpush1.msra.mxu0 0.0
    %2769 = vmatprep.mubr.f32.mxu0 0.0
    %2770 = vmatmul.mubr.f32.gmra.mrb[0].mxu0 %v2703
    %v2771 = vpop.f32.mrb[0].mxu0
    %v2772 = vadd.f32 0.0, %v2771
    %v2773 = vpop.f32.mrb[0].mxu0
    %2774 = vdwg.mxu0
    %v2775 = vmul.f32 %v2692, %v2692
    %v2776 = vmul.f32 %v2693, %v2693
    %v2777 = vmul.f32 %v2694, %v2694
    %v2778 = vmul.f32 %v2695, %v2695
    %v2779 = vmul.f32 %v2696, %v2696
    %v2780 = vmul.f32 %v2697, %v2697
    %v2781 = vmul.f32 %v2698, %v2698
    %v2782 = vmul.f32 %v2699, %v2699
    %v2783 = vmul.f32 %v2700, %v2700
    %2784 = vmatprep.subr.mxu0 0.0
    %2785 = vmatpush1.msra.mxu0 %v2775
    %2786 = vmatprep.subr.mxu0 0.0
    %2787 = vmatpush1.msra.mxu0 %v2776
    %2788 = vmatprep.subr.mxu0 0.0
    %2789 = vmatpush1.msra.mxu0 %v2777
    %2790 = vmatprep.subr.mxu0 0.0
    %2791 = vmatpush1.msra.mxu0 %v2778
    %2792 = vmatprep.subr.mxu0 0.0
    %2793 = vmatpush1.msra.mxu0 %v2779
    %2794 = vmatprep.subr.mxu0 0.0
    %2795 = vmatpush1.msra.mxu0 %v2780
    %2796 = vmatprep.subr.mxu0 0.0
    %2797 = vmatpush1.msra.mxu0 %v2781
    %2798 = vmatprep.subr.mxu0 0.0
    %2799 = vmatpush1.msra.mxu0 %v2782
    %2800 = vmatprep.subr.mxu0 0.0
    %2801 = vmatpush1.msra.mxu0 %v2783
    %2802 = vmatprep.subr.mxu0 0.0
    %2803 = vmatpush1.msra.mxu0 0.0
    %2804 = vmatprep.subr.mxu0 0.0
    %2805 = vmatpush1.msra.mxu0 0.0
    %2806 = vmatprep.subr.mxu0 0.0
    %2807 = vmatpush1.msra.mxu0 0.0
    %2808 = vmatprep.subr.mxu0 0.0
    %2809 = vmatpush1.msra.mxu0 0.0
    %2810 = vmatprep.subr.mxu0 0.0
    %2811 = vmatpush1.msra.mxu0 0.0
    %2812 = vmatprep.subr.mxu0 0.0
    %2813 = vmatpush1.msra.mxu0 0.0
    %2814 = vmatprep.subr.mxu0 0.0
    %2815 = vmatpush1.msra.mxu0 0.0
    %2816 = vmatprep.subr.mxu0 0.0
    %2817 = vmatpush1.msra.mxu0 0.0
    %2818 = vmatprep.subr.mxu0 0.0
    %2819 = vmatpush1.msra.mxu0 0.0
    %2820 = vmatprep.subr.mxu0 0.0
    %2821 = vmatpush1.msra.mxu0 0.0
    %2822 = vmatprep.subr.mxu0 0.0
    %2823 = vmatpush1.msra.mxu0 0.0
    %2824 = vmatprep.subr.mxu0 0.0
    %2825 = vmatpush1.msra.mxu0 0.0
    %2826 = vmatprep.subr.mxu0 0.0
    %2827 = vmatpush1.msra.mxu0 0.0
    %2828 = vmatprep.subr.mxu0 0.0
    %2829 = vmatpush1.msra.mxu0 0.0
    %2830 = vmatprep.subr.mxu0 0.0
    %2831 = vmatpush1.msra.mxu0 0.0
    %2832 = vmatprep.subr.mxu0 0.0
    %2833 = vmatpush1.msra.mxu0 0.0
    %2834 = vmatprep.subr.mxu0 0.0
    %2835 = vmatpush1.msra.mxu0 0.0
    %2836 = vmatprep.subr.mxu0 0.0
    %2837 = vmatpush1.msra.mxu0 0.0
    %2838 = vmatprep.subr.mxu0 0.0
    %2839 = vmatpush1.msra.mxu0 0.0
    %2840 = vmatprep.subr.mxu0 0.0
    %2841 = vmatpush1.msra.mxu0 0.0
    %2842 = vmatprep.subr.mxu0 0.0
    %2843 = vmatpush1.msra.mxu0 0.0
    %2844 = vmatprep.subr.mxu0 0.0
    %2845 = vmatpush1.msra.mxu0 0.0
    %2846 = vmatprep.subr.mxu0 0.0
    %2847 = vmatpush1.msra.mxu0 0.0
    %2848 = vmatprep.mubr.f32.mxu0 0.0
    %2849 = vmatmul.mubr.f32.gmra.mrb[0].mxu0 %v2703
    %v2850 = vpop.f32.mrb[0].mxu0
    %v2851 = vadd.f32 0.0, %v2850
    %v2852 = vpop.f32.mrb[0].mxu0
    %2853 = vdwg.mxu0
    %v2854 = vmul.f32 %v2772, 0.013888889
    %v2855 = vmul.f32 %v2851, 0.013888889
    %v2856 = vmul.f32 %v2854, %v2854
    %v2857 = vsub.f32 %v2855, %v2856
    %v2858 = vmax.f32 %v2857, 0.0
    %v2859 = vld [vmem:[%s3] sm:$0x1]
    %v2860 = vadd.f32 %v2858, 1e-05
    %v2861 = vrsqrt.pop %v2860
    %v2862 = vmul.f32 %v2859, %v2861
    %v2863 = vld [vmem:[%s4] sm:$0x1]
    %v2864 = vmul.f32 %v2854, %v2862
    %v2865 = vsub.f32 %v2863, %v2864
    %v2867 = vlaneseq
    %v2868 = vshrl.u32 %v2867, 7
    %v2869 = vsub.s32 0, %v2868
    %v2870 = vrot.slane %v2862, %v2869
    %v2872 = vmul.f32 %v2692, %v2870
    %v2873 = vmul.f32 %v2693, %v2870
    %v2874 = vmul.f32 %v2694, %v2870
    %v2875 = vmul.f32 %v2695, %v2870
    %v2876 = vmul.f32 %v2696, %v2870
    %v2877 = vmul.f32 %v2697, %v2870
    %v2878 = vmul.f32 %v2698, %v2870
    %v2879 = vmul.f32 %v2699, %v2870
    %v2880 = vmul.f32 %v2700, %v2870
    %v2882 = vlaneseq
    %v2883 = vshrl.u32 %v2882, 7
    %v2884 = vsub.s32 0, %v2883
    %v2885 = vrot.slane %v2865, %v2884
    %v2887 = vadd.f32 %v2872, %v2885
    %v2888 = vadd.f32 %v2873, %v2885
    %v2889 = vadd.f32 %v2874, %v2885
    %v2890 = vadd.f32 %v2875, %v2885
    %v2891 = vadd.f32 %v2876, %v2885
    %v2892 = vadd.f32 %v2877, %v2885
    %v2893 = vadd.f32 %v2878, %v2885
    %v2894 = vadd.f32 %v2879, %v2885
    %v2895 = vadd.f32 %v2880, %v2885
    %v2905 = vcombine.high %v2887, %v2887
    %v2907 = vunpack.c.l.s4 1983009808
    %v2908 = vunpack.c.0.s8 %v2907
    %v2909 = vlaneseq
    %v2910 = vshrl.u32 %v2909, 7
    %v2911 = vsub.s32 %v2908, %v2910
    %v2912 = vrot.slane %v2887, %v2911
    %v2914 = vunpack.c.l.s4 1983009808
    %v2915 = vunpack.c.0.s8 %v2914
    %v2916 = vlaneseq
    %v2917 = vshrl.u32 %v2916, 7
    %v2918 = vsub.s32 %v2915, %v2917
    %v2919 = vrot.slane %v2905, %v2918
    %v2920 = vcombine.high %v2912, %v2912
    %v2921 = vcombine.high %v2919, %v2919
    %v2922 = vcombine.high %v2888, %v2888
    %v2924 = vunpack.c.l.s4 1983009808
    %v2925 = vunpack.c.0.s8 %v2924
    %v2926 = vlaneseq
    %v2927 = vshrl.u32 %v2926, 7
    %v2928 = vsub.s32 %v2925, %v2927
    %v2929 = vrot.slane %v2888, %v2928
    %v2931 = vunpack.c.l.s4 1983009808
    %v2932 = vunpack.c.0.s8 %v2931
    %v2933 = vlaneseq
    %v2934 = vshrl.u32 %v2933, 7
    %v2935 = vsub.s32 %v2932, %v2934
    %v2936 = vrot.slane %v2922, %v2935
    %v2937 = vcombine.high %v2929, %v2929
    %v2938 = vcombine.high %v2936, %v2936
    %v2939 = vcombine.high %v2889, %v2889
    %v2941 = vunpack.c.l.s4 1983009808
    %v2942 = vunpack.c.0.s8 %v2941
    %v2943 = vlaneseq
    %v2944 = vshrl.u32 %v2943, 7
    %v2945 = vsub.s32 %v2942, %v2944
    %v2946 = vrot.slane %v2889, %v2945
    %v2948 = vunpack.c.l.s4 1983009808
    %v2949 = vunpack.c.0.s8 %v2948
    %v2950 = vlaneseq
    %v2951 = vshrl.u32 %v2950, 7
    %v2952 = vsub.s32 %v2949, %v2951
    %v2953 = vrot.slane %v2939, %v2952
    %v2954 = vcombine.high %v2946, %v2946
    %v2955 = vcombine.high %v2953, %v2953
    %v2956 = vcombine.high %v2890, %v2890
    %v2958 = vunpack.c.l.s4 1983009808
    %v2959 = vunpack.c.0.s8 %v2958
    %v2960 = vlaneseq
    %v2961 = vshrl.u32 %v2960, 7
    %v2962 = vsub.s32 %v2959, %v2961
    %v2963 = vrot.slane %v2890, %v2962
    %v2965 = vunpack.c.l.s4 1983009808
    %v2966 = vunpack.c.0.s8 %v2965
    %v2967 = vlaneseq
    %v2968 = vshrl.u32 %v2967, 7
    %v2969 = vsub.s32 %v2966, %v2968
    %v2970 = vrot.slane %v2956, %v2969
    %v2971 = vcombine.high %v2963, %v2963
    %v2972 = vcombine.high %v2970, %v2970
    %v2973 = vcombine.high %v2891, %v2891
    %v2975 = vunpack.c.l.s4 1983009808
    %v2976 = vunpack.c.0.s8 %v2975
    %v2977 = vlaneseq
    %v2978 = vshrl.u32 %v2977, 7
    %v2979 = vsub.s32 %v2976, %v2978
    %v2980 = vrot.slane %v2891, %v2979
    %v2982 = vunpack.c.l.s4 1983009808
    %v2983 = vunpack.c.0.s8 %v2982
    %v2984 = vlaneseq
    %v2985 = vshrl.u32 %v2984, 7
    %v2986 = vsub.s32 %v2983, %v2985
    %v2987 = vrot.slane %v2973, %v2986
    %v2988 = vcombine.high %v2980, %v2980
    %v2989 = vcombine.high %v2987, %v2987
    %v2990 = vcombine.high %v2892, %v2892
    %v2992 = vunpack.c.l.s4 1983009808
    %v2993 = vunpack.c.0.s8 %v2992
    %v2994 = vlaneseq
    %v2995 = vshrl.u32 %v2994, 7
    %v2996 = vsub.s32 %v2993, %v2995
    %v2997 = vrot.slane %v2892, %v2996
    %v2999 = vunpack.c.l.s4 1983009808
    %v3000 = vunpack.c.0.s8 %v2999
    %v3001 = vlaneseq
    %v3002 = vshrl.u32 %v3001, 7
    %v3003 = vsub.s32 %v3000, %v3002
    %v3004 = vrot.slane %v2990, %v3003
    %v3005 = vcombine.high %v2997, %v2997
    %v3006 = vcombine.high %v3004, %v3004
    %v3007 = vcombine.high %v2893, %v2893
    %v3009 = vunpack.c.l.s4 1983009808
    %v3010 = vunpack.c.0.s8 %v3009
    %v3011 = vlaneseq
    %v3012 = vshrl.u32 %v3011, 7
    %v3013 = vsub.s32 %v3010, %v3012
    %v3014 = vrot.slane %v2893, %v3013
    %v3016 = vunpack.c.l.s4 1983009808
    %v3017 = vunpack.c.0.s8 %v3016
    %v3018 = vlaneseq
    %v3019 = vshrl.u32 %v3018, 7
    %v3020 = vsub.s32 %v3017, %v3019
    %v3021 = vrot.slane %v3007, %v3020
    %v3022 = vcombine.high %v3014, %v3014
    %v3023 = vcombine.high %v3021, %v3021
    %v3024 = vcombine.high %v2894, %v2894
    %v3026 = vunpack.c.l.s4 1983009808
    %v3027 = vunpack.c.0.s8 %v3026
    %v3028 = vlaneseq
    %v3029 = vshrl.u32 %v3028, 7
    %v3030 = vsub.s32 %v3027, %v3029
    %v3031 = vrot.slane %v2894, %v3030
    %v3033 = vunpack.c.l.s4 1983009808
    %v3034 = vunpack.c.0.s8 %v3033
    %v3035 = vlaneseq
    %v3036 = vshrl.u32 %v3035, 7
    %v3037 = vsub.s32 %v3034, %v3036
    %v3038 = vrot.slane %v3024, %v3037
    %v3039 = vcombine.high %v3031, %v3031
    %v3040 = vcombine.high %v3038, %v3038
    %v3041 = vcombine.high %v2895, %v2895
    %v3043 = vunpack.c.l.s4 1983009808
    %v3044 = vunpack.c.0.s8 %v3043
    %v3045 = vlaneseq
    %v3046 = vshrl.u32 %v3045, 7
    %v3047 = vsub.s32 %v3044, %v3046
    %v3048 = vrot.slane %v2895, %v3047
    %v3050 = vunpack.c.l.s4 1983009808
    %v3051 = vunpack.c.0.s8 %v3050
    %v3052 = vlaneseq
    %v3053 = vshrl.u32 %v3052, 7
    %v3054 = vsub.s32 %v3051, %v3053
    %v3055 = vrot.slane %v3041, %v3054
    %v3056 = vcombine.high %v3048, %v3048
    %v3057 = vcombine.high %v3055, %v3055
    %v3058 = vcombine.low %v2912, %v2920
    %v3059 = vcombine.low %v2921, %v2929
    %v3061 = vunpack.c.l.s4 1983009808
    %v3062 = vunpack.c.0.s8 %v3061
    %v3063 = vlaneseq
    %v3064 = vshrl.u32 %v3063, 7
    %v3065 = vsub.s32 %v3062, %v3064
    %v3066 = vrot.slane %v3058, %v3065
    %v3068 = vunpack.c.l.s4 1983009808
    %v3069 = vunpack.c.0.s8 %v3068
    %v3070 = vlaneseq
    %v3071 = vshrl.u32 %v3070, 7
    %v3072 = vsub.s32 %v3069, %v3071
    %v3073 = vrot.slane %v3059, %v3072
    %v3074 = vcombine.low %v3066, %v3073
    %v3075 = vcombine.low %v2936, %v2938
    %v3076 = vcombine.low %v2954, %v2953
    %v3078 = vunpack.c.l.s4 1983009808
    %v3079 = vunpack.c.0.s8 %v3078
    %v3080 = vlaneseq
    %v3081 = vshrl.u32 %v3080, 7
    %v3082 = vsub.s32 %v3079, %v3081
    %v3083 = vrot.slane %v3075, %v3082
    %v3085 = vunpack.c.l.s4 1983009808
    %v3086 = vunpack.c.0.s8 %v3085
    %v3087 = vlaneseq
    %v3088 = vshrl.u32 %v3087, 7
    %v3089 = vsub.s32 %v3086, %v3088
    %v3090 = vrot.slane %v3076, %v3089
    %v3091 = vcombine.low %v3083, %v3090
    %v3092 = vcombine.low %v2987, %v2989
    %v3093 = vcombine.low %v3005, %v3004
    %v3095 = vunpack.c.l.s4 1983009808
    %v3096 = vunpack.c.0.s8 %v3095
    %v3097 = vlaneseq
    %v3098 = vshrl.u32 %v3097, 7
    %v3099 = vsub.s32 %v3096, %v3098
    %v3100 = vrot.slane %v3092, %v3099
    %v3102 = vunpack.c.l.s4 1983009808
    %v3103 = vunpack.c.0.s8 %v3102
    %v3104 = vlaneseq
    %v3105 = vshrl.u32 %v3104, 7
    %v3106 = vsub.s32 %v3103, %v3105
    %v3107 = vrot.slane %v3093, %v3106
    %v3108 = vcombine.low %v3100, %v3107
    %v3109 = vcombine.low %v3014, %v3022
    %v3110 = vcombine.low %v3023, %v3031
    %v3112 = vunpack.c.l.s4 1983009808
    %v3113 = vunpack.c.0.s8 %v3112
    %v3114 = vlaneseq
    %v3115 = vshrl.u32 %v3114, 7
    %v3116 = vsub.s32 %v3113, %v3115
    %v3117 = vrot.slane %v3109, %v3116
    %v3119 = vunpack.c.l.s4 1983009808
    %v3120 = vunpack.c.0.s8 %v3119
    %v3121 = vlaneseq
    %v3122 = vshrl.u32 %v3121, 7
    %v3123 = vsub.s32 %v3120, %v3122
    %v3124 = vrot.slane %v3110, %v3123
    %v3125 = vcombine.low %v3117, %v3124
    %v3130 = vpack.c.bf16 %v3091, %v3074
    %v3131 = vpack.c.bf16 %v3125, %v3108
    %v3132 = vld [vmem:[%s5] sm:$0xf]
    %v3133 = vld [vmem:[%s5 + $0x4] sm:$0xf]
    %v3134 = vld [vmem:[%s5 + $0x8] sm:$0xf]
    %v3135 = vld [vmem:[%s5 + $0xc] sm:$0xf]
    %v3136 = vld [vmem:[%s5 + $0x10] sm:$0xf]
    %v3137 = vld [vmem:[%s5 + $0x14] sm:$0xf]
    %v3138 = vld [vmem:[%s5 + $0x18] sm:$0xf]
    %v3139 = vld [vmem:[%s5 + $0x1c] sm:$0xf]
    %v3140 = vld [vmem:[%s5 + $0x20] sm:$0xf]
    %v3141 = vld [vmem:[%s5 + $0x24] sm:$0xf]
    %v3142 = vld [vmem:[%s5 + $0x28] sm:$0xf]
    %v3143 = vld [vmem:[%s5 + $0x2c] sm:$0xf]
    %v3144 = vld [vmem:[%s5 + $0x30] sm:$0xf]
    %v3145 = vld [vmem:[%s5 + $0x34] sm:$0xf]
    %v3146 = vld [vmem:[%s5 + $0x38] sm:$0xf]
    %v3147 = vld [vmem:[%s5 + $0x3c] sm:$0xf]
    %v3148 = vrot.slane %v2912, 7
    %v3149 = vrot.slane %v3148, 2
    %v3150 = vrot.slane %v2920, 7
    %v3151 = vsel %vm600, %v3149, %v3150
    %v3152 = vrot.slane %v3150, 2
    %v3153 = vrot.slane %v2919, 7
    %v3154 = vsel %vm600, %v3152, %v3153
    %v3155 = vrot.slane %v2921, 7
    %v3156 = vrot.slane %v3155, 2
    %v3157 = vrot.slane %v2929, 7
    %v3158 = vsel %vm600, %v3156, %v3157
    %v3159 = vrot.slane %v3157, 2
    %v3160 = vrot.slane %v2937, 7
    %v3161 = vsel %vm600, %v3159, %v3160
    %v3162 = vrot.slane %v2936, 7
    %v3163 = vrot.slane %v3162, 2
    %v3164 = vrot.slane %v2938, 7
    %v3165 = vsel %vm600, %v3163, %v3164
    %v3166 = vrot.slane %v3164, 2
    %v3167 = vrot.slane %v2946, 7
    %v3168 = vsel %vm600, %v3166, %v3167
    %v3169 = vrot.slane %v2954, 7
    %v3170 = vrot.slane %v3169, 2
    %v3171 = vrot.slane %v2953, 7
    %v3172 = vsel %vm600, %v3170, %v3171
    %v3173 = vrot.slane %v3171, 2
    %v3174 = vrot.slane %v2955, 7
    %v3175 = vsel %vm600, %v3173, %v3174
    %v3176 = vrot.slane %v2987, 7
    %v3177 = vrot.slane %v3176, 2
    %v3178 = vrot.slane %v2989, 7
    %v3179 = vsel %vm600, %v3177, %v3178
    %v3180 = vrot.slane %v3178, 2
    %v3181 = vrot.slane %v2997, 7
    %v3182 = vsel %vm600, %v3180, %v3181
    %v3183 = vrot.slane %v3005, 7
    %v3184 = vrot.slane %v3183, 2
    %v3185 = vrot.slane %v3004, 7
    %v3186 = vsel %vm600, %v3184, %v3185
    %v3187 = vrot.slane %v3185, 2
    %v3188 = vrot.slane %v3006, 7
    %v3189 = vsel %vm600, %v3187, %v3188
    %v3190 = vrot.slane %v3014, 7
    %v3191 = vrot.slane %v3190, 2
    %v3192 = vrot.slane %v3022, 7
    %v3193 = vsel %vm600, %v3191, %v3192
    %v3194 = vrot.slane %v3192, 2
    %v3195 = vrot.slane %v3021, 7
    %v3196 = vsel %vm600, %v3194, %v3195
    %v3197 = vrot.slane %v3023, 7
    %v3198 = vrot.slane %v3197, 2
    %v3199 = vrot.slane %v3031, 7
    %v3200 = vsel %vm600, %v3198, %v3199
    %v3201 = vrot.slane %v3199, 2
    %v3202 = vrot.slane %v3039, 7
    %v3203 = vsel %vm600, %v3201, %v3202
    %v3204 = vcombine.low %v3151, %v3154
    %v3205 = vcombine.low %v3158, %v3161
    %v3207 = vunpack.c.l.s4 1983009808
    %v3208 = vunpack.c.0.s8 %v3207
    %v3209 = vlaneseq
    %v3210 = vshrl.u32 %v3209, 7
    %v3211 = vsub.s32 %v3208, %v3210
    %v3212 = vrot.slane %v3204, %v3211
    %v3214 = vunpack.c.l.s4 1983009808
    %v3215 = vunpack.c.0.s8 %v3214
    %v3216 = vlaneseq
    %v3217 = vshrl.u32 %v3216, 7
    %v3218 = vsub.s32 %v3215, %v3217
    %v3219 = vrot.slane %v3205, %v3218
    %v3220 = vcombine.low %v3212, %v3219
    %v3221 = vcombine.low %v3165, %v3168
    %v3222 = vcombine.low %v3172, %v3175
    %v3224 = vunpack.c.l.s4 1983009808
    %v3225 = vunpack.c.0.s8 %v3224
    %v3226 = vlaneseq
    %v3227 = vshrl.u32 %v3226, 7
    %v3228 = vsub.s32 %v3225, %v3227
    %v3229 = vrot.slane %v3221, %v3228
    %v3231 = vunpack.c.l.s4 1983009808
    %v3232 = vunpack.c.0.s8 %v3231
    %v3233 = vlaneseq
    %v3234 = vshrl.u32 %v3233, 7
    %v3235 = vsub.s32 %v3232, %v3234
    %v3236 = vrot.slane %v3222, %v3235
    %v3237 = vcombine.low %v3229, %v3236
    %v3238 = vcombine.low %v3179, %v3182
    %v3239 = vcombine.low %v3186, %v3189
    %v3241 = vunpack.c.l.s4 1983009808
    %v3242 = vunpack.c.0.s8 %v3241
    %v3243 = vlaneseq
    %v3244 = vshrl.u32 %v3243, 7
    %v3245 = vsub.s32 %v3242, %v3244
    %v3246 = vrot.slane %v3238, %v3245
    %v3248 = vunpack.c.l.s4 1983009808
    %v3249 = vunpack.c.0.s8 %v3248
    %v3250 = vlaneseq
    %v3251 = vshrl.u32 %v3250, 7
    %v3252 = vsub.s32 %v3249, %v3251
    %v3253 = vrot.slane %v3239, %v3252
    %v3254 = vcombine.low %v3246, %v3253
    %v3255 = vcombine.low %v3193, %v3196
    %v3256 = vcombine.low %v3200, %v3203
    %v3258 = vunpack.c.l.s4 1983009808
    %v3259 = vunpack.c.0.s8 %v3258
    %v3260 = vlaneseq
    %v3261 = vshrl.u32 %v3260, 7
    %v3262 = vsub.s32 %v3259, %v3261
    %v3263 = vrot.slane %v3255, %v3262
    %v3265 = vunpack.c.l.s4 1983009808
    %v3266 = vunpack.c.0.s8 %v3265
    %v3267 = vlaneseq
    %v3268 = vshrl.u32 %v3267, 7
    %v3269 = vsub.s32 %v3266, %v3268
    %v3270 = vrot.slane %v3256, %v3269
    %v3271 = vcombine.low %v3263, %v3270
    %v3276 = vpack.c.bf16 %v3237, %v3220
    %v3277 = vpack.c.bf16 %v3271, %v3254
    %s3278 = scalar_lea.vmem %s5, 64
    %v3279 = vld [vmem:[%s3278] sm:$0xf]
    %v3280 = vld [vmem:[%s3278 + $0x4] sm:$0xf]
    %v3281 = vld [vmem:[%s3278 + $0x8] sm:$0xf]
    %v3282 = vld [vmem:[%s3278 + $0xc] sm:$0xf]
    %v3283 = vld [vmem:[%s3278 + $0x10] sm:$0xf]
    %v3284 = vld [vmem:[%s3278 + $0x14] sm:$0xf]
    %v3285 = vld [vmem:[%s3278 + $0x18] sm:$0xf]
    %v3286 = vld [vmem:[%s3278 + $0x1c] sm:$0xf]
    %v3287 = vld [vmem:[%s3278 + $0x20] sm:$0xf]
    %v3288 = vld [vmem:[%s3278 + $0x24] sm:$0xf]
    %v3289 = vld [vmem:[%s3278 + $0x28] sm:$0xf]
    %v3290 = vld [vmem:[%s3278 + $0x2c] sm:$0xf]
    %v3291 = vld [vmem:[%s3278 + $0x30] sm:$0xf]
    %v3292 = vld [vmem:[%s3278 + $0x34] sm:$0xf]
    %v3293 = vld [vmem:[%s3278 + $0x38] sm:$0xf]
    %v3294 = vld [vmem:[%s3278 + $0x3c] sm:$0xf]
    %v3311 = vunpack.c.l.b16 %v3279
    %v3312 = vunpack.c.l.b16 %v3280
    %v3313 = vunpack.c.l.b16 %v3281
    %v3314 = vunpack.c.l.b16 %v3282
    %v3315 = vunpack.c.l.b16 %v3283
    %v3316 = vunpack.c.l.b16 %v3284
    %v3317 = vunpack.c.l.b16 %v3285
    %v3318 = vunpack.c.l.b16 %v3286
    %v3319 = vunpack.c.l.b16 %v3287
    %v3320 = vunpack.c.l.b16 %v3288
    %v3321 = vunpack.c.l.b16 %v3289
    %v3322 = vunpack.c.l.b16 %v3290
    %v3323 = vunpack.c.l.b16 %v3291
    %v3324 = vunpack.c.l.b16 %v3292
    %v3325 = vunpack.c.l.b16 %v3293
    %v3326 = vunpack.c.l.b16 %v3294
    %v3327 = vpack.c.b16 %v3312, %v3311
    %v3328 = vpack.c.b16 %v3314, %v3313
    %v3329 = vpack.c.b16 %v3316, %v3315
    %v3330 = vpack.c.b16 %v3318, %v3317
    %v3331 = vpack.c.b16 %v3320, %v3319
    %v3332 = vpack.c.b16 %v3322, %v3321
    %v3333 = vpack.c.b16 %v3324, %v3323
    %v3334 = vpack.c.b16 %v3326, %v3325
    %3343 = vmatprep.subr.bf16.mxu0 0
    %3344 = vmatpush1.bf16.msra.mxu0 %v3327
    %3345 = vmatprep.subr.bf16.mxu0 0
    %3346 = vmatpush1.bf16.msra.mxu0 %v3328
    %3347 = vmatprep.subr.bf16.mxu0 0
    %3348 = vmatpush1.bf16.msra.mxu0 %v3329
    %3349 = vmatprep.subr.bf16.mxu0 0
    %3350 = vmatpush1.bf16.msra.mxu0 %v3330
    %3351 = vmatprep.subr.bf16.mxu0 0
    %3352 = vmatpush1.bf16.msra.mxu0 %v3331
    %3353 = vmatprep.subr.bf16.mxu0 0
    %3354 = vmatpush1.bf16.msra.mxu0 %v3332
    %3355 = vmatprep.subr.bf16.mxu0 0
    %3356 = vmatpush1.bf16.msra.mxu0 %v3333
    %3357 = vmatprep.subr.bf16.mxu0 0
    %3358 = vmatpush1.bf16.msra.mxu0 %v3334
    %3359 = vmatprep.subr.bf16.mxu0 0
    %3360 = vmatpush1.bf16.msra.mxu0 0
    %3361 = vmatprep.subr.bf16.mxu0 0
    %3362 = vmatpush1.bf16.msra.mxu0 0
    %3363 = vmatprep.subr.bf16.mxu0 0
    %3364 = vmatpush1.bf16.msra.mxu0 0
    %3365 = vmatprep.subr.bf16.mxu0 0
    %3366 = vmatpush1.bf16.msra.mxu0 0
    %3367 = vmatprep.subr.bf16.mxu0 0
    %3368 = vmatpush1.bf16.msra.mxu0 0
    %3369 = vmatprep.subr.bf16.mxu0 0
    %3370 = vmatpush1.bf16.msra.mxu0 0
    %3371 = vmatprep.subr.bf16.mxu0 0
    %3372 = vmatpush1.bf16.msra.mxu0 0
    %3373 = vmatprep.subr.bf16.mxu0 0
    %3374 = vmatpush1.bf16.msra.mxu0 0
    %3375 = vmatprep.mubr.bf16.mxu0 0
    %3376 = vmatmul.mubr.bf16.gmra.mrb[0].mxu0 %v3276
    %v3377 = vpop.f32.mrb[0].mxu0
    %v3378 = vadd.f32 0.0, %v3377
    %v3379 = vpop.f32.mrb[0].mxu0
    %v3380 = vpop.f32.mrb[0].mxu0
    %v3381 = vadd.f32 0.0, %v3380
    %v3382 = vpop.f32.mrb[0].mxu0
    %3383 = vmatprep.mubr.bf16.mxu0 0
    %3384 = vmatmul.mubr.bf16.gmra.mrb[0].mxu0 %v3277
    %v3385 = vpop.f32.mrb[0].mxu0
    %v3386 = vadd.f32 0.0, %v3385
    %v3387 = vpop.f32.mrb[0].mxu0
    %v3388 = vpop.f32.mrb[0].mxu0
    %v3389 = vadd.f32 0.0, %v3388
    %v3390 = vpop.f32.mrb[0].mxu0
    %3391 = vdwg.mxu0
    %v3408 = vunpack.c.l.b16 %v3132
    %v3409 = vunpack.c.l.b16 %v3133
    %v3410 = vunpack.c.l.b16 %v3134
    %v3411 = vunpack.c.l.b16 %v3135
    %v3412 = vunpack.c.l.b16 %v3136
    %v3413 = vunpack.c.l.b16 %v3137
    %v3414 = vunpack.c.l.b16 %v3138
    %v3415 = vunpack.c.l.b16 %v3139
    %v3416 = vunpack.c.l.b16 %v3140
    %v3417 = vunpack.c.l.b16 %v3141
    %v3418 = vunpack.c.l.b16 %v3142
    %v3419 = vunpack.c.l.b16 %v3143
    %v3420 = vunpack.c.l.b16 %v3144
    %v3421 = vunpack.c.l.b16 %v3145
    %v3422 = vunpack.c.l.b16 %v3146
    %v3423 = vunpack.c.l.b16 %v3147
    %v3424 = vpack.c.b16 %v3409, %v3408
    %v3425 = vpack.c.b16 %v3411, %v3410
    %v3426 = vpack.c.b16 %v3413, %v3412
    %v3427 = vpack.c.b16 %v3415, %v3414
    %v3428 = vpack.c.b16 %v3417, %v3416
    %v3429 = vpack.c.b16 %v3419, %v3418
    %v3430 = vpack.c.b16 %v3421, %v3420
    %v3431 = vpack.c.b16 %v3423, %v3422
    %3440 = vmatprep.subr.bf16.mxu0 0
    %3441 = vmatpush1.bf16.msra.mxu0 %v3424
    %3442 = vmatprep.subr.bf16.mxu0 0
    %3443 = vmatpush1.bf16.msra.mxu0 %v3425
    %3444 = vmatprep.subr.bf16.mxu0 0
    %3445 = vmatpush1.bf16.msra.mxu0 %v3426
    %3446 = vmatprep.subr.bf16.mxu0 0
    %3447 = vmatpush1.bf16.msra.mxu0 %v3427
    %3448 = vmatprep.subr.bf16.mxu0 0
    %3449 = vmatpush1.bf16.msra.mxu0 %v3428
    %3450 = vmatprep.subr.bf16.mxu0 0
    %3451 = vmatpush1.bf16.msra.mxu0 %v3429
    %3452 = vmatprep.subr.bf16.mxu0 0
    %3453 = vmatpush1.bf16.msra.mxu0 %v3430
    %3454 = vmatprep.subr.bf16.mxu0 0
    %3455 = vmatpush1.bf16.msra.mxu0 %v3431
    %3456 = vmatprep.subr.bf16.mxu0 0
    %3457 = vmatpush1.bf16.msra.mxu0 0
    %3458 = vmatprep.subr.bf16.mxu0 0
    %3459 = vmatpush1.bf16.msra.mxu0 0
    %3460 = vmatprep.subr.bf16.mxu0 0
    %3461 = vmatpush1.bf16.msra.mxu0 0
    %3462 = vmatprep.subr.bf16.mxu0 0
    %3463 = vmatpush1.bf16.msra.mxu0 0
    %3464 = vmatprep.subr.bf16.mxu0 0
    %3465 = vmatpush1.bf16.msra.mxu0 0
    %3466 = vmatprep.subr.bf16.mxu0 0
    %3467 = vmatpush1.bf16.msra.mxu0 0
    %3468 = vmatprep.subr.bf16.mxu0 0
    %3469 = vmatpush1.bf16.msra.mxu0 0
    %3470 = vmatprep.subr.bf16.mxu0 0
    %3471 = vmatpush1.bf16.msra.mxu0 0
    %3472 = vmatprep.mubr.bf16.mxu0 0
    %3473 = vmatmul.mubr.bf16.gmra.mrb[0].mxu0 %v3130
    %v3474 = vpop.f32.mrb[0].mxu0
    %v3475 = vadd.f32 %v3378, %v3474
    %v3476 = vpop.f32.mrb[0].mxu0
    %v3477 = vpop.f32.mrb[0].mxu0
    %v3478 = vadd.f32 %v3381, %v3477
    %v3479 = vpop.f32.mrb[0].mxu0
    %3480 = vmatprep.mubr.bf16.mxu0 0
    %3481 = vmatmul.mubr.bf16.gmra.mrb[0].mxu0 %v3131
    %v3482 = vpop.f32.mrb[0].mxu0
    %v3483 = vadd.f32 %v3386, %v3482
    %v3484 = vpop.f32.mrb[0].mxu0
    %v3485 = vpop.f32.mrb[0].mxu0
    %v3486 = vadd.f32 %v3389, %v3485
    %v3487 = vpop.f32.mrb[0].mxu0
    %3488 = vdwg.mxu0
    %v3489 = vcombine.low %v2920, %v2919
    %v3490 = vcombine.low %v2929, %v2937
    %v3492 = vunpack.c.l.s4 1983009808
    %v3493 = vunpack.c.0.s8 %v3492
    %v3494 = vlaneseq
    %v3495 = vshrl.u32 %v3494, 7
    %v3496 = vsub.s32 %v3493, %v3495
    %v3497 = vrot.slane %v3489, %v3496
    %v3499 = vunpack.c.l.s4 1983009808
    %v3500 = vunpack.c.0.s8 %v3499
    %v3501 = vlaneseq
    %v3502 = vshrl.u32 %v3501, 7
    %v3503 = vsub.s32 %v3500, %v3502
    %v3504 = vrot.slane %v3490, %v3503
    %v3505 = vcombine.low %v3497, %v3504
    %v3506 = vcombine.low %v2938, %v2946
    %v3507 = vcombine.low %v2953, %v2955
    %v3509 = vunpack.c.l.s4 1983009808
    %v3510 = vunpack.c.0.s8 %v3509
    %v3511 = vlaneseq
    %v3512 = vshrl.u32 %v3511, 7
    %v3513 = vsub.s32 %v3510, %v3512
    %v3514 = vrot.slane %v3506, %v3513
    %v3516 = vunpack.c.l.s4 1983009808
    %v3517 = vunpack.c.0.s8 %v3516
    %v3518 = vlaneseq
    %v3519 = vshrl.u32 %v3518, 7
    %v3520 = vsub.s32 %v3517, %v3519
    %v3521 = vrot.slane %v3507, %v3520
    %v3522 = vcombine.low %v3514, %v3521
    %v3523 = vcombine.low %v2989, %v2997
    %v3524 = vcombine.low %v3004, %v3006
    %v3526 = vunpack.c.l.s4 1983009808
    %v3527 = vunpack.c.0.s8 %v3526
    %v3528 = vlaneseq
    %v3529 = vshrl.u32 %v3528, 7
    %v3530 = vsub.s32 %v3527, %v3529
    %v3531 = vrot.slane %v3523, %v3530
    %v3533 = vunpack.c.l.s4 1983009808
    %v3534 = vunpack.c.0.s8 %v3533
    %v3535 = vlaneseq
    %v3536 = vshrl.u32 %v3535, 7
    %v3537 = vsub.s32 %v3534, %v3536
    %v3538 = vrot.slane %v3524, %v3537
    %v3539 = vcombine.low %v3531, %v3538
    %v3540 = vcombine.low %v3022, %v3021
    %v3541 = vcombine.low %v3031, %v3039
    %v3543 = vunpack.c.l.s4 1983009808
    %v3544 = vunpack.c.0.s8 %v3543
    %v3545 = vlaneseq
    %v3546 = vshrl.u32 %v3545, 7
    %v3547 = vsub.s32 %v3544, %v3546
    %v3548 = vrot.slane %v3540, %v3547
    %v3550 = vunpack.c.l.s4 1983009808
    %v3551 = vunpack.c.0.s8 %v3550
    %v3552 = vlaneseq
    %v3553 = vshrl.u32 %v3552, 7
    %v3554 = vsub.s32 %v3551, %v3553
    %v3555 = vrot.slane %v3541, %v3554
    %v3556 = vcombine.low %v3548, %v3555
    %v3561 = vpack.c.bf16 %v3522, %v3505
    %v3562 = vpack.c.bf16 %v3556, %v3539
    %s3563 = scalar_lea.vmem %s5, 128
    %v3564 = vld [vmem:[%s3563] sm:$0xf]
    %v3565 = vld [vmem:[%s3563 + $0x4] sm:$0xf]
    %v3566 = vld [vmem:[%s3563 + $0x8] sm:$0xf]
    %v3567 = vld [vmem:[%s3563 + $0xc] sm:$0xf]
    %v3568 = vld [vmem:[%s3563 + $0x10] sm:$0xf]
    %v3569 = vld [vmem:[%s3563 + $0x14] sm:$0xf]
    %v3570 = vld [vmem:[%s3563 + $0x18] sm:$0xf]
    %v3571 = vld [vmem:[%s3563 + $0x1c] sm:$0xf]
    %v3572 = vld [vmem:[%s3563 + $0x20] sm:$0xf]
    %v3573 = vld [vmem:[%s3563 + $0x24] sm:$0xf]
    %v3574 = vld [vmem:[%s3563 + $0x28] sm:$0xf]
    %v3575 = vld [vmem:[%s3563 + $0x2c] sm:$0xf]
    %v3576 = vld [vmem:[%s3563 + $0x30] sm:$0xf]
    %v3577 = vld [vmem:[%s3563 + $0x34] sm:$0xf]
    %v3578 = vld [vmem:[%s3563 + $0x38] sm:$0xf]
    %v3579 = vld [vmem:[%s3563 + $0x3c] sm:$0xf]
    %v3596 = vunpack.c.l.b16 %v3564
    %v3597 = vunpack.c.l.b16 %v3565
    %v3598 = vunpack.c.l.b16 %v3566
    %v3599 = vunpack.c.l.b16 %v3567
    %v3600 = vunpack.c.l.b16 %v3568
    %v3601 = vunpack.c.l.b16 %v3569
    %v3602 = vunpack.c.l.b16 %v3570
    %v3603 = vunpack.c.l.b16 %v3571
    %v3604 = vunpack.c.l.b16 %v3572
    %v3605 = vunpack.c.l.b16 %v3573
    %v3606 = vunpack.c.l.b16 %v3574
    %v3607 = vunpack.c.l.b16 %v3575
    %v3608 = vunpack.c.l.b16 %v3576
    %v3609 = vunpack.c.l.b16 %v3577
    %v3610 = vunpack.c.l.b16 %v3578
    %v3611 = vunpack.c.l.b16 %v3579
    %v3612 = vpack.c.b16 %v3597, %v3596
    %v3613 = vpack.c.b16 %v3599, %v3598
    %v3614 = vpack.c.b16 %v3601, %v3600
    %v3615 = vpack.c.b16 %v3603, %v3602
    %v3616 = vpack.c.b16 %v3605, %v3604
    %v3617 = vpack.c.b16 %v3607, %v3606
    %v3618 = vpack.c.b16 %v3609, %v3608
    %v3619 = vpack.c.b16 %v3611, %v3610
    %3628 = vmatprep.subr.bf16.mxu0 0
    %3629 = vmatpush1.bf16.msra.mxu0 %v3612
    %3630 = vmatprep.subr.bf16.mxu0 0
    %3631 = vmatpush1.bf16.msra.mxu0 %v3613
    %3632 = vmatprep.subr.bf16.mxu0 0
    %3633 = vmatpush1.bf16.msra.mxu0 %v3614
    %3634 = vmatprep.subr.bf16.mxu0 0
    %3635 = vmatpush1.bf16.msra.mxu0 %v3615
    %3636 = vmatprep.subr.bf16.mxu0 0
    %3637 = vmatpush1.bf16.msra.mxu0 %v3616
    %3638 = vmatprep.subr.bf16.mxu0 0
    %3639 = vmatpush1.bf16.msra.mxu0 %v3617
    %3640 = vmatprep.subr.bf16.mxu0 0
    %3641 = vmatpush1.bf16.msra.mxu0 %v3618
    %3642 = vmatprep.subr.bf16.mxu0 0
    %3643 = vmatpush1.bf16.msra.mxu0 %v3619
    %3644 = vmatprep.subr.bf16.mxu0 0
    %3645 = vmatpush1.bf16.msra.mxu0 0
    %3646 = vmatprep.subr.bf16.mxu0 0
    %3647 = vmatpush1.bf16.msra.mxu0 0
    %3648 = vmatprep.subr.bf16.mxu0 0
    %3649 = vmatpush1.bf16.msra.mxu0 0
    %3650 = vmatprep.subr.bf16.mxu0 0
    %3651 = vmatpush1.bf16.msra.mxu0 0
    %3652 = vmatprep.subr.bf16.mxu0 0
    %3653 = vmatpush1.bf16.msra.mxu0 0
    %3654 = vmatprep.subr.bf16.mxu0 0
    %3655 = vmatpush1.bf16.msra.mxu0 0
    %3656 = vmatprep.subr.bf16.mxu0 0
    %3657 = vmatpush1.bf16.msra.mxu0 0
    %3658 = vmatprep.subr.bf16.mxu0 0
    %3659 = vmatpush1.bf16.msra.mxu0 0
    %3660 = vmatprep.mubr.bf16.mxu0 0
    %3661 = vmatmul.mubr.bf16.gmra.mrb[0].mxu0 %v3561
    %v3662 = vpop.f32.mrb[0].mxu0
    %v3663 = vadd.f32 0.0, %v3662
    %v3664 = vpop.f32.mrb[0].mxu0
    %v3665 = vpop.f32.mrb[0].mxu0
    %v3666 = vadd.f32 0.0, %v3665
    %v3667 = vpop.f32.mrb[0].mxu0
    %3668 = vmatprep.mubr.bf16.mxu0 0
    %3669 = vmatmul.mubr.bf16.gmra.mrb[0].mxu0 %v3562
    %v3670 = vpop.f32.mrb[0].mxu0
    %v3671 = vadd.f32 0.0, %v3670
    %v3672 = vpop.f32.mrb[0].mxu0
    %v3673 = vpop.f32.mrb[0].mxu0
    %v3674 = vadd.f32 0.0, %v3673
    %v3675 = vpop.f32.mrb[0].mxu0
    %3676 = vdwg.mxu0
    %v3677 = vadd.f32 %v3475, %v3663
    %v3678 = vadd.f32 %v3478, %v3666
    %v3679 = vadd.f32 %v3483, %v3671
    %v3680 = vadd.f32 %v3486, %v3674
    %v3681 = vcombine.low %v3073, %v3083
    %v3682 = vcombine.low %v2963, %v2971
    %v3684 = vunpack.c.l.s4 1983009808
    %v3685 = vunpack.c.0.s8 %v3684
    %v3686 = vlaneseq
    %v3687 = vshrl.u32 %v3686, 7
    %v3688 = vsub.s32 %v3685, %v3687
    %v3689 = vrot.slane %v3682, %v3688
    %v3690 = vcombine.low %v3090, %v3689
    %v3691 = vcombine.low %v3107, %v3117
    %v3692 = vcombine.low %v3038, %v3040
    %v3694 = vunpack.c.l.s4 1983009808
    %v3695 = vunpack.c.0.s8 %v3694
    %v3696 = vlaneseq
    %v3697 = vshrl.u32 %v3696, 7
    %v3698 = vsub.s32 %v3695, %v3697
    %v3699 = vrot.slane %v3692, %v3698
    %v3700 = vcombine.low %v3124, %v3699
    %v3705 = vpack.c.bf16 %v3690, %v3681
    %v3706 = vpack.c.bf16 %v3700, %v3691
    %s3707 = scalar_lea.vmem %s5, 192
    %v3708 = vld [vmem:[%s3707] sm:$0xf]
    %v3709 = vld [vmem:[%s3707 + $0x4] sm:$0xf]
    %v3710 = vld [vmem:[%s3707 + $0x8] sm:$0xf]
    %v3711 = vld [vmem:[%s3707 + $0xc] sm:$0xf]
    %v3712 = vld [vmem:[%s3707 + $0x10] sm:$0xf]
    %v3713 = vld [vmem:[%s3707 + $0x14] sm:$0xf]
    %v3714 = vld [vmem:[%s3707 + $0x18] sm:$0xf]
    %v3715 = vld [vmem:[%s3707 + $0x1c] sm:$0xf]
    %v3716 = vld [vmem:[%s3707 + $0x20] sm:$0xf]
    %v3717 = vld [vmem:[%s3707 + $0x24] sm:$0xf]
    %v3718 = vld [vmem:[%s3707 + $0x28] sm:$0xf]
    %v3719 = vld [vmem:[%s3707 + $0x2c] sm:$0xf]
    %v3720 = vld [vmem:[%s3707 + $0x30] sm:$0xf]
    %v3721 = vld [vmem:[%s3707 + $0x34] sm:$0xf]
    %v3722 = vld [vmem:[%s3707 + $0x38] sm:$0xf]
    %v3723 = vld [vmem:[%s3707 + $0x3c] sm:$0xf]
    %v3740 = vunpack.c.l.b16 %v3708
    %v3741 = vunpack.c.l.b16 %v3709
    %v3742 = vunpack.c.l.b16 %v3710
    %v3743 = vunpack.c.l.b16 %v3711
    %v3744 = vunpack.c.l.b16 %v3712
    %v3745 = vunpack.c.l.b16 %v3713
    %v3746 = vunpack.c.l.b16 %v3714
    %v3747 = vunpack.c.l.b16 %v3715
    %v3748 = vunpack.c.l.b16 %v3716
    %v3749 = vunpack.c.l.b16 %v3717
    %v3750 = vunpack.c.l.b16 %v3718
    %v3751 = vunpack.c.l.b16 %v3719
    %v3752 = vunpack.c.l.b16 %v3720
    %v3753 = vunpack.c.l.b16 %v3721
    %v3754 = vunpack.c.l.b16 %v3722
    %v3755 = vunpack.c.l.b16 %v3723
    %v3756 = vpack.c.b16 %v3741, %v3740
    %v3757 = vpack.c.b16 %v3743, %v3742
    %v3758 = vpack.c.b16 %v3745, %v3744
    %v3759 = vpack.c.b16 %v3747, %v3746
    %v3760 = vpack.c.b16 %v3749, %v3748
    %v3761 = vpack.c.b16 %v3751, %v3750
    %v3762 = vpack.c.b16 %v3753, %v3752
    %v3763 = vpack.c.b16 %v3755, %v3754
    %3772 = vmatprep.subr.bf16.mxu0 0
    %3773 = vmatpush1.bf16.msra.mxu0 %v3756
    %3774 = vmatprep.subr.bf16.mxu0 0
    %3775 = vmatpush1.bf16.msra.mxu0 %v3757
    %3776 = vmatprep.subr.bf16.mxu0 0
    %3777 = vmatpush1.bf16.msra.mxu0 %v3758
    %3778 = vmatprep.subr.bf16.mxu0 0
    %3779 = vmatpush1.bf16.msra.mxu0 %v3759
    %3780 = vmatprep.subr.bf16.mxu0 0
    %3781 = vmatpush1.bf16.msra.mxu0 %v3760
    %3782 = vmatprep.subr.bf16.mxu0 0
    %3783 = vmatpush1.bf16.msra.mxu0 %v3761
    %3784 = vmatprep.subr.bf16.mxu0 0
    %3785 = vmatpush1.bf16.msra.mxu0 %v3762
    %3786 = vmatprep.subr.bf16.mxu0 0
    %3787 = vmatpush1.bf16.msra.mxu0 %v3763
    %3788 = vmatprep.subr.bf16.mxu0 0
    %3789 = vmatpush1.bf16.msra.mxu0 0
    %3790 = vmatprep.subr.bf16.mxu0 0
    %3791 = vmatpush1.bf16.msra.mxu0 0
    %3792 = vmatprep.subr.bf16.mxu0 0
    %3793 = vmatpush1.bf16.msra.mxu0 0
    %3794 = vmatprep.subr.bf16.mxu0 0
    %3795 = vmatpush1.bf16.msra.mxu0 0
    %3796 = vmatprep.subr.bf16.mxu0 0
    %3797 = vmatpush1.bf16.msra.mxu0 0
    %3798 = vmatprep.subr.bf16.mxu0 0
    %3799 = vmatpush1.bf16.msra.mxu0 0
    %3800 = vmatprep.subr.bf16.mxu0 0
    %3801 = vmatpush1.bf16.msra.mxu0 0
    %3802 = vmatprep.subr.bf16.mxu0 0
    %3803 = vmatpush1.bf16.msra.mxu0 0
    %3804 = vmatprep.mubr.bf16.mxu0 0
    %3805 = vmatmul.mubr.bf16.gmra.mrb[0].mxu0 %v3705
    %v3806 = vpop.f32.mrb[0].mxu0
    %v3807 = vadd.f32 0.0, %v3806
    %v3808 = vpop.f32.mrb[0].mxu0
    %v3809 = vpop.f32.mrb[0].mxu0
    %v3810 = vadd.f32 0.0, %v3809
    %v3811 = vpop.f32.mrb[0].mxu0
    %3812 = vmatprep.mubr.bf16.mxu0 0
    %3813 = vmatmul.mubr.bf16.gmra.mrb[0].mxu0 %v3706
    %v3814 = vpop.f32.mrb[0].mxu0
    %v3815 = vadd.f32 0.0, %v3814
    %v3816 = vpop.f32.mrb[0].mxu0
    %v3817 = vpop.f32.mrb[0].mxu0
    %v3818 = vadd.f32 0.0, %v3817
    %v3819 = vpop.f32.mrb[0].mxu0
    %3820 = vdwg.mxu0
    %v3821 = vadd.f32 %v3677, %v3807
    %v3822 = vadd.f32 %v3678, %v3810
    %v3823 = vadd.f32 %v3679, %v3815
    %v3824 = vadd.f32 %v3680, %v3818
    %v3825 = vrot.slane %v2963, 7
    %v3826 = vrot.slane %v3825, 2
    %v3827 = vrot.slane %v2971, 7
    %v3828 = vsel %vm600, %v3826, %v3827
    %v3829 = vrot.slane %v3827, 2
    %v3830 = vrot.slane %v2970, 7
    %v3831 = vsel %vm600, %v3829, %v3830
    %v3832 = vrot.slane %v3038, 7
    %v3833 = vrot.slane %v3832, 2
    %v3834 = vrot.slane %v3040, 7
    %v3835 = vsel %vm600, %v3833, %v3834
    %v3836 = vrot.slane %v3834, 2
    %v3837 = vrot.slane %v3048, 7
    %v3838 = vsel %vm600, %v3836, %v3837
    %v3839 = vcombine.low %v3219, %v3229
    %v3840 = vcombine.low %v3828, %v3831
    %v3842 = vunpack.c.l.s4 1983009808
    %v3843 = vunpack.c.0.s8 %v3842
    %v3844 = vlaneseq
    %v3845 = vshrl.u32 %v3844, 7
    %v3846 = vsub.s32 %v3843, %v3845
    %v3847 = vrot.slane %v3840, %v3846
    %v3848 = vcombine.low %v3236, %v3847
    %v3849 = vcombine.low %v3253, %v3263
    %v3850 = vcombine.low %v3835, %v3838
    %v3852 = vunpack.c.l.s4 1983009808
    %v3853 = vunpack.c.0.s8 %v3852
    %v3854 = vlaneseq
    %v3855 = vshrl.u32 %v3854, 7
    %v3856 = vsub.s32 %v3853, %v3855
    %v3857 = vrot.slane %v3850, %v3856
    %v3858 = vcombine.low %v3270, %v3857
    %v3863 = vpack.c.bf16 %v3848, %v3839
    %v3864 = vpack.c.bf16 %v3858, %v3849
    %s3865 = scalar_lea.vmem %s5, 256
    %v3866 = vld [vmem:[%s3865] sm:$0xf]
    %v3867 = vld [vmem:[%s3865 + $0x4] sm:$0xf]
    %v3868 = vld [vmem:[%s3865 + $0x8] sm:$0xf]
    %v3869 = vld [vmem:[%s3865 + $0xc] sm:$0xf]
    %v3870 = vld [vmem:[%s3865 + $0x10] sm:$0xf]
    %v3871 = vld [vmem:[%s3865 + $0x14] sm:$0xf]
    %v3872 = vld [vmem:[%s3865 + $0x18] sm:$0xf]
    %v3873 = vld [vmem:[%s3865 + $0x1c] sm:$0xf]
    %v3874 = vld [vmem:[%s3865 + $0x20] sm:$0xf]
    %v3875 = vld [vmem:[%s3865 + $0x24] sm:$0xf]
    %v3876 = vld [vmem:[%s3865 + $0x28] sm:$0xf]
    %v3877 = vld [vmem:[%s3865 + $0x2c] sm:$0xf]
    %v3878 = vld [vmem:[%s3865 + $0x30] sm:$0xf]
    %v3879 = vld [vmem:[%s3865 + $0x34] sm:$0xf]
    %v3880 = vld [vmem:[%s3865 + $0x38] sm:$0xf]
    %v3881 = vld [vmem:[%s3865 + $0x3c] sm:$0xf]
    %v3898 = vunpack.c.l.b16 %v3866
    %v3899 = vunpack.c.l.b16 %v3867
    %v3900 = vunpack.c.l.b16 %v3868
    %v3901 = vunpack.c.l.b16 %v3869
    %v3902 = vunpack.c.l.b16 %v3870
    %v3903 = vunpack.c.l.b16 %v3871
    %v3904 = vunpack.c.l.b16 %v3872
    %v3905 = vunpack.c.l.b16 %v3873
    %v3906 = vunpack.c.l.b16 %v3874
    %v3907 = vunpack.c.l.b16 %v3875
    %v3908 = vunpack.c.l.b16 %v3876
    %v3909 = vunpack.c.l.b16 %v3877
    %v3910 = vunpack.c.l.b16 %v3878
    %v3911 = vunpack.c.l.b16 %v3879
    %v3912 = vunpack.c.l.b16 %v3880
    %v3913 = vunpack.c.l.b16 %v3881
    %v3914 = vpack.c.b16 %v3899, %v3898
    %v3915 = vpack.c.b16 %v3901, %v3900
    %v3916 = vpack.c.b16 %v3903, %v3902
    %v3917 = vpack.c.b16 %v3905, %v3904
    %v3918 = vpack.c.b16 %v3907, %v3906
    %v3919 = vpack.c.b16 %v3909, %v3908
    %v3920 = vpack.c.b16 %v3911, %v3910
    %v3921 = vpack.c.b16 %v3913, %v3912
    %3930 = vmatprep.subr.bf16.mxu0 0
    %3931 = vmatpush1.bf16.msra.mxu0 %v3914
    %3932 = vmatprep.subr.bf16.mxu0 0
    %3933 = vmatpush1.bf16.msra.mxu0 %v3915
    %3934 = vmatprep.subr.bf16.mxu0 0
    %3935 = vmatpush1.bf16.msra.mxu0 %v3916
    %3936 = vmatprep.subr.bf16.mxu0 0
    %3937 = vmatpush1.bf16.msra.mxu0 %v3917
    %3938 = vmatprep.subr.bf16.mxu0 0
    %3939 = vmatpush1.bf16.msra.mxu0 %v3918
    %3940 = vmatprep.subr.bf16.mxu0 0
    %3941 = vmatpush1.bf16.msra.mxu0 %v3919
    %3942 = vmatprep.subr.bf16.mxu0 0
    %3943 = vmatpush1.bf16.msra.mxu0 %v3920
    %3944 = vmatprep.subr.bf16.mxu0 0
    %3945 = vmatpush1.bf16.msra.mxu0 %v3921
    %3946 = vmatprep.subr.bf16.mxu0 0
    %3947 = vmatpush1.bf16.msra.mxu0 0
    %3948 = vmatprep.subr.bf16.mxu0 0
    %3949 = vmatpush1.bf16.msra.mxu0 0
    %3950 = vmatprep.subr.bf16.mxu0 0
    %3951 = vmatpush1.bf16.msra.mxu0 0
    %3952 = vmatprep.subr.bf16.mxu0 0
    %3953 = vmatpush1.bf16.msra.mxu0 0
    %3954 = vmatprep.subr.bf16.mxu0 0
    %3955 = vmatpush1.bf16.msra.mxu0 0
    %3956 = vmatprep.subr.bf16.mxu0 0
    %3957 = vmatpush1.bf16.msra.mxu0 0
    %3958 = vmatprep.subr.bf16.mxu0 0
    %3959 = vmatpush1.bf16.msra.mxu0 0
    %3960 = vmatprep.subr.bf16.mxu0 0
    %3961 = vmatpush1.bf16.msra.mxu0 0
    %3962 = vmatprep.mubr.bf16.mxu0 0
    %3963 = vmatmul.mubr.bf16.gmra.mrb[0].mxu0 %v3863
    %v3964 = vpop.f32.mrb[0].mxu0
    %v3965 = vadd.f32 0.0, %v3964
    %v3966 = vpop.f32.mrb[0].mxu0
    %v3967 = vpop.f32.mrb[0].mxu0
    %v3968 = vadd.f32 0.0, %v3967
    %v3969 = vpop.f32.mrb[0].mxu0
    %3970 = vmatprep.mubr.bf16.mxu0 0
    %3971 = vmatmul.mubr.bf16.gmra.mrb[0].mxu0 %v3864
    %v3972 = vpop.f32.mrb[0].mxu0
    %v3973 = vadd.f32 0.0, %v3972
    %v3974 = vpop.f32.mrb[0].mxu0
    %v3975 = vpop.f32.mrb[0].mxu0
    %v3976 = vadd.f32 0.0, %v3975
    %v3977 = vpop.f32.mrb[0].mxu0
    %3978 = vdwg.mxu0
    %v3979 = vadd.f32 %v3821, %v3965
    %v3980 = vadd.f32 %v3822, %v3968
    %v3981 = vadd.f32 %v3823, %v3973
    %v3982 = vadd.f32 %v3824, %v3976
    %v3983 = vcombine.low %v3504, %v3514
    %v3984 = vcombine.low %v2971, %v2970
    %v3986 = vunpack.c.l.s4 1983009808
    %v3987 = vunpack.c.0.s8 %v3986
    %v3988 = vlaneseq
    %v3989 = vshrl.u32 %v3988, 7
    %v3990 = vsub.s32 %v3987, %v3989
    %v3991 = vrot.slane %v3984, %v3990
    %v3992 = vcombine.low %v3521, %v3991
    %v3993 = vcombine.low %v3538, %v3548
    %v3994 = vcombine.low %v3040, %v3048
    %v3996 = vunpack.c.l.s4 1983009808
    %v3997 = vunpack.c.0.s8 %v3996
    %v3998 = vlaneseq
    %v3999 = vshrl.u32 %v3998, 7
    %v4000 = vsub.s32 %v3997, %v3999
    %v4001 = vrot.slane %v3994, %v4000
    %v4002 = vcombine.low %v3555, %v4001
    %v4007 = vpack.c.bf16 %v3992, %v3983
    %v4008 = vpack.c.bf16 %v4002, %v3993
    %s4009 = scalar_lea.vmem %s5, 320
    %v4010 = vld [vmem:[%s4009] sm:$0xf]
    %v4011 = vld [vmem:[%s4009 + $0x4] sm:$0xf]
    %v4012 = vld [vmem:[%s4009 + $0x8] sm:$0xf]
    %v4013 = vld [vmem:[%s4009 + $0xc] sm:$0xf]
    %v4014 = vld [vmem:[%s4009 + $0x10] sm:$0xf]
    %v4015 = vld [vmem:[%s4009 + $0x14] sm:$0xf]
    %v4016 = vld [vmem:[%s4009 + $0x18] sm:$0xf]
    %v4017 = vld [vmem:[%s4009 + $0x1c] sm:$0xf]
    %v4018 = vld [vmem:[%s4009 + $0x20] sm:$0xf]
    %v4019 = vld [vmem:[%s4009 + $0x24] sm:$0xf]
    %v4020 = vld [vmem:[%s4009 + $0x28] sm:$0xf]
    %v4021 = vld [vmem:[%s4009 + $0x2c] sm:$0xf]
    %v4022 = vld [vmem:[%s4009 + $0x30] sm:$0xf]
    %v4023 = vld [vmem:[%s4009 + $0x34] sm:$0xf]
    %v4024 = vld [vmem:[%s4009 + $0x38] sm:$0xf]
    %v4025 = vld [vmem:[%s4009 + $0x3c] sm:$0xf]
    %v4042 = vunpack.c.l.b16 %v4010
    %v4043 = vunpack.c.l.b16 %v4011
    %v4044 = vunpack.c.l.b16 %v4012
    %v4045 = vunpack.c.l.b16 %v4013
    %v4046 = vunpack.c.l.b16 %v4014
    %v4047 = vunpack.c.l.b16 %v4015
    %v4048 = vunpack.c.l.b16 %v4016
    %v4049 = vunpack.c.l.b16 %v4017
    %v4050 = vunpack.c.l.b16 %v4018
    %v4051 = vunpack.c.l.b16 %v4019
    %v4052 = vunpack.c.l.b16 %v4020
    %v4053 = vunpack.c.l.b16 %v4021
    %v4054 = vunpack.c.l.b16 %v4022
    %v4055 = vunpack.c.l.b16 %v4023
    %v4056 = vunpack.c.l.b16 %v4024
    %v4057 = vunpack.c.l.b16 %v4025
    %v4058 = vpack.c.b16 %v4043, %v4042
    %v4059 = vpack.c.b16 %v4045, %v4044
    %v4060 = vpack.c.b16 %v4047, %v4046
    %v4061 = vpack.c.b16 %v4049, %v4048
    %v4062 = vpack.c.b16 %v4051, %v4050
    %v4063 = vpack.c.b16 %v4053, %v4052
    %v4064 = vpack.c.b16 %v4055, %v4054
    %v4065 = vpack.c.b16 %v4057, %v4056
    %4074 = vmatprep.subr.bf16.mxu0 0
    %4075 = vmatpush1.bf16.msra.mxu0 %v4058
    %4076 = vmatprep.subr.bf16.mxu0 0
    %4077 = vmatpush1.bf16.msra.mxu0 %v4059
    %4078 = vmatprep.subr.bf16.mxu0 0
    %4079 = vmatpush1.bf16.msra.mxu0 %v4060
    %4080 = vmatprep.subr.bf16.mxu0 0
    %4081 = vmatpush1.bf16.msra.mxu0 %v4061
    %4082 = vmatprep.subr.bf16.mxu0 0
    %4083 = vmatpush1.bf16.msra.mxu0 %v4062
    %4084 = vmatprep.subr.bf16.mxu0 0
    %4085 = vmatpush1.bf16.msra.mxu0 %v4063
    %4086 = vmatprep.subr.bf16.mxu0 0
    %4087 = vmatpush1.bf16.msra.mxu0 %v4064
    %4088 = vmatprep.subr.bf16.mxu0 0
    %4089 = vmatpush1.bf16.msra.mxu0 %v4065
    %4090 = vmatprep.subr.bf16.mxu0 0
    %4091 = vmatpush1.bf16.msra.mxu0 0
    %4092 = vmatprep.subr.bf16.mxu0 0
    %4093 = vmatpush1.bf16.msra.mxu0 0
    %4094 = vmatprep.subr.bf16.mxu0 0
    %4095 = vmatpush1.bf16.msra.mxu0 0
    %4096 = vmatprep.subr.bf16.mxu0 0
    %4097 = vmatpush1.bf16.msra.mxu0 0
    %4098 = vmatprep.subr.bf16.mxu0 0
    %4099 = vmatpush1.bf16.msra.mxu0 0
    %4100 = vmatprep.subr.bf16.mxu0 0
    %4101 = vmatpush1.bf16.msra.mxu0 0
    %4102 = vmatprep.subr.bf16.mxu0 0
    %4103 = vmatpush1.bf16.msra.mxu0 0
    %4104 = vmatprep.subr.bf16.mxu0 0
    %4105 = vmatpush1.bf16.msra.mxu0 0
    %4106 = vmatprep.mubr.bf16.mxu0 0
    %4107 = vmatmul.mubr.bf16.gmra.mrb[0].mxu0 %v4007
    %v4108 = vpop.f32.mrb[0].mxu0
    %v4109 = vadd.f32 0.0, %v4108
    %v4110 = vpop.f32.mrb[0].mxu0
    %v4111 = vpop.f32.mrb[0].mxu0
    %v4112 = vadd.f32 0.0, %v4111
    %v4113 = vpop.f32.mrb[0].mxu0
    %4114 = vmatprep.mubr.bf16.mxu0 0
    %4115 = vmatmul.mubr.bf16.gmra.mrb[0].mxu0 %v4008
    %v4116 = vpop.f32.mrb[0].mxu0
    %v4117 = vadd.f32 0.0, %v4116
    %v4118 = vpop.f32.mrb[0].mxu0
    %v4119 = vpop.f32.mrb[0].mxu0
    %v4120 = vadd.f32 0.0, %v4119
    %v4121 = vpop.f32.mrb[0].mxu0
    %4122 = vdwg.mxu0
    %v4123 = vadd.f32 %v3979, %v4109
    %v4124 = vadd.f32 %v3980, %v4112
    %v4125 = vadd.f32 %v3981, %v4117
    %v4126 = vadd.f32 %v3982, %v4120
    %v4127 = vcombine.low %v2972, %v2980
    %v4129 = vunpack.c.l.s4 1983009808
    %v4130 = vunpack.c.0.s8 %v4129
    %v4131 = vlaneseq
    %v4132 = vshrl.u32 %v4131, 7
    %v4133 = vsub.s32 %v4130, %v4132
    %v4134 = vrot.slane %v4127, %v4133
    %v4135 = vcombine.low %v3689, %v4134
    %v4136 = vcombine.low %v3056, %v3055
    %v4138 = vunpack.c.l.s4 1983009808
    %v4139 = vunpack.c.0.s8 %v4138
    %v4140 = vlaneseq
    %v4141 = vshrl.u32 %v4140, 7
    %v4142 = vsub.s32 %v4139, %v4141
    %v4143 = vrot.slane %v4136, %v4142
    %v4144 = vcombine.low %v3699, %v4143
    %v4147 = vpack.c.bf16 %v4135, %v3091
    %v4148 = vpack.c.bf16 %v4144, %v3125
    %s4149 = scalar_lea.vmem %s5, 384
    %v4150 = vld [vmem:[%s4149] sm:$0xf]
    %v4151 = vld [vmem:[%s4149 + $0x4] sm:$0xf]
    %v4152 = vld [vmem:[%s4149 + $0x8] sm:$0xf]
    %v4153 = vld [vmem:[%s4149 + $0xc] sm:$0xf]
    %v4154 = vld [vmem:[%s4149 + $0x10] sm:$0xf]
    %v4155 = vld [vmem:[%s4149 + $0x14] sm:$0xf]
    %v4156 = vld [vmem:[%s4149 + $0x18] sm:$0xf]
    %v4157 = vld [vmem:[%s4149 + $0x1c] sm:$0xf]
    %v4158 = vld [vmem:[%s4149 + $0x20] sm:$0xf]
    %v4159 = vld [vmem:[%s4149 + $0x24] sm:$0xf]
    %v4160 = vld [vmem:[%s4149 + $0x28] sm:$0xf]
    %v4161 = vld [vmem:[%s4149 + $0x2c] sm:$0xf]
    %v4162 = vld [vmem:[%s4149 + $0x30] sm:$0xf]
    %v4163 = vld [vmem:[%s4149 + $0x34] sm:$0xf]
    %v4164 = vld [vmem:[%s4149 + $0x38] sm:$0xf]
    %v4165 = vld [vmem:[%s4149 + $0x3c] sm:$0xf]
    %v4182 = vunpack.c.l.b16 %v4150
    %v4183 = vunpack.c.l.b16 %v4151
    %v4184 = vunpack.c.l.b16 %v4152
    %v4185 = vunpack.c.l.b16 %v4153
    %v4186 = vunpack.c.l.b16 %v4154
    %v4187 = vunpack.c.l.b16 %v4155
    %v4188 = vunpack.c.l.b16 %v4156
    %v4189 = vunpack.c.l.b16 %v4157
    %v4190 = vunpack.c.l.b16 %v4158
    %v4191 = vunpack.c.l.b16 %v4159
    %v4192 = vunpack.c.l.b16 %v4160
    %v4193 = vunpack.c.l.b16 %v4161
    %v4194 = vunpack.c.l.b16 %v4162
    %v4195 = vunpack.c.l.b16 %v4163
    %v4196 = vunpack.c.l.b16 %v4164
    %v4197 = vunpack.c.l.b16 %v4165
    %v4198 = vpack.c.b16 %v4183, %v4182
    %v4199 = vpack.c.b16 %v4185, %v4184
    %v4200 = vpack.c.b16 %v4187, %v4186
    %v4201 = vpack.c.b16 %v4189, %v4188
    %v4202 = vpack.c.b16 %v4191, %v4190
    %v4203 = vpack.c.b16 %v4193, %v4192
    %v4204 = vpack.c.b16 %v4195, %v4194
    %v4205 = vpack.c.b16 %v4197, %v4196
    %4214 = vmatprep.subr.bf16.mxu0 0
    %4215 = vmatpush1.bf16.msra.mxu0 %v4198
    %4216 = vmatprep.subr.bf16.mxu0 0
    %4217 = vmatpush1.bf16.msra.mxu0 %v4199
    %4218 = vmatprep.subr.bf16.mxu0 0
    %4219 = vmatpush1.bf16.msra.mxu0 %v4200
    %4220 = vmatprep.subr.bf16.mxu0 0
    %4221 = vmatpush1.bf16.msra.mxu0 %v4201
    %4222 = vmatprep.subr.bf16.mxu0 0
    %4223 = vmatpush1.bf16.msra.mxu0 %v4202
    %4224 = vmatprep.subr.bf16.mxu0 0
    %4225 = vmatpush1.bf16.msra.mxu0 %v4203
    %4226 = vmatprep.subr.bf16.mxu0 0
    %4227 = vmatpush1.bf16.msra.mxu0 %v4204
    %4228 = vmatprep.subr.bf16.mxu0 0
    %4229 = vmatpush1.bf16.msra.mxu0 %v4205
    %4230 = vmatprep.subr.bf16.mxu0 0
    %4231 = vmatpush1.bf16.msra.mxu0 0
    %4232 = vmatprep.subr.bf16.mxu0 0
    %4233 = vmatpush1.bf16.msra.mxu0 0
    %4234 = vmatprep.subr.bf16.mxu0 0
    %4235 = vmatpush1.bf16.msra.mxu0 0
    %4236 = vmatprep.subr.bf16.mxu0 0
    %4237 = vmatpush1.bf16.msra.mxu0 0
    %4238 = vmatprep.subr.bf16.mxu0 0
    %4239 = vmatpush1.bf16.msra.mxu0 0
    %4240 = vmatprep.subr.bf16.mxu0 0
    %4241 = vmatpush1.bf16.msra.mxu0 0
    %4242 = vmatprep.subr.bf16.mxu0 0
    %4243 = vmatpush1.bf16.msra.mxu0 0
    %4244 = vmatprep.subr.bf16.mxu0 0
    %4245 = vmatpush1.bf16.msra.mxu0 0
    %4246 = vmatprep.mubr.bf16.mxu0 0
    %4247 = vmatmul.mubr.bf16.gmra.mrb[0].mxu0 %v4147
    %v4248 = vpop.f32.mrb[0].mxu0
    %v4249 = vadd.f32 0.0, %v4248
    %v4250 = vpop.f32.mrb[0].mxu0
    %v4251 = vpop.f32.mrb[0].mxu0
    %v4252 = vadd.f32 0.0, %v4251
    %v4253 = vpop.f32.mrb[0].mxu0
    %4254 = vmatprep.mubr.bf16.mxu0 0
    %4255 = vmatmul.mubr.bf16.gmra.mrb[0].mxu0 %v4148
    %v4256 = vpop.f32.mrb[0].mxu0
    %v4257 = vadd.f32 0.0, %v4256
    %v4258 = vpop.f32.mrb[0].mxu0
    %v4259 = vpop.f32.mrb[0].mxu0
    %v4260 = vadd.f32 0.0, %v4259
    %v4261 = vpop.f32.mrb[0].mxu0
    %4262 = vdwg.mxu0
    %v4263 = vadd.f32 %v4123, %v4249
    %v4264 = vadd.f32 %v4124, %v4252
    %v4265 = vadd.f32 %v4125, %v4257
    %v4266 = vadd.f32 %v4126, %v4260
    %v4267 = vrot.slane %v2972, 7
    %v4268 = vrot.slane %v4267, 2
    %v4269 = vrot.slane %v2980, 7
    %v4270 = vsel %vm600, %v4268, %v4269
    %v4271 = vrot.slane %v4269, 2
    %v4272 = vrot.slane %v2988, 7
    %v4273 = vsel %vm600, %v4271, %v4272
    %v4274 = vrot.slane %v3056, 7
    %v4275 = vrot.slane %v4274, 2
    %v4276 = vrot.slane %v3055, 7
    %v4277 = vsel %vm600, %v4275, %v4276
    %v4278 = vrot.slane %v4276, 2
    %v4279 = vrot.slane %v3057, 7
    %v4280 = vsel %vm600, %v4278, %v4279
    %v4281 = vcombine.low %v4270, %v4273
    %v4283 = vunpack.c.l.s4 1983009808
    %v4284 = vunpack.c.0.s8 %v4283
    %v4285 = vlaneseq
    %v4286 = vshrl.u32 %v4285, 7
    %v4287 = vsub.s32 %v4284, %v4286
    %v4288 = vrot.slane %v4281, %v4287
    %v4289 = vcombine.low %v3847, %v4288
    %v4290 = vcombine.low %v4277, %v4280
    %v4292 = vunpack.c.l.s4 1983009808
    %v4293 = vunpack.c.0.s8 %v4292
    %v4294 = vlaneseq
    %v4295 = vshrl.u32 %v4294, 7
    %v4296 = vsub.s32 %v4293, %v4295
    %v4297 = vrot.slane %v4290, %v4296
    %v4298 = vcombine.low %v3857, %v4297
    %v4301 = vpack.c.bf16 %v4289, %v3237
    %v4302 = vpack.c.bf16 %v4298, %v3271
    %s4303 = scalar_lea.vmem %s5, 448
    %v4304 = vld [vmem:[%s4303] sm:$0xf]
    %v4305 = vld [vmem:[%s4303 + $0x4] sm:$0xf]
    %v4306 = vld [vmem:[%s4303 + $0x8] sm:$0xf]
    %v4307 = vld [vmem:[%s4303 + $0xc] sm:$0xf]
    %v4308 = vld [vmem:[%s4303 + $0x10] sm:$0xf]
    %v4309 = vld [vmem:[%s4303 + $0x14] sm:$0xf]
    %v4310 = vld [vmem:[%s4303 + $0x18] sm:$0xf]
    %v4311 = vld [vmem:[%s4303 + $0x1c] sm:$0xf]
    %v4312 = vld [vmem:[%s4303 + $0x20] sm:$0xf]
    %v4313 = vld [vmem:[%s4303 + $0x24] sm:$0xf]
    %v4314 = vld [vmem:[%s4303 + $0x28] sm:$0xf]
    %v4315 = vld [vmem:[%s4303 + $0x2c] sm:$0xf]
    %v4316 = vld [vmem:[%s4303 + $0x30] sm:$0xf]
    %v4317 = vld [vmem:[%s4303 + $0x34] sm:$0xf]
    %v4318 = vld [vmem:[%s4303 + $0x38] sm:$0xf]
    %v4319 = vld [vmem:[%s4303 + $0x3c] sm:$0xf]
    %v4336 = vunpack.c.l.b16 %v4304
    %v4337 = vunpack.c.l.b16 %v4305
    %v4338 = vunpack.c.l.b16 %v4306
    %v4339 = vunpack.c.l.b16 %v4307
    %v4340 = vunpack.c.l.b16 %v4308
    %v4341 = vunpack.c.l.b16 %v4309
    %v4342 = vunpack.c.l.b16 %v4310
    %v4343 = vunpack.c.l.b16 %v4311
    %v4344 = vunpack.c.l.b16 %v4312
    %v4345 = vunpack.c.l.b16 %v4313
    %v4346 = vunpack.c.l.b16 %v4314
    %v4347 = vunpack.c.l.b16 %v4315
    %v4348 = vunpack.c.l.b16 %v4316
    %v4349 = vunpack.c.l.b16 %v4317
    %v4350 = vunpack.c.l.b16 %v4318
    %v4351 = vunpack.c.l.b16 %v4319
    %v4352 = vpack.c.b16 %v4337, %v4336
    %v4353 = vpack.c.b16 %v4339, %v4338
    %v4354 = vpack.c.b16 %v4341, %v4340
    %v4355 = vpack.c.b16 %v4343, %v4342
    %v4356 = vpack.c.b16 %v4345, %v4344
    %v4357 = vpack.c.b16 %v4347, %v4346
    %v4358 = vpack.c.b16 %v4349, %v4348
    %v4359 = vpack.c.b16 %v4351, %v4350
    %4368 = vmatprep.subr.bf16.mxu0 0
    %4369 = vmatpush1.bf16.msra.mxu0 %v4352
    %4370 = vmatprep.subr.bf16.mxu0 0
    %4371 = vmatpush1.bf16.msra.mxu0 %v4353
    %4372 = vmatprep.subr.bf16.mxu0 0
    %4373 = vmatpush1.bf16.msra.mxu0 %v4354
    %4374 = vmatprep.subr.bf16.mxu0 0
    %4375 = vmatpush1.bf16.msra.mxu0 %v4355
    %4376 = vmatprep.subr.bf16.mxu0 0
    %4377 = vmatpush1.bf16.msra.mxu0 %v4356
    %4378 = vmatprep.subr.bf16.mxu0 0
    %4379 = vmatpush1.bf16.msra.mxu0 %v4357
    %4380 = vmatprep.subr.bf16.mxu0 0
    %4381 = vmatpush1.bf16.msra.mxu0 %v4358
    %4382 = vmatprep.subr.bf16.mxu0 0
    %4383 = vmatpush1.bf16.msra.mxu0 %v4359
    %4384 = vmatprep.subr.bf16.mxu0 0
    %4385 = vmatpush1.bf16.msra.mxu0 0
    %4386 = vmatprep.subr.bf16.mxu0 0
    %4387 = vmatpush1.bf16.msra.mxu0 0
    %4388 = vmatprep.subr.bf16.mxu0 0
    %4389 = vmatpush1.bf16.msra.mxu0 0
    %4390 = vmatprep.subr.bf16.mxu0 0
    %4391 = vmatpush1.bf16.msra.mxu0 0
    %4392 = vmatprep.subr.bf16.mxu0 0
    %4393 = vmatpush1.bf16.msra.mxu0 0
    %4394 = vmatprep.subr.bf16.mxu0 0
    %4395 = vmatpush1.bf16.msra.mxu0 0
    %4396 = vmatprep.subr.bf16.mxu0 0
    %4397 = vmatpush1.bf16.msra.mxu0 0
    %4398 = vmatprep.subr.bf16.mxu0 0
    %4399 = vmatpush1.bf16.msra.mxu0 0
    %4400 = vmatprep.mubr.bf16.mxu0 0
    %4401 = vmatmul.mubr.bf16.gmra.mrb[0].mxu0 %v4301
    %v4402 = vpop.f32.mrb[0].mxu0
    %v4403 = vadd.f32 0.0, %v4402
    %v4404 = vpop.f32.mrb[0].mxu0
    %v4405 = vpop.f32.mrb[0].mxu0
    %v4406 = vadd.f32 0.0, %v4405
    %v4407 = vpop.f32.mrb[0].mxu0
    %4408 = vmatprep.mubr.bf16.mxu0 0
    %4409 = vmatmul.mubr.bf16.gmra.mrb[0].mxu0 %v4302
    %v4410 = vpop.f32.mrb[0].mxu0
    %v4411 = vadd.f32 0.0, %v4410
    %v4412 = vpop.f32.mrb[0].mxu0
    %v4413 = vpop.f32.mrb[0].mxu0
    %v4414 = vadd.f32 0.0, %v4413
    %v4415 = vpop.f32.mrb[0].mxu0
    %4416 = vdwg.mxu0
    %v4417 = vadd.f32 %v4263, %v4403
    %v4418 = vadd.f32 %v4264, %v4406
    %v4419 = vadd.f32 %v4265, %v4411
    %v4420 = vadd.f32 %v4266, %v4414
    %v4421 = vcombine.low %v2980, %v2988
    %v4423 = vunpack.c.l.s4 1983009808
    %v4424 = vunpack.c.0.s8 %v4423
    %v4425 = vlaneseq
    %v4426 = vshrl.u32 %v4425, 7
    %v4427 = vsub.s32 %v4424, %v4426
    %v4428 = vrot.slane %v4421, %v4427
    %v4429 = vcombine.low %v3991, %v4428
    %v4430 = vcombine.low %v3055, %v3057
    %v4432 = vunpack.c.l.s4 1983009808
    %v4433 = vunpack.c.0.s8 %v4432
    %v4434 = vlaneseq
    %v4435 = vshrl.u32 %v4434, 7
    %v4436 = vsub.s32 %v4433, %v4435
    %v4437 = vrot.slane %v4430, %v4436
    %v4438 = vcombine.low %v4001, %v4437
    %v4441 = vpack.c.bf16 %v4429, %v3522
    %v4442 = vpack.c.bf16 %v4438, %v3556
    %s4443 = scalar_lea.vmem %s5, 512
    %v4444 = vld [vmem:[%s4443] sm:$0xf]
    %v4445 = vld [vmem:[%s4443 + $0x4] sm:$0xf]
    %v4446 = vld [vmem:[%s4443 + $0x8] sm:$0xf]
    %v4447 = vld [vmem:[%s4443 + $0xc] sm:$0xf]
    %v4448 = vld [vmem:[%s4443 + $0x10] sm:$0xf]
    %v4449 = vld [vmem:[%s4443 + $0x14] sm:$0xf]
    %v4450 = vld [vmem:[%s4443 + $0x18] sm:$0xf]
    %v4451 = vld [vmem:[%s4443 + $0x1c] sm:$0xf]
    %v4452 = vld [vmem:[%s4443 + $0x20] sm:$0xf]
    %v4453 = vld [vmem:[%s4443 + $0x24] sm:$0xf]
    %v4454 = vld [vmem:[%s4443 + $0x28] sm:$0xf]
    %v4455 = vld [vmem:[%s4443 + $0x2c] sm:$0xf]
    %v4456 = vld [vmem:[%s4443 + $0x30] sm:$0xf]
    %v4457 = vld [vmem:[%s4443 + $0x34] sm:$0xf]
    %v4458 = vld [vmem:[%s4443 + $0x38] sm:$0xf]
    %v4459 = vld [vmem:[%s4443 + $0x3c] sm:$0xf]
    %v4476 = vunpack.c.l.b16 %v4444
    %v4477 = vunpack.c.l.b16 %v4445
    %v4478 = vunpack.c.l.b16 %v4446
    %v4479 = vunpack.c.l.b16 %v4447
    %v4480 = vunpack.c.l.b16 %v4448
    %v4481 = vunpack.c.l.b16 %v4449
    %v4482 = vunpack.c.l.b16 %v4450
    %v4483 = vunpack.c.l.b16 %v4451
    %v4484 = vunpack.c.l.b16 %v4452
    %v4485 = vunpack.c.l.b16 %v4453
    %v4486 = vunpack.c.l.b16 %v4454
    %v4487 = vunpack.c.l.b16 %v4455
    %v4488 = vunpack.c.l.b16 %v4456
    %v4489 = vunpack.c.l.b16 %v4457
    %v4490 = vunpack.c.l.b16 %v4458
    %v4491 = vunpack.c.l.b16 %v4459
    %v4492 = vpack.c.b16 %v4477, %v4476
    %v4493 = vpack.c.b16 %v4479, %v4478
    %v4494 = vpack.c.b16 %v4481, %v4480
    %v4495 = vpack.c.b16 %v4483, %v4482
    %v4496 = vpack.c.b16 %v4485, %v4484
    %v4497 = vpack.c.b16 %v4487, %v4486
    %v4498 = vpack.c.b16 %v4489, %v4488
    %v4499 = vpack.c.b16 %v4491, %v4490
    %4508 = vmatprep.subr.bf16.mxu0 0
    %4509 = vmatpush1.bf16.msra.mxu0 %v4492
    %4510 = vmatprep.subr.bf16.mxu0 0
    %4511 = vmatpush1.bf16.msra.mxu0 %v4493
    %4512 = vmatprep.subr.bf16.mxu0 0
    %4513 = vmatpush1.bf16.msra.mxu0 %v4494
    %4514 = vmatprep.subr.bf16.mxu0 0
    %4515 = vmatpush1.bf16.msra.mxu0 %v4495
    %4516 = vmatprep.subr.bf16.mxu0 0
    %4517 = vmatpush1.bf16.msra.mxu0 %v4496
    %4518 = vmatprep.subr.bf16.mxu0 0
    %4519 = vmatpush1.bf16.msra.mxu0 %v4497
    %4520 = vmatprep.subr.bf16.mxu0 0
    %4521 = vmatpush1.bf16.msra.mxu0 %v4498
    %4522 = vmatprep.subr.bf16.mxu0 0
    %4523 = vmatpush1.bf16.msra.mxu0 %v4499
    %4524 = vmatprep.subr.bf16.mxu0 0
    %4525 = vmatpush1.bf16.msra.mxu0 0
    %4526 = vmatprep.subr.bf16.mxu0 0
    %4527 = vmatpush1.bf16.msra.mxu0 0
    %4528 = vmatprep.subr.bf16.mxu0 0
    %4529 = vmatpush1.bf16.msra.mxu0 0
    %4530 = vmatprep.subr.bf16.mxu0 0
    %4531 = vmatpush1.bf16.msra.mxu0 0
    %4532 = vmatprep.subr.bf16.mxu0 0
    %4533 = vmatpush1.bf16.msra.mxu0 0
    %4534 = vmatprep.subr.bf16.mxu0 0
    %4535 = vmatpush1.bf16.msra.mxu0 0
    %4536 = vmatprep.subr.bf16.mxu0 0
    %4537 = vmatpush1.bf16.msra.mxu0 0
    %4538 = vmatprep.subr.bf16.mxu0 0
    %4539 = vmatpush1.bf16.msra.mxu0 0
    %4540 = vmatprep.mubr.bf16.mxu0 0
    %4541 = vmatmul.mubr.bf16.gmra.mrb[0].mxu0 %v4441
    %v4542 = vpop.f32.mrb[0].mxu0
    %v4543 = vadd.f32 0.0, %v4542
    %v4544 = vpop.f32.mrb[0].mxu0
    %v4545 = vpop.f32.mrb[0].mxu0
    %v4546 = vadd.f32 0.0, %v4545
    %v4547 = vpop.f32.mrb[0].mxu0
    %4548 = vmatprep.mubr.bf16.mxu0 0
    %4549 = vmatmul.mubr.bf16.gmra.mrb[0].mxu0 %v4442
    %v4550 = vpop.f32.mrb[0].mxu0
    %v4551 = vadd.f32 0.0, %v4550
    %v4552 = vpop.f32.mrb[0].mxu0
    %v4553 = vpop.f32.mrb[0].mxu0
    %v4554 = vadd.f32 0.0, %v4553
    %v4555 = vpop.f32.mrb[0].mxu0
    %4556 = vdwg.mxu0
    %v4557 = vadd.f32 %v4417, %v4543
    %v4558 = vadd.f32 %v4418, %v4546
    %v4559 = vadd.f32 %v4419, %v4551
    %v4560 = vadd.f32 %v4420, %v4554
    %v4561 = vld [vmem:[%s6] sm:$0x1]
    %v4563 = vlaneseq
    %v4564 = vshrl.u32 %v4563, 7
    %v4565 = vsub.s32 0, %v4564
    %v4566 = vrot.slane %v4561, %v4565
    %v4568 = vadd.f32 %v4557, %v4566
    %v4569 = vadd.f32 %v4558, %v4566
    %v4570 = vadd.f32 %v4559, %v4566
    %v4571 = vadd.f32 %v4560, %v4566
    %v4572 = vmax.f32 %v4568, 0.0
    %v4573 = vmax.f32 %v4569, 0.0
    %v4574 = vmax.f32 %v4570, 0.0
    %v4575 = vmax.f32 %v4571, 0.0
    %vm4576 = vcmask 261120
    %v4577 = vsel %vm4576, 1.0, 0
    %4579 = vmatprep.subr.mxu0 0.0
    %4580 = vmatpush1.msra.mxu0 %v4572
    %4581 = vmatprep.subr.mxu0 0.0
    %4582 = vmatpush1.msra.mxu0 %v4573
    %4583 = vmatprep.subr.mxu0 0.0
    %4584 = vmatpush1.msra.mxu0 %v4574
    %4585 = vmatprep.subr.mxu0 0.0
    %4586 = vmatpush1.msra.mxu0 %v4575
    %4587 = vmatprep.subr.mxu0 0.0
    %4588 = vmatpush1.msra.mxu0 0.0
    %4589 = vmatprep.subr.mxu0 0.0
    %4590 = vmatpush1.msra.mxu0 0.0
    %4591 = vmatprep.subr.mxu0 0.0
    %4592 = vmatpush1.msra.mxu0 0.0
    %4593 = vmatprep.subr.mxu0 0.0
    %4594 = vmatpush1.msra.mxu0 0.0
    %4595 = vmatprep.subr.mxu0 0.0
    %4596 = vmatpush1.msra.mxu0 0.0
    %4597 = vmatprep.subr.mxu0 0.0
    %4598 = vmatpush1.msra.mxu0 0.0
    %4599 = vmatprep.subr.mxu0 0.0
    %4600 = vmatpush1.msra.mxu0 0.0
    %4601 = vmatprep.subr.mxu0 0.0
    %4602 = vmatpush1.msra.mxu0 0.0
    %4603 = vmatprep.subr.mxu0 0.0
    %4604 = vmatpush1.msra.mxu0 0.0
    %4605 = vmatprep.subr.mxu0 0.0
    %4606 = vmatpush1.msra.mxu0 0.0
    %4607 = vmatprep.subr.mxu0 0.0
    %4608 = vmatpush1.msra.mxu0 0.0
    %4609 = vmatprep.subr.mxu0 0.0
    %4610 = vmatpush1.msra.mxu0 0.0
    %4611 = vmatprep.subr.mxu0 0.0
    %4612 = vmatpush1.msra.mxu0 0.0
    %4613 = vmatprep.subr.mxu0 0.0
    %4614 = vmatpush1.msra.mxu0 0.0
    %4615 = vmatprep.subr.mxu0 0.0
    %4616 = vmatpush1.msra.mxu0 0.0
    %4617 = vmatprep.subr.mxu0 0.0
    %4618 = vmatpush1.msra.mxu0 0.0
    %4619 = vmatprep.subr.mxu0 0.0
    %4620 = vmatpush1.msra.mxu0 0.0
    %4621 = vmatprep.subr.mxu0 0.0
    %4622 = vmatpush1.msra.mxu0 0.0
    %4623 = vmatprep.subr.mxu0 0.0
    %4624 = vmatpush1.msra.mxu0 0.0
    %4625 = vmatprep.subr.mxu0 0.0
    %4626 = vmatpush1.msra.mxu0 0.0
    %4627 = vmatprep.subr.mxu0 0.0
    %4628 = vmatpush1.msra.mxu0 0.0
    %4629 = vmatprep.subr.mxu0 0.0
    %4630 = vmatpush1.msra.mxu0 0.0
    %4631 = vmatprep.subr.mxu0 0.0
    %4632 = vmatpush1.msra.mxu0 0.0
    %4633 = vmatprep.subr.mxu0 0.0
    %4634 = vmatpush1.msra.mxu0 0.0
    %4635 = vmatprep.subr.mxu0 0.0
    %4636 = vmatpush1.msra.mxu0 0.0
    %4637 = vmatprep.subr.mxu0 0.0
    %4638 = vmatpush1.msra.mxu0 0.0
    %4639 = vmatprep.subr.mxu0 0.0
    %4640 = vmatpush1.msra.mxu0 0.0
    %4641 = vmatprep.subr.mxu0 0.0
    %4642 = vmatpush1.msra.mxu0 0.0
    %4643 = vmatprep.mubr.f32.mxu0 0.0
    %4644 = vmatmul.mubr.f32.gmra.mrb[0].mxu0 %v4577
    %v4645 = vpop.f32.mrb[0].mxu0
    %v4646 = vadd.f32 0.0, %v4645
    %v4647 = vpop.f32.mrb[0].mxu0
    %4648 = vdwg.mxu0
    %v4649 = vmul.f32 %v4572, %v4572
    %v4650 = vmul.f32 %v4573, %v4573
    %v4651 = vmul.f32 %v4574, %v4574
    %v4652 = vmul.f32 %v4575, %v4575
    %4653 = vmatprep.subr.mxu0 0.0
    %4654 = vmatpush1.msra.mxu0 %v4649
    %4655 = vmatprep.subr.mxu0 0.0
    %4656 = vmatpush1.msra.mxu0 %v4650
    %4657 = vmatprep.subr.mxu0 0.0
    %4658 = vmatpush1.msra.mxu0 %v4651
    %4659 = vmatprep.subr.mxu0 0.0
    %4660 = vmatpush1.msra.mxu0 %v4652
    %4661 = vmatprep.subr.mxu0 0.0
    %4662 = vmatpush1.msra.mxu0 0.0
    %4663 = vmatprep.subr.mxu0 0.0
    %4664 = vmatpush1.msra.mxu0 0.0
    %4665 = vmatprep.subr.mxu0 0.0
    %4666 = vmatpush1.msra.mxu0 0.0
    %4667 = vmatprep.subr.mxu0 0.0
    %4668 = vmatpush1.msra.mxu0 0.0
    %4669 = vmatprep.subr.mxu0 0.0
    %4670 = vmatpush1.msra.mxu0 0.0
    %4671 = vmatprep.subr.mxu0 0.0
    %4672 = vmatpush1.msra.mxu0 0.0
    %4673 = vmatprep.subr.mxu0 0.0
    %4674 = vmatpush1.msra.mxu0 0.0
    %4675 = vmatprep.subr.mxu0 0.0
    %4676 = vmatpush1.msra.mxu0 0.0
    %4677 = vmatprep.subr.mxu0 0.0
    %4678 = vmatpush1.msra.mxu0 0.0
    %4679 = vmatprep.subr.mxu0 0.0
    %4680 = vmatpush1.msra.mxu0 0.0
    %4681 = vmatprep.subr.mxu0 0.0
    %4682 = vmatpush1.msra.mxu0 0.0
    %4683 = vmatprep.subr.mxu0 0.0
    %4684 = vmatpush1.msra.mxu0 0.0
    %4685 = vmatprep.subr.mxu0 0.0
    %4686 = vmatpush1.msra.mxu0 0.0
    %4687 = vmatprep.subr.mxu0 0.0
    %4688 = vmatpush1.msra.mxu0 0.0
    %4689 = vmatprep.subr.mxu0 0.0
    %4690 = vmatpush1.msra.mxu0 0.0
    %4691 = vmatprep.subr.mxu0 0.0
    %4692 = vmatpush1.msra.mxu0 0.0
    %4693 = vmatprep.subr.mxu0 0.0
    %4694 = vmatpush1.msra.mxu0 0.0
    %4695 = vmatprep.subr.mxu0 0.0
    %4696 = vmatpush1.msra.mxu0 0.0
    %4697 = vmatprep.subr.mxu0 0.0
    %4698 = vmatpush1.msra.mxu0 0.0
    %4699 = vmatprep.subr.mxu0 0.0
    %4700 = vmatpush1.msra.mxu0 0.0
    %4701 = vmatprep.subr.mxu0 0.0
    %4702 = vmatpush1.msra.mxu0 0.0
    %4703 = vmatprep.subr.mxu0 0.0
    %4704 = vmatpush1.msra.mxu0 0.0
    %4705 = vmatprep.subr.mxu0 0.0
    %4706 = vmatpush1.msra.mxu0 0.0
    %4707 = vmatprep.subr.mxu0 0.0
    %4708 = vmatpush1.msra.mxu0 0.0
    %4709 = vmatprep.subr.mxu0 0.0
    %4710 = vmatpush1.msra.mxu0 0.0
    %4711 = vmatprep.subr.mxu0 0.0
    %4712 = vmatpush1.msra.mxu0 0.0
    %4713 = vmatprep.subr.mxu0 0.0
    %4714 = vmatpush1.msra.mxu0 0.0
    %4715 = vmatprep.subr.mxu0 0.0
    %4716 = vmatpush1.msra.mxu0 0.0
    %4717 = vmatprep.mubr.f32.mxu0 0.0
    %4718 = vmatmul.mubr.f32.gmra.mrb[0].mxu0 %v4577
    %v4719 = vpop.f32.mrb[0].mxu0
    %v4720 = vadd.f32 0.0, %v4719
    %v4721 = vpop.f32.mrb[0].mxu0
    %4722 = vdwg.mxu0
    %v4723 = vmul.f32 %v4646, 0.03125
    %v4724 = vmul.f32 %v4720, 0.03125
    %v4725 = vmul.f32 %v4723, %v4723
    %v4726 = vsub.f32 %v4724, %v4725
    %v4727 = vmax.f32 %v4726, 0.0
    %v4728 = vld [vmem:[%s7] sm:$0x1]
    %v4729 = vadd.f32 %v4727, 1e-05
    %v4730 = vrsqrt.pop %v4729
    %v4731 = vmul.f32 %v4728, %v4730
    %v4732 = vld [vmem:[%s8] sm:$0x1]
    %v4733 = vmul.f32 %v4723, %v4731
    %v4734 = vsub.f32 %v4732, %v4733
    %v4736 = vlaneseq
    %v4737 = vshrl.u32 %v4736, 7
    %v4738 = vsub.s32 0, %v4737
    %v4739 = vrot.slane %v4731, %v4738
    %v4741 = vmul.f32 %v4572, %v4739
    %v4742 = vmul.f32 %v4573, %v4739
    %v4743 = vmul.f32 %v4574, %v4739
    %v4744 = vmul.f32 %v4575, %v4739
    %v4746 = vlaneseq
    %v4747 = vshrl.u32 %v4746, 7
    %v4748 = vsub.s32 0, %v4747
    %v4749 = vrot.slane %v4734, %v4748
    %v4751 = vadd.f32 %v4741, %v4749
    %v4752 = vadd.f32 %v4742, %v4749
    %v4753 = vadd.f32 %v4743, %v4749
    %v4754 = vadd.f32 %v4744, %v4749
    %4755 = vst [vmem:[#allocation2] sm:$0xff] %v4751
    %4756 = vst [vmem:[#allocation2 + $0x8] sm:$0xff] %v4752
    %4757 = vst [vmem:[#allocation2 + $0x10] sm:$0xff] %v4753
    %4758 = vst [vmem:[#allocation2 + $0x18] sm:$0xff] %v4754
    // Predicated region
    $region38: #{downstep_forward.1} parent=1 // pred_check
      _
    $region39: #{downstep_forward.1} parent=1 // pred_check_branch
      %4760 = sbr.rel (0) target = $region41
    $region40: #{downstep_forward.1} parent=1 // pred_region
      %s4762 = ssub.s32 512, 512
      %4763 = vsyncadd [#allocation3], %s4762
      %s4764 = sshll.u32 [#allocation2], 4
      %s4765 = int_to_ptr.vmem [resolvable:$true] %s4764
      %4770 = dma.vmem_to_hbm [thread:$0]  %s4765, 512, %s9, [#allocation3], 128, 128, 8
    $region41: #{downstep_forward.1} parent=1 // pred_fallthru
      _
    // Predicated region
    $region42: #{downstep_forward.1} parent=1 // pred_check
      _
    $region43: #{downstep_forward.1} parent=1 // pred_check_branch
      %4772 = sbr.rel (0) target = $region45
    $region44: #{downstep_forward.1} parent=1 // pred_region
      %4773 = dma.done [#allocation3], 512
    $region45: #{downstep_forward.1} parent=1 // pred_fallthru
      _
    %4774 = vsyncpa [#allocation3], 1

</llo_original>
